<compile_context>
chip_gen: v6e
topology: v6e:2x2x1
jax: 0.10.0
libtpu: 0.0.40
codegen_flags: <defaults>
</compile_context>

<pallas_src>
import jax
import jax.numpy as jnp
from jax.experimental import pallas as pl
from jax.experimental.pallas import tpu as pltpu

HIDDEN = 32    # hidden_size
VOCAB = 40     # output_size
HPAD = 128     # one full vreg lane width (x|h packed into one vreg)
GPAD = 128     # per-gate lane block (r | z | gi_n | gh_n)
VPAD = 128     # padded vocab width for lane-dense output stores
NEG = -1.0e30  # logit value for padded vocab lanes (drops out of softmax)


# ----------------------------------------------------------------------------
# Kernel: single invocation, T GRU steps in an in-kernel loop, everything
# resident in VMEM.
# ----------------------------------------------------------------------------
def decoder_seq_kernel(x_ref,      # VMEM (T, HPAD)  relu'd embeddings, lanes [H, 2H)
                       h0_ref,     # VMEM (1, HPAD)  initial hidden, lanes [0, H)
                       wf_ref,     # VMEM (HPAD, 4*GPAD) fused GRU weight
                       bf_ref,     # VMEM (1, 4*GPAD)    fused GRU bias
                       wo_ref,     # VMEM (HPAD, VPAD)   output projection
                       bo_ref,     # VMEM (1, VPAD)      output bias (-1e30 pad)
                       logp_ref,   # VMEM (T, VPAD)      per-step log-probs
                       hout_ref):  # VMEM (1, HPAD)      final hidden
    T = x_ref.shape[0]

    def step(t, h):
        # h: (1, HPAD), real values in lanes [0, HIDDEN), pad lanes exactly 0.
        x = x_ref[pl.ds(t, 1), :]            # (1, HPAD), x in lanes [H, 2H)
        xh = x + h                           # disjoint lanes -> free "concat"
        # one fused K=128 matmul -> [r | z | gi_n | gh_n] gate pre-activations
        g = jnp.dot(xh, wf_ref[...], preferred_element_type=jnp.float32) + bf_ref[...]
        r = jax.nn.sigmoid(g[:, 0:GPAD])
        z = jax.nn.sigmoid(g[:, GPAD:2 * GPAD])
        n = jnp.tanh(g[:, 2 * GPAD:3 * GPAD] + r * g[:, 3 * GPAD:4 * GPAD])
        h_new = (1.0 - z) * n + z * h        # pad lanes stay exactly 0

        # out linear + log-softmax (padded vocab lanes carry -1e30 bias)
        logits = jnp.dot(h_new, wo_ref[...], preferred_element_type=jnp.float32) + bo_ref[...]
        m = jnp.max(logits, axis=1, keepdims=True)
        lse = m + jnp.log(jnp.sum(jnp.exp(logits - m), axis=1, keepdims=True))
        logp_ref[pl.ds(t, 1), :] = logits - lse   # lane-dense 128-wide store
        return h_new

    h_final = jax.lax.fori_loop(0, T, step, h0_ref[...], unroll=(T <= 16))
    hout_ref[...] = h_final                  # written back to HBM once


# ----------------------------------------------------------------------------
# Parameter creation + one-time fuse/transpose/pad
# ----------------------------------------------------------------------------
def make_params(key, hidden_size=HIDDEN, output_size=VOCAB):
    ks = jax.random.split(key, 8)
    s = 1.0 / jnp.sqrt(hidden_size)
    return {
        "embedding": jax.random.normal(ks[0], (output_size, hidden_size), jnp.float32),
        "w_ih": jax.random.uniform(ks[1], (3 * hidden_size, hidden_size), jnp.float32, -s, s),
        "w_hh": jax.random.uniform(ks[2], (3 * hidden_size, hidden_size), jnp.float32, -s, s),
        "b_ih": jax.random.uniform(ks[3], (3 * hidden_size,), jnp.float32, -s, s),
        "b_hh": jax.random.uniform(ks[4], (3 * hidden_size,), jnp.float32, -s, s),
        "w_out": jax.random.uniform(ks[5], (output_size, hidden_size), jnp.float32, -s, s),
        "b_out": jax.random.uniform(ks[6], (output_size,), jnp.float32, -s, s),
    }


def prepare_params(params):
    """Build the fused / lane-padded kernel operands ONCE (off the hot path)."""
    H, V = HIDDEN, VOCAB
    w_ih, w_hh = params["w_ih"], params["w_hh"]
    b_ih, b_hh = params["b_ih"], params["b_hh"]

    # Fused GRU weight with K = HPAD = 128 (one vreg of LHS):
    #   rows [0:H)   <- hidden-state weights   (h lives in lanes [0, H))
    #   rows [H:2H)  <- input/embedding weights (x lives in lanes [H, 2H))
    # column blocks [r | z | gi_n | gh_n], each GPAD lanes wide; pads are 0.
    wf = jnp.zeros((HPAD, 4 * GPAD), jnp.float32)
    wf = wf.at[0:H, 0:H].set(w_hh[0:H].T)                                # r   (h)
    wf = wf.at[H:2 * H, 0:H].set(w_ih[0:H].T)                            # r   (x)
    wf = wf.at[0:H, GPAD:GPAD + H].set(w_hh[H:2 * H].T)                  # z   (h)
    wf = wf.at[H:2 * H, GPAD:GPAD + H].set(w_ih[H:2 * H].T)              # z   (x)
    wf = wf.at[H:2 * H, 2 * GPAD:2 * GPAD + H].set(w_ih[2 * H:3 * H].T)  # gi_n (x)
    wf = wf.at[0:H, 3 * GPAD:3 * GPAD + H].set(w_hh[2 * H:3 * H].T)      # gh_n (h)

    bf = jnp.zeros((1, 4 * GPAD), jnp.float32)
    bf = bf.at[0, 0:H].set(b_ih[0:H] + b_hh[0:H])                        # r bias pre-summed
    bf = bf.at[0, GPAD:GPAD + H].set(b_ih[H:2 * H] + b_hh[H:2 * H])      # z bias pre-summed
    bf = bf.at[0, 2 * GPAD:2 * GPAD + H].set(b_ih[2 * H:3 * H])          # b_in
    bf = bf.at[0, 3 * GPAD:3 * GPAD + H].set(b_hh[2 * H:3 * H])          # b_hn (kept separate)

    wo = jnp.zeros((HPAD, VPAD), jnp.float32)
    wo = wo.at[0:H, 0:V].set(params["w_out"].T)
    bo = jnp.full((1, VPAD), NEG, jnp.float32)
    bo = bo.at[0, 0:V].set(params["b_out"])

    return {"embedding": params["embedding"], "w_fused": wf, "b_fused": bf,
            "w_out": wo, "b_out": bo}


# ----------------------------------------------------------------------------
# Wrappers
# ----------------------------------------------------------------------------
@jax.jit
def decoder_rnn_forward_seq(prepped, tokens, hidden0):
    """Run T decoder steps in one pallas_call.
    tokens: int32 (T,); hidden0: (1, 1, HIDDEN) float32.
    Returns (log_probs (T, VOCAB), new_hidden (1, 1, HIDDEN)).
    NOTE: T is baked into shapes -> bucket/pad T in real decode loops to avoid
    per-length recompiles."""
    T = tokens.shape[0]

    # Embedding gather + ReLU hoisted off the serial critical path; activation
    # is pre-shifted into lanes [HIDDEN, 2*HIDDEN) so the kernel's x + h add is
    # an exact one-vreg concat (h occupies lanes [0, HIDDEN)).
    x = jnp.maximum(prepped["embedding"][tokens.astype(jnp.int32)], 0.0)    # (T, H)
    x_seq = jnp.zeros((T, HPAD), jnp.float32).at[:, HIDDEN:2 * HIDDEN].set(x)

    h0 = jnp.zeros((1, HPAD), jnp.float32).at[0, :HIDDEN].set(
        jnp.reshape(hidden0, (HIDDEN,)))

    logp_pad, h_pad = pl.pallas_call(
        decoder_seq_kernel,
        out_shape=(
            jax.ShapeDtypeStruct((T, VPAD), jnp.float32),
            jax.ShapeDtypeStruct((1, HPAD), jnp.float32),
        ),
        grid=(1,),
        in_specs=[
            pl.BlockSpec((T, HPAD), lambda i: (0, 0)),              # relu'd embeddings
            pl.BlockSpec((1, HPAD), lambda i: (0, 0)),              # h0
            pl.BlockSpec((HPAD, 4 * GPAD), lambda i: (0, 0)),       # fused GRU weight
            pl.BlockSpec((1, 4 * GPAD), lambda i: (0, 0)),          # fused GRU bias
            pl.BlockSpec((HPAD, VPAD), lambda i: (0, 0)),           # out weight
            pl.BlockSpec((1, VPAD), lambda i: (0, 0)),              # out bias
        ],
        out_specs=(
            pl.BlockSpec((T, VPAD), lambda i: (0, 0)),              # all log-probs
            pl.BlockSpec((1, HPAD), lambda i: (0, 0)),              # final hidden
        ),
        compiler_params=pltpu.CompilerParams(
            dimension_semantics=("arbitrary",)),
    )(x_seq, h0, prepped["w_fused"], prepped["b_fused"],
      prepped["w_out"], prepped["b_out"])

    logp = logp_pad[:, :VOCAB]
    h_new = jnp.reshape(h_pad[:, :HIDDEN], (1, 1, HIDDEN))
    return logp, h_new


def decoder_rnn_forward(prepped, input_token, hidden):
    """Single-step forward matching the PyTorch module's forward()."""
    tokens = jnp.reshape(input_token, (1,)).astype(jnp.int32)
    logp, h_new = decoder_rnn_forward_seq(prepped, tokens, hidden)
    return logp, h_new  # (1, VOCAB), (1, 1, HIDDEN)


# ----------------------------------------------------------------------------
# Pure-JAX reference mirroring the PyTorch module
# ----------------------------------------------------------------------------
def reference_step(params, token, h):
    H = HIDDEN
    x = jax.nn.relu(params["embedding"][token][None, :])
    gi = x @ params["w_ih"].T + params["b_ih"]
    gh = h @ params["w_hh"].T + params["b_hh"]
    r = jax.nn.sigmoid(gi[:, :H] + gh[:, :H])
    z = jax.nn.sigmoid(gi[:, H:2 * H] + gh[:, H:2 * H])
    n = jnp.tanh(gi[:, 2 * H:] + r * gh[:, 2 * H:])
    h_new = (1.0 - z) * n + z * h
    logits = h_new @ params["w_out"].T + params["b_out"]
    return jax.nn.log_softmax(logits, axis=1), h_new


def reference_seq(params, tokens, hidden0):
    h = jnp.reshape(hidden0, (1, HIDDEN))
    logps = []
    for t in range(int(tokens.shape[0])):
        lp, h = reference_step(params, tokens[t], h)
        logps.append(lp)
    return jnp.concatenate(logps, axis=0), jnp.reshape(h, (1, 1, HIDDEN))


if __name__ == "__main__":
    key = jax.random.PRNGKey(0)
    params = make_params(key)
    prepped = prepare_params(params)   # one-time weight fuse/transpose/pad

    T = 8
    tokens = jax.random.randint(jax.random.PRNGKey(1), (T,), 0, VOCAB, dtype=jnp.int32)
    hidden0 = jnp.zeros((1, 1, HIDDEN), dtype=jnp.float32)  # initHidden()

    # full-sequence decode in a single pallas_call / single kernel invocation
    logp, h_new = decoder_rnn_forward_seq(prepped, tokens, hidden0)
    logp = jax.block_until_ready(logp)
    h_new = jax.block_until_ready(h_new)

    logp_ref, h_ref = reference_seq(params, tokens, hidden0)
    assert logp.shape == (T, VOCAB) and h_new.shape == (1, 1, HIDDEN)
    assert jnp.allclose(logp, logp_ref, atol=2e-4, rtol=2e-4), \
        float(jnp.max(jnp.abs(logp - logp_ref)))
    assert jnp.allclose(h_new, h_ref, atol=2e-4, rtol=2e-4)

    # single-step path (exact module forward signature)
    logp1, h1 = decoder_rnn_forward(prepped, tokens[0], hidden0)
    logp1 = jax.block_until_ready(logp1)
    logp1_ref, h1_ref = reference_step(params, tokens[0], jnp.reshape(hidden0, (1, HIDDEN)))
    assert logp1.shape == (1, VOCAB)
    assert jnp.allclose(logp1, logp1_ref, atol=2e-4, rtol=2e-4)
    assert jnp.allclose(jnp.reshape(h1, (1, HIDDEN)), h1_ref, atol=2e-4, rtol=2e-4)

    print("KERNEL_OK")
</pallas_src>

<mosaic_0001>
module attributes {stable_mosaic.version = 11 : i64} {
  func.func @decoder_seq_kernel(%arg0: i32, %arg1: memref<8x128xf32, #tpu.memory_space<vmem>>, %arg2: memref<1x128xf32, #tpu.memory_space<vmem>>, %arg3: memref<128x512xf32, #tpu.memory_space<vmem>>, %arg4: memref<1x512xf32, #tpu.memory_space<vmem>>, %arg5: memref<128x128xf32, #tpu.memory_space<vmem>>, %arg6: memref<1x128xf32, #tpu.memory_space<vmem>>, %arg7: memref<8x128xf32, #tpu.memory_space<vmem>>, %arg8: memref<1x128xf32, #tpu.memory_space<vmem>>) attributes {dimension_semantics = [#tpu.dimension_semantics<arbitrary>], iteration_bounds = array<i64: 1>, scalar_prefetch = 0 : i64, scratch_operands = 0 : i64, tpu.core_type = #tpu.core_type<tc>, window_params = [{pipeline_mode = #tpu.pipeline_mode<synchronous>, transform_indices = @transform_0, window_bounds = array<i64: 8, 128>}, {pipeline_mode = #tpu.pipeline_mode<synchronous>, transform_indices = @transform_1, window_bounds = array<i64: 1, 128>}, {pipeline_mode = #tpu.pipeline_mode<synchronous>, transform_indices = @transform_2, window_bounds = array<i64: 128, 512>}, {pipeline_mode = #tpu.pipeline_mode<synchronous>, transform_indices = @transform_3, window_bounds = array<i64: 1, 512>}, {pipeline_mode = #tpu.pipeline_mode<synchronous>, transform_indices = @transform_4, window_bounds = array<i64: 128, 128>}, {pipeline_mode = #tpu.pipeline_mode<synchronous>, transform_indices = @transform_5, window_bounds = array<i64: 1, 128>}, {pipeline_mode = #tpu.pipeline_mode<synchronous>, transform_indices = @transform_6, window_bounds = array<i64: 8, 128>}, {pipeline_mode = #tpu.pipeline_mode<synchronous>, transform_indices = @transform_7, window_bounds = array<i64: 1, 128>}]} {
    %c0 = arith.constant 0 : index
    %c0_0 = arith.constant 0 : index
    %0 = vector.load %arg2[%c0, %c0_0] : memref<1x128xf32, #tpu.memory_space<vmem>>, vector<1x128xf32>
    %c0_i32 = arith.constant 0 : i32
    %1 = arith.index_cast %c0_i32 : i32 to index
    %c0_1 = arith.constant 0 : index
    %2 = vector.load %arg1[%1, %c0_1] : memref<8x128xf32, #tpu.memory_space<vmem>>, vector<1x128xf32>
    %3 = arith.addf %2, %0 : vector<1x128xf32>
    %c0_2 = arith.constant 0 : index
    %c0_3 = arith.constant 0 : index
    %4 = vector.load %arg3[%c0_2, %c0_3] : memref<128x512xf32, #tpu.memory_space<vmem>>, vector<128x512xf32>
    %cst = arith.constant dense<0.000000e+00> : vector<1x512xf32>
    %5 = tpu.matmul %3, %4, %cst {dimension_numbers = #tpu.dot_dimension_numbers<[1], [0], [0], [1], [0, 0, 1, 1], [], []>} : vector<1x128xf32>, vector<128x512xf32>, vector<1x512xf32> -> vector<1x512xf32>
    %c0_4 = arith.constant 0 : index
    %c0_5 = arith.constant 0 : index
    %6 = vector.load %arg4[%c0_4, %c0_5] : memref<1x512xf32, #tpu.memory_space<vmem>>, vector<1x512xf32>
    %7 = arith.addf %5, %6 : vector<1x512xf32>
    %8 = vector.extract_strided_slice %7 {offsets = [0, 0], sizes = [1, 128], strides = [1, 1]} : vector<1x512xf32> to vector<1x128xf32>
    %9 = arith.negf %8 : vector<1x128xf32>
    %10 = math.exp %9 : vector<1x128xf32>
    %cst_6 = arith.constant 1.000000e+00 : f32
    %11 = vector.broadcast %cst_6 : f32 to vector<1x128xf32>
    %12 = arith.addf %11, %10 : vector<1x128xf32>
    %13 = arith.divf %11, %12 : vector<1x128xf32>
    %14 = vector.extract_strided_slice %7 {offsets = [0, 128], sizes = [1, 128], strides = [1, 1]} : vector<1x512xf32> to vector<1x128xf32>
    %15 = arith.negf %14 : vector<1x128xf32>
    %16 = math.exp %15 : vector<1x128xf32>
    %cst_7 = arith.constant 1.000000e+00 : f32
    %17 = vector.broadcast %cst_7 : f32 to vector<1x128xf32>
    %18 = arith.addf %17, %16 : vector<1x128xf32>
    %19 = arith.divf %17, %18 : vector<1x128xf32>
    %20 = vector.extract_strided_slice %7 {offsets = [0, 256], sizes = [1, 128], strides = [1, 1]} : vector<1x512xf32> to vector<1x128xf32>
    %21 = vector.extract_strided_slice %7 {offsets = [0, 384], sizes = [1, 128], strides = [1, 1]} : vector<1x512xf32> to vector<1x128xf32>
    %22 = arith.mulf %13, %21 : vector<1x128xf32>
    %23 = arith.addf %20, %22 : vector<1x128xf32>
    %24 = math.tanh %23 : vector<1x128xf32>
    %cst_8 = arith.constant 1.000000e+00 : f32
    %25 = vector.broadcast %cst_8 : f32 to vector<1x128xf32>
    %26 = arith.subf %25, %19 : vector<1x128xf32>
    %27 = arith.mulf %26, %24 : vector<1x128xf32>
    %28 = arith.mulf %19, %0 : vector<1x128xf32>
    %29 = arith.addf %27, %28 : vector<1x128xf32>
    %c0_9 = arith.constant 0 : index
    %c0_10 = arith.constant 0 : index
    %30 = vector.load %arg5[%c0_9, %c0_10] : memref<128x128xf32, #tpu.memory_space<vmem>>, vector<128x128xf32>
    %cst_11 = arith.constant dense<0.000000e+00> : vector<1x128xf32>
    %31 = tpu.matmul %29, %30, %cst_11 {dimension_numbers = #tpu.dot_dimension_numbers<[1], [0], [0], [1], [0, 0, 1, 1], [], []>} : vector<1x128xf32>, vector<128x128xf32>, vector<1x128xf32> -> vector<1x128xf32>
    %c0_12 = arith.constant 0 : index
    %c0_13 = arith.constant 0 : index
    %32 = vector.load %arg6[%c0_12, %c0_13] : memref<1x128xf32, #tpu.memory_space<vmem>>, vector<1x128xf32>
    %33 = arith.addf %31, %32 : vector<1x128xf32>
    %cst_14 = arith.constant dense<0xFF800000> : vector<1xf32>
    %34 = vector.multi_reduction <maximumf>, %33, %cst_14 [1] : vector<1x128xf32> to vector<1xf32>
    %35 = vector.shape_cast %34 : vector<1xf32> to vector<1x1xf32>
    %36 = vector.broadcast %35 : vector<1x1xf32> to vector<1x128xf32>
    %37 = arith.subf %33, %36 : vector<1x128xf32>
    %38 = math.exp %37 : vector<1x128xf32>
    %cst_15 = arith.constant dense<0.000000e+00> : vector<1xf32>
    %39 = vector.multi_reduction <add>, %38, %cst_15 [1] : vector<1x128xf32> to vector<1xf32>
    %40 = vector.shape_cast %39 : vector<1xf32> to vector<1x1xf32>
    %41 = math.log %40 : vector<1x1xf32>
    %42 = arith.addf %35, %41 : vector<1x1xf32>
    %43 = vector.broadcast %42 : vector<1x1xf32> to vector<1x128xf32>
    %44 = arith.subf %33, %43 : vector<1x128xf32>
    %45 = arith.index_cast %c0_i32 : i32 to index
    %c0_16 = arith.constant 0 : index
    %46 = vector.load %arg7[%45, %c0_16] : memref<8x128xf32, #tpu.memory_space<vmem>>, vector<1x128xf32>
    tpu.vector_store %arg7[%45, %c0_16], %44 {strides = array<i32>} : memref<8x128xf32, #tpu.memory_space<vmem>>, vector<1x128xf32>,
    %c1_i32 = arith.constant 1 : i32
    %47 = arith.index_cast %c1_i32 : i32 to index
    %c0_17 = arith.constant 0 : index
    %48 = vector.load %arg1[%47, %c0_17] : memref<8x128xf32, #tpu.memory_space<vmem>>, vector<1x128xf32>
    %49 = arith.addf %48, %29 : vector<1x128xf32>
    %c0_18 = arith.constant 0 : index
    %c0_19 = arith.constant 0 : index
    %50 = vector.load %arg3[%c0_18, %c0_19] : memref<128x512xf32, #tpu.memory_space<vmem>>, vector<128x512xf32>
    %cst_20 = arith.constant dense<0.000000e+00> : vector<1x512xf32>
    %51 = tpu.matmul %49, %50, %cst_20 {dimension_numbers = #tpu.dot_dimension_numbers<[1], [0], [0], [1], [0, 0, 1, 1], [], []>} : vector<1x128xf32>, vector<128x512xf32>, vector<1x512xf32> -> vector<1x512xf32>
    %c0_21 = arith.constant 0 : index
    %c0_22 = arith.constant 0 : index
    %52 = vector.load %arg4[%c0_21, %c0_22] : memref<1x512xf32, #tpu.memory_space<vmem>>, vector<1x512xf32>
    %53 = arith.addf %51, %52 : vector<1x512xf32>
    %54 = vector.extract_strided_slice %53 {offsets = [0, 0], sizes = [1, 128], strides = [1, 1]} : vector<1x512xf32> to vector<1x128xf32>
    %55 = arith.negf %54 : vector<1x128xf32>
    %56 = math.exp %55 : vector<1x128xf32>
    %cst_23 = arith.constant 1.000000e+00 : f32
    %57 = vector.broadcast %cst_23 : f32 to vector<1x128xf32>
    %58 = arith.addf %57, %56 : vector<1x128xf32>
    %59 = arith.divf %57, %58 : vector<1x128xf32>
    %60 = vector.extract_strided_slice %53 {offsets = [0, 128], sizes = [1, 128], strides = [1, 1]} : vector<1x512xf32> to vector<1x128xf32>
    %61 = arith.negf %60 : vector<1x128xf32>
    %62 = math.exp %61 : vector<1x128xf32>
    %cst_24 = arith.constant 1.000000e+00 : f32
    %63 = vector.broadcast %cst_24 : f32 to vector<1x128xf32>
    %64 = arith.addf %63, %62 : vector<1x128xf32>
    %65 = arith.divf %63, %64 : vector<1x128xf32>
    %66 = vector.extract_strided_slice %53 {offsets = [0, 256], sizes = [1, 128], strides = [1, 1]} : vector<1x512xf32> to vector<1x128xf32>
    %67 = vector.extract_strided_slice %53 {offsets = [0, 384], sizes = [1, 128], strides = [1, 1]} : vector<1x512xf32> to vector<1x128xf32>
    %68 = arith.mulf %59, %67 : vector<1x128xf32>
    %69 = arith.addf %66, %68 : vector<1x128xf32>
    %70 = math.tanh %69 : vector<1x128xf32>
    %cst_25 = arith.constant 1.000000e+00 : f32
    %71 = vector.broadcast %cst_25 : f32 to vector<1x128xf32>
    %72 = arith.subf %71, %65 : vector<1x128xf32>
    %73 = arith.mulf %72, %70 : vector<1x128xf32>
    %74 = arith.mulf %65, %29 : vector<1x128xf32>
    %75 = arith.addf %73, %74 : vector<1x128xf32>
    %c0_26 = arith.constant 0 : index
    %c0_27 = arith.constant 0 : index
    %76 = vector.load %arg5[%c0_26, %c0_27] : memref<128x128xf32, #tpu.memory_space<vmem>>, vector<128x128xf32>
    %cst_28 = arith.constant dense<0.000000e+00> : vector<1x128xf32>
    %77 = tpu.matmul %75, %76, %cst_28 {dimension_numbers = #tpu.dot_dimension_numbers<[1], [0], [0], [1], [0, 0, 1, 1], [], []>} : vector<1x128xf32>, vector<128x128xf32>, vector<1x128xf32> -> vector<1x128xf32>
    %c0_29 = arith.constant 0 : index
    %c0_30 = arith.constant 0 : index
    %78 = vector.load %arg6[%c0_29, %c0_30] : memref<1x128xf32, #tpu.memory_space<vmem>>, vector<1x128xf32>
    %79 = arith.addf %77, %78 : vector<1x128xf32>
    %cst_31 = arith.constant dense<0xFF800000> : vector<1xf32>
    %80 = vector.multi_reduction <maximumf>, %79, %cst_31 [1] : vector<1x128xf32> to vector<1xf32>
    %81 = vector.shape_cast %80 : vector<1xf32> to vector<1x1xf32>
    %82 = vector.broadcast %81 : vector<1x1xf32> to vector<1x128xf32>
    %83 = arith.subf %79, %82 : vector<1x128xf32>
    %84 = math.exp %83 : vector<1x128xf32>
    %cst_32 = arith.constant dense<0.000000e+00> : vector<1xf32>
    %85 = vector.multi_reduction <add>, %84, %cst_32 [1] : vector<1x128xf32> to vector<1xf32>
    %86 = vector.shape_cast %85 : vector<1xf32> to vector<1x1xf32>
    %87 = math.log %86 : vector<1x1xf32>
    %88 = arith.addf %81, %87 : vector<1x1xf32>
    %89 = vector.broadcast %88 : vector<1x1xf32> to vector<1x128xf32>
    %90 = arith.subf %79, %89 : vector<1x128xf32>
    %91 = arith.index_cast %c1_i32 : i32 to index
    %c0_33 = arith.constant 0 : index
    %92 = vector.load %arg7[%91, %c0_33] : memref<8x128xf32, #tpu.memory_space<vmem>>, vector<1x128xf32>
    tpu.vector_store %arg7[%91, %c0_33], %90 {strides = array<i32>} : memref<8x128xf32, #tpu.memory_space<vmem>>, vector<1x128xf32>,
    %c2_i32 = arith.constant 2 : i32
    %93 = arith.index_cast %c2_i32 : i32 to index
    %c0_34 = arith.constant 0 : index
    %94 = vector.load %arg1[%93, %c0_34] : memref<8x128xf32, #tpu.memory_space<vmem>>, vector<1x128xf32>
    %95 = arith.addf %94, %75 : vector<1x128xf32>
    %c0_35 = arith.constant 0 : index
    %c0_36 = arith.constant 0 : index
    %96 = vector.load %arg3[%c0_35, %c0_36] : memref<128x512xf32, #tpu.memory_space<vmem>>, vector<128x512xf32>
    %cst_37 = arith.constant dense<0.000000e+00> : vector<1x512xf32>
    %97 = tpu.matmul %95, %96, %cst_37 {dimension_numbers = #tpu.dot_dimension_numbers<[1], [0], [0], [1], [0, 0, 1, 1], [], []>} : vector<1x128xf32>, vector<128x512xf32>, vector<1x512xf32> -> vector<1x512xf32>
    %c0_38 = arith.constant 0 : index
    %c0_39 = arith.constant 0 : index
    %98 = vector.load %arg4[%c0_38, %c0_39] : memref<1x512xf32, #tpu.memory_space<vmem>>, vector<1x512xf32>
    %99 = arith.addf %97, %98 : vector<1x512xf32>
    %100 = vector.extract_strided_slice %99 {offsets = [0, 0], sizes = [1, 128], strides = [1, 1]} : vector<1x512xf32> to vector<1x128xf32>
    %101 = arith.negf %100 : vector<1x128xf32>
    %102 = math.exp %101 : vector<1x128xf32>
    %cst_40 = arith.constant 1.000000e+00 : f32
    %103 = vector.broadcast %cst_40 : f32 to vector<1x128xf32>
    %104 = arith.addf %103, %102 : vector<1x128xf32>
    %105 = arith.divf %103, %104 : vector<1x128xf32>
    %106 = vector.extract_strided_slice %99 {offsets = [0, 128], sizes = [1, 128], strides = [1, 1]} : vector<1x512xf32> to vector<1x128xf32>
    %107 = arith.negf %106 : vector<1x128xf32>
    %108 = math.exp %107 : vector<1x128xf32>
    %cst_41 = arith.constant 1.000000e+00 : f32
    %109 = vector.broadcast %cst_41 : f32 to vector<1x128xf32>
    %110 = arith.addf %109, %108 : vector<1x128xf32>
    %111 = arith.divf %109, %110 : vector<1x128xf32>
    %112 = vector.extract_strided_slice %99 {offsets = [0, 256], sizes = [1, 128], strides = [1, 1]} : vector<1x512xf32> to vector<1x128xf32>
    %113 = vector.extract_strided_slice %99 {offsets = [0, 384], sizes = [1, 128], strides = [1, 1]} : vector<1x512xf32> to vector<1x128xf32>
    %114 = arith.mulf %105, %113 : vector<1x128xf32>
    %115 = arith.addf %112, %114 : vector<1x128xf32>
    %116 = math.tanh %115 : vector<1x128xf32>
    %cst_42 = arith.constant 1.000000e+00 : f32
    %117 = vector.broadcast %cst_42 : f32 to vector<1x128xf32>
    %118 = arith.subf %117, %111 : vector<1x128xf32>
    %119 = arith.mulf %118, %116 : vector<1x128xf32>
    %120 = arith.mulf %111, %75 : vector<1x128xf32>
    %121 = arith.addf %119, %120 : vector<1x128xf32>
    %c0_43 = arith.constant 0 : index
    %c0_44 = arith.constant 0 : index
    %122 = vector.load %arg5[%c0_43, %c0_44] : memref<128x128xf32, #tpu.memory_space<vmem>>, vector<128x128xf32>
    %cst_45 = arith.constant dense<0.000000e+00> : vector<1x128xf32>
    %123 = tpu.matmul %121, %122, %cst_45 {dimension_numbers = #tpu.dot_dimension_numbers<[1], [0], [0], [1], [0, 0, 1, 1], [], []>} : vector<1x128xf32>, vector<128x128xf32>, vector<1x128xf32> -> vector<1x128xf32>
    %c0_46 = arith.constant 0 : index
    %c0_47 = arith.constant 0 : index
    %124 = vector.load %arg6[%c0_46, %c0_47] : memref<1x128xf32, #tpu.memory_space<vmem>>, vector<1x128xf32>
    %125 = arith.addf %123, %124 : vector<1x128xf32>
    %cst_48 = arith.constant dense<0xFF800000> : vector<1xf32>
    %126 = vector.multi_reduction <maximumf>, %125, %cst_48 [1] : vector<1x128xf32> to vector<1xf32>
    %127 = vector.shape_cast %126 : vector<1xf32> to vector<1x1xf32>
    %128 = vector.broadcast %127 : vector<1x1xf32> to vector<1x128xf32>
    %129 = arith.subf %125, %128 : vector<1x128xf32>
    %130 = math.exp %129 : vector<1x128xf32>
    %cst_49 = arith.constant dense<0.000000e+00> : vector<1xf32>
    %131 = vector.multi_reduction <add>, %130, %cst_49 [1] : vector<1x128xf32> to vector<1xf32>
    %132 = vector.shape_cast %131 : vector<1xf32> to vector<1x1xf32>
    %133 = math.log %132 : vector<1x1xf32>
    %134 = arith.addf %127, %133 : vector<1x1xf32>
    %135 = vector.broadcast %134 : vector<1x1xf32> to vector<1x128xf32>
    %136 = arith.subf %125, %135 : vector<1x128xf32>
    %137 = arith.index_cast %c2_i32 : i32 to index
    %c0_50 = arith.constant 0 : index
    %138 = vector.load %arg7[%137, %c0_50] : memref<8x128xf32, #tpu.memory_space<vmem>>, vector<1x128xf32>
    tpu.vector_store %arg7[%137, %c0_50], %136 {strides = array<i32>} : memref<8x128xf32, #tpu.memory_space<vmem>>, vector<1x128xf32>,
    %c3_i32 = arith.constant 3 : i32
    %139 = arith.index_cast %c3_i32 : i32 to index
    %c0_51 = arith.constant 0 : index
    %140 = vector.load %arg1[%139, %c0_51] : memref<8x128xf32, #tpu.memory_space<vmem>>, vector<1x128xf32>
    %141 = arith.addf %140, %121 : vector<1x128xf32>
    %c0_52 = arith.constant 0 : index
    %c0_53 = arith.constant 0 : index
    %142 = vector.load %arg3[%c0_52, %c0_53] : memref<128x512xf32, #tpu.memory_space<vmem>>, vector<128x512xf32>
    %cst_54 = arith.constant dense<0.000000e+00> : vector<1x512xf32>
    %143 = tpu.matmul %141, %142, %cst_54 {dimension_numbers = #tpu.dot_dimension_numbers<[1], [0], [0], [1], [0, 0, 1, 1], [], []>} : vector<1x128xf32>, vector<128x512xf32>, vector<1x512xf32> -> vector<1x512xf32>
    %c0_55 = arith.constant 0 : index
    %c0_56 = arith.constant 0 : index
    %144 = vector.load %arg4[%c0_55, %c0_56] : memref<1x512xf32, #tpu.memory_space<vmem>>, vector<1x512xf32>
    %145 = arith.addf %143, %144 : vector<1x512xf32>
    %146 = vector.extract_strided_slice %145 {offsets = [0, 0], sizes = [1, 128], strides = [1, 1]} : vector<1x512xf32> to vector<1x128xf32>
    %147 = arith.negf %146 : vector<1x128xf32>
    %148 = math.exp %147 : vector<1x128xf32>
    %cst_57 = arith.constant 1.000000e+00 : f32
    %149 = vector.broadcast %cst_57 : f32 to vector<1x128xf32>
    %150 = arith.addf %149, %148 : vector<1x128xf32>
    %151 = arith.divf %149, %150 : vector<1x128xf32>
    %152 = vector.extract_strided_slice %145 {offsets = [0, 128], sizes = [1, 128], strides = [1, 1]} : vector<1x512xf32> to vector<1x128xf32>
    %153 = arith.negf %152 : vector<1x128xf32>
    %154 = math.exp %153 : vector<1x128xf32>
    %cst_58 = arith.constant 1.000000e+00 : f32
    %155 = vector.broadcast %cst_58 : f32 to vector<1x128xf32>
    %156 = arith.addf %155, %154 : vector<1x128xf32>
    %157 = arith.divf %155, %156 : vector<1x128xf32>
    %158 = vector.extract_strided_slice %145 {offsets = [0, 256], sizes = [1, 128], strides = [1, 1]} : vector<1x512xf32> to vector<1x128xf32>
    %159 = vector.extract_strided_slice %145 {offsets = [0, 384], sizes = [1, 128], strides = [1, 1]} : vector<1x512xf32> to vector<1x128xf32>
    %160 = arith.mulf %151, %159 : vector<1x128xf32>
    %161 = arith.addf %158, %160 : vector<1x128xf32>
    %162 = math.tanh %161 : vector<1x128xf32>
    %cst_59 = arith.constant 1.000000e+00 : f32
    %163 = vector.broadcast %cst_59 : f32 to vector<1x128xf32>
    %164 = arith.subf %163, %157 : vector<1x128xf32>
    %165 = arith.mulf %164, %162 : vector<1x128xf32>
    %166 = arith.mulf %157, %121 : vector<1x128xf32>
    %167 = arith.addf %165, %166 : vector<1x128xf32>
    %c0_60 = arith.constant 0 : index
    %c0_61 = arith.constant 0 : index
    %168 = vector.load %arg5[%c0_60, %c0_61] : memref<128x128xf32, #tpu.memory_space<vmem>>, vector<128x128xf32>
    %cst_62 = arith.constant dense<0.000000e+00> : vector<1x128xf32>
    %169 = tpu.matmul %167, %168, %cst_62 {dimension_numbers = #tpu.dot_dimension_numbers<[1], [0], [0], [1], [0, 0, 1, 1], [], []>} : vector<1x128xf32>, vector<128x128xf32>, vector<1x128xf32> -> vector<1x128xf32>
    %c0_63 = arith.constant 0 : index
    %c0_64 = arith.constant 0 : index
    %170 = vector.load %arg6[%c0_63, %c0_64] : memref<1x128xf32, #tpu.memory_space<vmem>>, vector<1x128xf32>
    %171 = arith.addf %169, %170 : vector<1x128xf32>
    %cst_65 = arith.constant dense<0xFF800000> : vector<1xf32>
    %172 = vector.multi_reduction <maximumf>, %171, %cst_65 [1] : vector<1x128xf32> to vector<1xf32>
    %173 = vector.shape_cast %172 : vector<1xf32> to vector<1x1xf32>
    %174 = vector.broadcast %173 : vector<1x1xf32> to vector<1x128xf32>
    %175 = arith.subf %171, %174 : vector<1x128xf32>
    %176 = math.exp %175 : vector<1x128xf32>
    %cst_66 = arith.constant dense<0.000000e+00> : vector<1xf32>
    %177 = vector.multi_reduction <add>, %176, %cst_66 [1] : vector<1x128xf32> to vector<1xf32>
    %178 = vector.shape_cast %177 : vector<1xf32> to vector<1x1xf32>
    %179 = math.log %178 : vector<1x1xf32>
    %180 = arith.addf %173, %179 : vector<1x1xf32>
    %181 = vector.broadcast %180 : vector<1x1xf32> to vector<1x128xf32>
    %182 = arith.subf %171, %181 : vector<1x128xf32>
    %183 = arith.index_cast %c3_i32 : i32 to index
    %c0_67 = arith.constant 0 : index
    %184 = vector.load %arg7[%183, %c0_67] : memref<8x128xf32, #tpu.memory_space<vmem>>, vector<1x128xf32>
    tpu.vector_store %arg7[%183, %c0_67], %182 {strides = array<i32>} : memref<8x128xf32, #tpu.memory_space<vmem>>, vector<1x128xf32>,
    %c4_i32 = arith.constant 4 : i32
    %185 = arith.index_cast %c4_i32 : i32 to index
    %c0_68 = arith.constant 0 : index
    %186 = vector.load %arg1[%185, %c0_68] : memref<8x128xf32, #tpu.memory_space<vmem>>, vector<1x128xf32>
    %187 = arith.addf %186, %167 : vector<1x128xf32>
    %c0_69 = arith.constant 0 : index
    %c0_70 = arith.constant 0 : index
    %188 = vector.load %arg3[%c0_69, %c0_70] : memref<128x512xf32, #tpu.memory_space<vmem>>, vector<128x512xf32>
    %cst_71 = arith.constant dense<0.000000e+00> : vector<1x512xf32>
    %189 = tpu.matmul %187, %188, %cst_71 {dimension_numbers = #tpu.dot_dimension_numbers<[1], [0], [0], [1], [0, 0, 1, 1], [], []>} : vector<1x128xf32>, vector<128x512xf32>, vector<1x512xf32> -> vector<1x512xf32>
    %c0_72 = arith.constant 0 : index
    %c0_73 = arith.constant 0 : index
    %190 = vector.load %arg4[%c0_72, %c0_73] : memref<1x512xf32, #tpu.memory_space<vmem>>, vector<1x512xf32>
    %191 = arith.addf %189, %190 : vector<1x512xf32>
    %192 = vector.extract_strided_slice %191 {offsets = [0, 0], sizes = [1, 128], strides = [1, 1]} : vector<1x512xf32> to vector<1x128xf32>
    %193 = arith.negf %192 : vector<1x128xf32>
    %194 = math.exp %193 : vector<1x128xf32>
    %cst_74 = arith.constant 1.000000e+00 : f32
    %195 = vector.broadcast %cst_74 : f32 to vector<1x128xf32>
    %196 = arith.addf %195, %194 : vector<1x128xf32>
    %197 = arith.divf %195, %196 : vector<1x128xf32>
    %198 = vector.extract_strided_slice %191 {offsets = [0, 128], sizes = [1, 128], strides = [1, 1]} : vector<1x512xf32> to vector<1x128xf32>
    %199 = arith.negf %198 : vector<1x128xf32>
    %200 = math.exp %199 : vector<1x128xf32>
    %cst_75 = arith.constant 1.000000e+00 : f32
    %201 = vector.broadcast %cst_75 : f32 to vector<1x128xf32>
    %202 = arith.addf %201, %200 : vector<1x128xf32>
    %203 = arith.divf %201, %202 : vector<1x128xf32>
    %204 = vector.extract_strided_slice %191 {offsets = [0, 256], sizes = [1, 128], strides = [1, 1]} : vector<1x512xf32> to vector<1x128xf32>
    %205 = vector.extract_strided_slice %191 {offsets = [0, 384], sizes = [1, 128], strides = [1, 1]} : vector<1x512xf32> to vector<1x128xf32>
    %206 = arith.mulf %197, %205 : vector<1x128xf32>
    %207 = arith.addf %204, %206 : vector<1x128xf32>
    %208 = math.tanh %207 : vector<1x128xf32>
    %cst_76 = arith.constant 1.000000e+00 : f32
    %209 = vector.broadcast %cst_76 : f32 to vector<1x128xf32>
    %210 = arith.subf %209, %203 : vector<1x128xf32>
    %211 = arith.mulf %210, %208 : vector<1x128xf32>
    %212 = arith.mulf %203, %167 : vector<1x128xf32>
    %213 = arith.addf %211, %212 : vector<1x128xf32>
    %c0_77 = arith.constant 0 : index
    %c0_78 = arith.constant 0 : index
    %214 = vector.load %arg5[%c0_77, %c0_78] : memref<128x128xf32, #tpu.memory_space<vmem>>, vector<128x128xf32>
    %cst_79 = arith.constant dense<0.000000e+00> : vector<1x128xf32>
    %215 = tpu.matmul %213, %214, %cst_79 {dimension_numbers = #tpu.dot_dimension_numbers<[1], [0], [0], [1], [0, 0, 1, 1], [], []>} : vector<1x128xf32>, vector<128x128xf32>, vector<1x128xf32> -> vector<1x128xf32>
    %c0_80 = arith.constant 0 : index
    %c0_81 = arith.constant 0 : index
    %216 = vector.load %arg6[%c0_80, %c0_81] : memref<1x128xf32, #tpu.memory_space<vmem>>, vector<1x128xf32>
    %217 = arith.addf %215, %216 : vector<1x128xf32>
    %cst_82 = arith.constant dense<0xFF800000> : vector<1xf32>
    %218 = vector.multi_reduction <maximumf>, %217, %cst_82 [1] : vector<1x128xf32> to vector<1xf32>
    %219 = vector.shape_cast %218 : vector<1xf32> to vector<1x1xf32>
    %220 = vector.broadcast %219 : vector<1x1xf32> to vector<1x128xf32>
    %221 = arith.subf %217, %220 : vector<1x128xf32>
    %222 = math.exp %221 : vector<1x128xf32>
    %cst_83 = arith.constant dense<0.000000e+00> : vector<1xf32>
    %223 = vector.multi_reduction <add>, %222, %cst_83 [1] : vector<1x128xf32> to vector<1xf32>
    %224 = vector.shape_cast %223 : vector<1xf32> to vector<1x1xf32>
    %225 = math.log %224 : vector<1x1xf32>
    %226 = arith.addf %219, %225 : vector<1x1xf32>
    %227 = vector.broadcast %226 : vector<1x1xf32> to vector<1x128xf32>
    %228 = arith.subf %217, %227 : vector<1x128xf32>
    %229 = arith.index_cast %c4_i32 : i32 to index
    %c0_84 = arith.constant 0 : index
    %230 = vector.load %arg7[%229, %c0_84] : memref<8x128xf32, #tpu.memory_space<vmem>>, vector<1x128xf32>
    tpu.vector_store %arg7[%229, %c0_84], %228 {strides = array<i32>} : memref<8x128xf32, #tpu.memory_space<vmem>>, vector<1x128xf32>,
    %c5_i32 = arith.constant 5 : i32
    %231 = arith.index_cast %c5_i32 : i32 to index
    %c0_85 = arith.constant 0 : index
    %232 = vector.load %arg1[%231, %c0_85] : memref<8x128xf32, #tpu.memory_space<vmem>>, vector<1x128xf32>
    %233 = arith.addf %232, %213 : vector<1x128xf32>
    %c0_86 = arith.constant 0 : index
    %c0_87 = arith.constant 0 : index
    %234 = vector.load %arg3[%c0_86, %c0_87] : memref<128x512xf32, #tpu.memory_space<vmem>>, vector<128x512xf32>
    %cst_88 = arith.constant dense<0.000000e+00> : vector<1x512xf32>
    %235 = tpu.matmul %233, %234, %cst_88 {dimension_numbers = #tpu.dot_dimension_numbers<[1], [0], [0], [1], [0, 0, 1, 1], [], []>} : vector<1x128xf32>, vector<128x512xf32>, vector<1x512xf32> -> vector<1x512xf32>
    %c0_89 = arith.constant 0 : index
    %c0_90 = arith.constant 0 : index
    %236 = vector.load %arg4[%c0_89, %c0_90] : memref<1x512xf32, #tpu.memory_space<vmem>>, vector<1x512xf32>
    %237 = arith.addf %235, %236 : vector<1x512xf32>
    %238 = vector.extract_strided_slice %237 {offsets = [0, 0], sizes = [1, 128], strides = [1, 1]} : vector<1x512xf32> to vector<1x128xf32>
    %239 = arith.negf %238 : vector<1x128xf32>
    %240 = math.exp %239 : vector<1x128xf32>
    %cst_91 = arith.constant 1.000000e+00 : f32
    %241 = vector.broadcast %cst_91 : f32 to vector<1x128xf32>
    %242 = arith.addf %241, %240 : vector<1x128xf32>
    %243 = arith.divf %241, %242 : vector<1x128xf32>
    %244 = vector.extract_strided_slice %237 {offsets = [0, 128], sizes = [1, 128], strides = [1, 1]} : vector<1x512xf32> to vector<1x128xf32>
    %245 = arith.negf %244 : vector<1x128xf32>
    %246 = math.exp %245 : vector<1x128xf32>
    %cst_92 = arith.constant 1.000000e+00 : f32
    %247 = vector.broadcast %cst_92 : f32 to vector<1x128xf32>
    %248 = arith.addf %247, %246 : vector<1x128xf32>
    %249 = arith.divf %247, %248 : vector<1x128xf32>
    %250 = vector.extract_strided_slice %237 {offsets = [0, 256], sizes = [1, 128], strides = [1, 1]} : vector<1x512xf32> to vector<1x128xf32>
    %251 = vector.extract_strided_slice %237 {offsets = [0, 384], sizes = [1, 128], strides = [1, 1]} : vector<1x512xf32> to vector<1x128xf32>
    %252 = arith.mulf %243, %251 : vector<1x128xf32>
    %253 = arith.addf %250, %252 : vector<1x128xf32>
    %254 = math.tanh %253 : vector<1x128xf32>
    %cst_93 = arith.constant 1.000000e+00 : f32
    %255 = vector.broadcast %cst_93 : f32 to vector<1x128xf32>
    %256 = arith.subf %255, %249 : vector<1x128xf32>
    %257 = arith.mulf %256, %254 : vector<1x128xf32>
    %258 = arith.mulf %249, %213 : vector<1x128xf32>
    %259 = arith.addf %257, %258 : vector<1x128xf32>
    %c0_94 = arith.constant 0 : index
    %c0_95 = arith.constant 0 : index
    %260 = vector.load %arg5[%c0_94, %c0_95] : memref<128x128xf32, #tpu.memory_space<vmem>>, vector<128x128xf32>
    %cst_96 = arith.constant dense<0.000000e+00> : vector<1x128xf32>
    %261 = tpu.matmul %259, %260, %cst_96 {dimension_numbers = #tpu.dot_dimension_numbers<[1], [0], [0], [1], [0, 0, 1, 1], [], []>} : vector<1x128xf32>, vector<128x128xf32>, vector<1x128xf32> -> vector<1x128xf32>
    %c0_97 = arith.constant 0 : index
    %c0_98 = arith.constant 0 : index
    %262 = vector.load %arg6[%c0_97, %c0_98] : memref<1x128xf32, #tpu.memory_space<vmem>>, vector<1x128xf32>
    %263 = arith.addf %261, %262 : vector<1x128xf32>
    %cst_99 = arith.constant dense<0xFF800000> : vector<1xf32>
    %264 = vector.multi_reduction <maximumf>, %263, %cst_99 [1] : vector<1x128xf32> to vector<1xf32>
    %265 = vector.shape_cast %264 : vector<1xf32> to vector<1x1xf32>
    %266 = vector.broadcast %265 : vector<1x1xf32> to vector<1x128xf32>
    %267 = arith.subf %263, %266 : vector<1x128xf32>
    %268 = math.exp %267 : vector<1x128xf32>
    %cst_100 = arith.constant dense<0.000000e+00> : vector<1xf32>
    %269 = vector.multi_reduction <add>, %268, %cst_100 [1] : vector<1x128xf32> to vector<1xf32>
    %270 = vector.shape_cast %269 : vector<1xf32> to vector<1x1xf32>
    %271 = math.log %270 : vector<1x1xf32>
    %272 = arith.addf %265, %271 : vector<1x1xf32>
    %273 = vector.broadcast %272 : vector<1x1xf32> to vector<1x128xf32>
    %274 = arith.subf %263, %273 : vector<1x128xf32>
    %275 = arith.index_cast %c5_i32 : i32 to index
    %c0_101 = arith.constant 0 : index
    %276 = vector.load %arg7[%275, %c0_101] : memref<8x128xf32, #tpu.memory_space<vmem>>, vector<1x128xf32>
    tpu.vector_store %arg7[%275, %c0_101], %274 {strides = array<i32>} : memref<8x128xf32, #tpu.memory_space<vmem>>, vector<1x128xf32>,
    %c6_i32 = arith.constant 6 : i32
    %277 = arith.index_cast %c6_i32 : i32 to index
    %c0_102 = arith.constant 0 : index
    %278 = vector.load %arg1[%277, %c0_102] : memref<8x128xf32, #tpu.memory_space<vmem>>, vector<1x128xf32>
    %279 = arith.addf %278, %259 : vector<1x128xf32>
    %c0_103 = arith.constant 0 : index
    %c0_104 = arith.constant 0 : index
    %280 = vector.load %arg3[%c0_103, %c0_104] : memref<128x512xf32, #tpu.memory_space<vmem>>, vector<128x512xf32>
    %cst_105 = arith.constant dense<0.000000e+00> : vector<1x512xf32>
    %281 = tpu.matmul %279, %280, %cst_105 {dimension_numbers = #tpu.dot_dimension_numbers<[1], [0], [0], [1], [0, 0, 1, 1], [], []>} : vector<1x128xf32>, vector<128x512xf32>, vector<1x512xf32> -> vector<1x512xf32>
    %c0_106 = arith.constant 0 : index
    %c0_107 = arith.constant 0 : index
    %282 = vector.load %arg4[%c0_106, %c0_107] : memref<1x512xf32, #tpu.memory_space<vmem>>, vector<1x512xf32>
    %283 = arith.addf %281, %282 : vector<1x512xf32>
    %284 = vector.extract_strided_slice %283 {offsets = [0, 0], sizes = [1, 128], strides = [1, 1]} : vector<1x512xf32> to vector<1x128xf32>
    %285 = arith.negf %284 : vector<1x128xf32>
    %286 = math.exp %285 : vector<1x128xf32>
    %cst_108 = arith.constant 1.000000e+00 : f32
    %287 = vector.broadcast %cst_108 : f32 to vector<1x128xf32>
    %288 = arith.addf %287, %286 : vector<1x128xf32>
    %289 = arith.divf %287, %288 : vector<1x128xf32>
    %290 = vector.extract_strided_slice %283 {offsets = [0, 128], sizes = [1, 128], strides = [1, 1]} : vector<1x512xf32> to vector<1x128xf32>
    %291 = arith.negf %290 : vector<1x128xf32>
    %292 = math.exp %291 : vector<1x128xf32>
    %cst_109 = arith.constant 1.000000e+00 : f32
    %293 = vector.broadcast %cst_109 : f32 to vector<1x128xf32>
    %294 = arith.addf %293, %292 : vector<1x128xf32>
    %295 = arith.divf %293, %294 : vector<1x128xf32>
    %296 = vector.extract_strided_slice %283 {offsets = [0, 256], sizes = [1, 128], strides = [1, 1]} : vector<1x512xf32> to vector<1x128xf32>
    %297 = vector.extract_strided_slice %283 {offsets = [0, 384], sizes = [1, 128], strides = [1, 1]} : vector<1x512xf32> to vector<1x128xf32>
    %298 = arith.mulf %289, %297 : vector<1x128xf32>
    %299 = arith.addf %296, %298 : vector<1x128xf32>
    %300 = math.tanh %299 : vector<1x128xf32>
    %cst_110 = arith.constant 1.000000e+00 : f32
    %301 = vector.broadcast %cst_110 : f32 to vector<1x128xf32>
    %302 = arith.subf %301, %295 : vector<1x128xf32>
    %303 = arith.mulf %302, %300 : vector<1x128xf32>
    %304 = arith.mulf %295, %259 : vector<1x128xf32>
    %305 = arith.addf %303, %304 : vector<1x128xf32>
    %c0_111 = arith.constant 0 : index
    %c0_112 = arith.constant 0 : index
    %306 = vector.load %arg5[%c0_111, %c0_112] : memref<128x128xf32, #tpu.memory_space<vmem>>, vector<128x128xf32>
    %cst_113 = arith.constant dense<0.000000e+00> : vector<1x128xf32>
    %307 = tpu.matmul %305, %306, %cst_113 {dimension_numbers = #tpu.dot_dimension_numbers<[1], [0], [0], [1], [0, 0, 1, 1], [], []>} : vector<1x128xf32>, vector<128x128xf32>, vector<1x128xf32> -> vector<1x128xf32>
    %c0_114 = arith.constant 0 : index
    %c0_115 = arith.constant 0 : index
    %308 = vector.load %arg6[%c0_114, %c0_115] : memref<1x128xf32, #tpu.memory_space<vmem>>, vector<1x128xf32>
    %309 = arith.addf %307, %308 : vector<1x128xf32>
    %cst_116 = arith.constant dense<0xFF800000> : vector<1xf32>
    %310 = vector.multi_reduction <maximumf>, %309, %cst_116 [1] : vector<1x128xf32> to vector<1xf32>
    %311 = vector.shape_cast %310 : vector<1xf32> to vector<1x1xf32>
    %312 = vector.broadcast %311 : vector<1x1xf32> to vector<1x128xf32>
    %313 = arith.subf %309, %312 : vector<1x128xf32>
    %314 = math.exp %313 : vector<1x128xf32>
    %cst_117 = arith.constant dense<0.000000e+00> : vector<1xf32>
    %315 = vector.multi_reduction <add>, %314, %cst_117 [1] : vector<1x128xf32> to vector<1xf32>
    %316 = vector.shape_cast %315 : vector<1xf32> to vector<1x1xf32>
    %317 = math.log %316 : vector<1x1xf32>
    %318 = arith.addf %311, %317 : vector<1x1xf32>
    %319 = vector.broadcast %318 : vector<1x1xf32> to vector<1x128xf32>
    %320 = arith.subf %309, %319 : vector<1x128xf32>
    %321 = arith.index_cast %c6_i32 : i32 to index
    %c0_118 = arith.constant 0 : index
    %322 = vector.load %arg7[%321, %c0_118] : memref<8x128xf32, #tpu.memory_space<vmem>>, vector<1x128xf32>
    tpu.vector_store %arg7[%321, %c0_118], %320 {strides = array<i32>} : memref<8x128xf32, #tpu.memory_space<vmem>>, vector<1x128xf32>,
    %c7_i32 = arith.constant 7 : i32
    %323 = arith.index_cast %c7_i32 : i32 to index
    %c0_119 = arith.constant 0 : index
    %324 = vector.load %arg1[%323, %c0_119] : memref<8x128xf32, #tpu.memory_space<vmem>>, vector<1x128xf32>
    %325 = arith.addf %324, %305 : vector<1x128xf32>
    %c0_120 = arith.constant 0 : index
    %c0_121 = arith.constant 0 : index
    %326 = vector.load %arg3[%c0_120, %c0_121] : memref<128x512xf32, #tpu.memory_space<vmem>>, vector<128x512xf32>
    %cst_122 = arith.constant dense<0.000000e+00> : vector<1x512xf32>
    %327 = tpu.matmul %325, %326, %cst_122 {dimension_numbers = #tpu.dot_dimension_numbers<[1], [0], [0], [1], [0, 0, 1, 1], [], []>} : vector<1x128xf32>, vector<128x512xf32>, vector<1x512xf32> -> vector<1x512xf32>
    %c0_123 = arith.constant 0 : index
    %c0_124 = arith.constant 0 : index
    %328 = vector.load %arg4[%c0_123, %c0_124] : memref<1x512xf32, #tpu.memory_space<vmem>>, vector<1x512xf32>
    %329 = arith.addf %327, %328 : vector<1x512xf32>
    %330 = vector.extract_strided_slice %329 {offsets = [0, 0], sizes = [1, 128], strides = [1, 1]} : vector<1x512xf32> to vector<1x128xf32>
    %331 = arith.negf %330 : vector<1x128xf32>
    %332 = math.exp %331 : vector<1x128xf32>
    %cst_125 = arith.constant 1.000000e+00 : f32
    %333 = vector.broadcast %cst_125 : f32 to vector<1x128xf32>
    %334 = arith.addf %333, %332 : vector<1x128xf32>
    %335 = arith.divf %333, %334 : vector<1x128xf32>
    %336 = vector.extract_strided_slice %329 {offsets = [0, 128], sizes = [1, 128], strides = [1, 1]} : vector<1x512xf32> to vector<1x128xf32>
    %337 = arith.negf %336 : vector<1x128xf32>
    %338 = math.exp %337 : vector<1x128xf32>
    %cst_126 = arith.constant 1.000000e+00 : f32
    %339 = vector.broadcast %cst_126 : f32 to vector<1x128xf32>
    %340 = arith.addf %339, %338 : vector<1x128xf32>
    %341 = arith.divf %339, %340 : vector<1x128xf32>
    %342 = vector.extract_strided_slice %329 {offsets = [0, 256], sizes = [1, 128], strides = [1, 1]} : vector<1x512xf32> to vector<1x128xf32>
    %343 = vector.extract_strided_slice %329 {offsets = [0, 384], sizes = [1, 128], strides = [1, 1]} : vector<1x512xf32> to vector<1x128xf32>
    %344 = arith.mulf %335, %343 : vector<1x128xf32>
    %345 = arith.addf %342, %344 : vector<1x128xf32>
    %346 = math.tanh %345 : vector<1x128xf32>
    %cst_127 = arith.constant 1.000000e+00 : f32
    %347 = vector.broadcast %cst_127 : f32 to vector<1x128xf32>
    %348 = arith.subf %347, %341 : vector<1x128xf32>
    %349 = arith.mulf %348, %346 : vector<1x128xf32>
    %350 = arith.mulf %341, %305 : vector<1x128xf32>
    %351 = arith.addf %349, %350 : vector<1x128xf32>
    %c0_128 = arith.constant 0 : index
    %c0_129 = arith.constant 0 : index
    %352 = vector.load %arg5[%c0_128, %c0_129] : memref<128x128xf32, #tpu.memory_space<vmem>>, vector<128x128xf32>
    %cst_130 = arith.constant dense<0.000000e+00> : vector<1x128xf32>
    %353 = tpu.matmul %351, %352, %cst_130 {dimension_numbers = #tpu.dot_dimension_numbers<[1], [0], [0], [1], [0, 0, 1, 1], [], []>} : vector<1x128xf32>, vector<128x128xf32>, vector<1x128xf32> -> vector<1x128xf32>
    %c0_131 = arith.constant 0 : index
    %c0_132 = arith.constant 0 : index
    %354 = vector.load %arg6[%c0_131, %c0_132] : memref<1x128xf32, #tpu.memory_space<vmem>>, vector<1x128xf32>
    %355 = arith.addf %353, %354 : vector<1x128xf32>
    %cst_133 = arith.constant dense<0xFF800000> : vector<1xf32>
    %356 = vector.multi_reduction <maximumf>, %355, %cst_133 [1] : vector<1x128xf32> to vector<1xf32>
    %357 = vector.shape_cast %356 : vector<1xf32> to vector<1x1xf32>
    %358 = vector.broadcast %357 : vector<1x1xf32> to vector<1x128xf32>
    %359 = arith.subf %355, %358 : vector<1x128xf32>
    %360 = math.exp %359 : vector<1x128xf32>
    %cst_134 = arith.constant dense<0.000000e+00> : vector<1xf32>
    %361 = vector.multi_reduction <add>, %360, %cst_134 [1] : vector<1x128xf32> to vector<1xf32>
    %362 = vector.shape_cast %361 : vector<1xf32> to vector<1x1xf32>
    %363 = math.log %362 : vector<1x1xf32>
    %364 = arith.addf %357, %363 : vector<1x1xf32>
    %365 = vector.broadcast %364 : vector<1x1xf32> to vector<1x128xf32>
    %366 = arith.subf %355, %365 : vector<1x128xf32>
    %367 = arith.index_cast %c7_i32 : i32 to index
    %c0_135 = arith.constant 0 : index
    %368 = vector.load %arg7[%367, %c0_135] : memref<8x128xf32, #tpu.memory_space<vmem>>, vector<1x128xf32>
    tpu.vector_store %arg7[%367, %c0_135], %366 {strides = array<i32>} : memref<8x128xf32, #tpu.memory_space<vmem>>, vector<1x128xf32>,
    %c8_i32 = arith.constant 8 : i32
    %c0_136 = arith.constant 0 : index
    %c0_137 = arith.constant 0 : index
    %369 = vector.load %arg8[%c0_136, %c0_137] : memref<1x128xf32, #tpu.memory_space<vmem>>, vector<1x128xf32>
    tpu.vector_store %arg8[%c0_136, %c0_137], %351 {strides = array<i32>} : memref<1x128xf32, #tpu.memory_space<vmem>>, vector<1x128xf32>,
    return
  }
  func.func @transform_0(%arg0: i32) -> (i32, i32) {
    %c0_i32 = arith.constant 0 : i32
    %c0_i32_0 = arith.constant 0 : i32
    %c0_i32_1 = arith.constant 0 : i32
    return %c0_i32, %c0_i32_0 : i32, i32
  }
  func.func @transform_1(%arg0: i32) -> (i32, i32) {
    %c0_i32 = arith.constant 0 : i32
    %c0_i32_0 = arith.constant 0 : i32
    %c0_i32_1 = arith.constant 0 : i32
    return %c0_i32, %c0_i32_0 : i32, i32
  }
  func.func @transform_2(%arg0: i32) -> (i32, i32) {
    %c0_i32 = arith.constant 0 : i32
    %c0_i32_0 = arith.constant 0 : i32
    %c0_i32_1 = arith.constant 0 : i32
    return %c0_i32, %c0_i32_0 : i32, i32
  }
  func.func @transform_3(%arg0: i32) -> (i32, i32) {
    %c0_i32 = arith.constant 0 : i32
    %c0_i32_0 = arith.constant 0 : i32
    %c0_i32_1 = arith.constant 0 : i32
    return %c0_i32, %c0_i32_0 : i32, i32
  }
  func.func @transform_4(%arg0: i32) -> (i32, i32) {
    %c0_i32 = arith.constant 0 : i32
    %c0_i32_0 = arith.constant 0 : i32
    %c0_i32_1 = arith.constant 0 : i32
    return %c0_i32, %c0_i32_0 : i32, i32
  }
  func.func @transform_5(%arg0: i32) -> (i32, i32) {
    %c0_i32 = arith.constant 0 : i32
    %c0_i32_0 = arith.constant 0 : i32
    %c0_i32_1 = arith.constant 0 : i32
    return %c0_i32, %c0_i32_0 : i32, i32
  }
  func.func @transform_6(%arg0: i32) -> (i32, i32) {
    %c0_i32 = arith.constant 0 : i32
    %c0_i32_0 = arith.constant 0 : i32
    %c0_i32_1 = arith.constant 0 : i32
    return %c0_i32, %c0_i32_0 : i32, i32
  }
  func.func @transform_7(%arg0: i32) -> (i32, i32) {
    %c0_i32 = arith.constant 0 : i32
    %c0_i32_0 = arith.constant 0 : i32
    %c0_i32_1 = arith.constant 0 : i32
    return %c0_i32, %c0_i32_0 : i32, i32
  }
}

</mosaic_0001>

<llo_original>
// kernel: decoder_rnn_forward_seq.1
$region0: #{decoder_rnn_forward_seq.1}
  #allocation0 [shape = 'u32[]', space=smem, size = 0x4, offset = 0x4, fixed_abs, tag = 'smem constant byte address 0x4 - core index']
  #allocation1 [shape = 'u32[144,128]{1,0:T(1,128)}', space=vmem, size = 0x12000, scoped, tag = 'internal scratch']
  %s0 = inlined_call_operand.vmem [shape: f32[8,128], index: 0, kind: input, shape index: {}]
  %s1 = inlined_call_operand.vmem [shape: f32[1,128], index: 1, kind: input, shape index: {}]
  %s2 = inlined_call_operand.hbm [shape: f32[128,512], index: 2, kind: input, shape index: {}]
  %s3 = inlined_call_operand.vmem [shape: f32[1,512], index: 3, kind: input, shape index: {}]
  %s4 = inlined_call_operand.vmem [shape: f32[128,128], index: 4, kind: input, shape index: {}]
  %s5 = inlined_call_operand.vmem [shape: f32[1,128], index: 5, kind: input, shape index: {}]
  %s6 = inlined_call_operand.hbm [shape: f32[8,128], index: 6, kind: output, shape index: {0}]
  %s7 = inlined_call_operand.vmem [shape: f32[1,128], index: 7, kind: output, shape index: {1}]
  %8 = xla_tuple %s6, %s7
  %s9 = sld [smem:[#allocation0]]
  $region46: #{decoder_rnn_forward_seq.1} parent=0
    _
  %s11 = ssub.s32 1, %s9
  %s12 = scalar_select 0, %s11, %s9
  $region1: #{decoder_rnn_forward_seq.1} parent=0
    #allocation2 [shape = 'u8[262144]{0}', space=vmem, size = 0x40000, scoped, tag = 'input window, operand 2, single buffered']
    #allocation3 [shape = 's32[1]{0}', space=sflag, size = 0x4, scoped, tag = 'scoped memory for decoder_rnn_forward_seq.1']
    #allocation4 [shape = 's32[1]{0}', space=sflag, size = 0x4, scoped, tag = 'scoped memory for decoder_rnn_forward_seq.1']
    #allocation5 [shape = 'u8[4096]{0}', space=vmem, size = 0x1000, scoped, tag = 'output window, operand 0, single buffered']
    %13 = vsyncpa [#allocation3], 0
    %14 = vsyncpa [#allocation4], 0
    // Predicated region
    $region2: #{decoder_rnn_forward_seq.1} parent=1 // pred_check
      _
    $region3: #{decoder_rnn_forward_seq.1} parent=1 // pred_check_branch
      %16 = sbr.rel (0) target = $region5
    $region4: #{decoder_rnn_forward_seq.1} parent=1 // pred_region
      _
    $region5: #{decoder_rnn_forward_seq.1} parent=1 // pred_fallthru
      _
    // Predicated region
    $region6: #{decoder_rnn_forward_seq.1} parent=1 // pred_check
      _
    $region7: #{decoder_rnn_forward_seq.1} parent=1 // pred_check_branch
      %18 = sbr.rel (0) target = $region9
    $region8: #{decoder_rnn_forward_seq.1} parent=1 // pred_region
      _
    $region9: #{decoder_rnn_forward_seq.1} parent=1 // pred_fallthru
      _
    // Predicated region
    $region10: #{decoder_rnn_forward_seq.1} parent=1 // pred_check
      _
    $region11: #{decoder_rnn_forward_seq.1} parent=1 // pred_check_branch
      %20 = sbr.rel (0) target = $region13
    $region12: #{decoder_rnn_forward_seq.1} parent=1 // pred_region
      %s22 = ssub.s32 8192, 8192
      %23 = vsyncadd [#allocation3], %s22
      %s24 = sshll.u32 [#allocation2], 4
      %s25 = int_to_ptr.vmem [resolvable:$true] %s24
      %30 = dma.hbm_to_vmem [thread:$0]  %s2, 8192, %s25, [#allocation3], 512, 512, 32
    $region13: #{decoder_rnn_forward_seq.1} parent=1 // pred_fallthru
      _
    // Predicated region
    $region14: #{decoder_rnn_forward_seq.1} parent=1 // pred_check
      _
    $region15: #{decoder_rnn_forward_seq.1} parent=1 // pred_check_branch
      %32 = sbr.rel (0) target = $region17
    $region16: #{decoder_rnn_forward_seq.1} parent=1 // pred_region
      _
    $region17: #{decoder_rnn_forward_seq.1} parent=1 // pred_fallthru
      _
    // Predicated region
    $region18: #{decoder_rnn_forward_seq.1} parent=1 // pred_check
      _
    $region19: #{decoder_rnn_forward_seq.1} parent=1 // pred_check_branch
      %34 = sbr.rel (0) target = $region21
    $region20: #{decoder_rnn_forward_seq.1} parent=1 // pred_region
      _
    $region21: #{decoder_rnn_forward_seq.1} parent=1 // pred_fallthru
      _
    // Predicated region
    $region22: #{decoder_rnn_forward_seq.1} parent=1 // pred_check
      _
    $region23: #{decoder_rnn_forward_seq.1} parent=1 // pred_check_branch
      %36 = sbr.rel (0) target = $region25
    $region24: #{decoder_rnn_forward_seq.1} parent=1 // pred_region
      _
    $region25: #{decoder_rnn_forward_seq.1} parent=1 // pred_fallthru
      _
    // Predicated region
    $region26: #{decoder_rnn_forward_seq.1} parent=1 // pred_check
      _
    $region27: #{decoder_rnn_forward_seq.1} parent=1 // pred_check_branch
      %38 = sbr.rel (0) target = $region29
    $region28: #{decoder_rnn_forward_seq.1} parent=1 // pred_region
      %39 = dma.done [#allocation3], 8192
    $region29: #{decoder_rnn_forward_seq.1} parent=1 // pred_fallthru
      _
    %v40 = vld [vmem:[%s1] sm:$0x1]
    %v41 = vld [vmem:[%s0] sm:$0x1]
    %v42 = vadd.f32 %v41, %v40
    %v43 = vld [vmem:[#allocation2] sm:$0xff]
    %v44 = vld [vmem:[#allocation2 + $0x8] sm:$0xff]
    %v45 = vld [vmem:[#allocation2 + $0x10] sm:$0xff]
    %v46 = vld [vmem:[#allocation2 + $0x18] sm:$0xff]
    %v47 = vld [vmem:[#allocation2 + $0x20] sm:$0xff]
    %v48 = vld [vmem:[#allocation2 + $0x28] sm:$0xff]
    %v49 = vld [vmem:[#allocation2 + $0x30] sm:$0xff]
    %v50 = vld [vmem:[#allocation2 + $0x38] sm:$0xff]
    %v51 = vld [vmem:[#allocation2 + $0x40] sm:$0xff]
    %v52 = vld [vmem:[#allocation2 + $0x48] sm:$0xff]
    %v53 = vld [vmem:[#allocation2 + $0x50] sm:$0xff]
    %v54 = vld [vmem:[#allocation2 + $0x58] sm:$0xff]
    %v55 = vld [vmem:[#allocation2 + $0x60] sm:$0xff]
    %v56 = vld [vmem:[#allocation2 + $0x68] sm:$0xff]
    %v57 = vld [vmem:[#allocation2 + $0x70] sm:$0xff]
    %v58 = vld [vmem:[#allocation2 + $0x78] sm:$0xff]
    %v59 = vld [vmem:[#allocation2 + $0x80] sm:$0xff]
    %v60 = vld [vmem:[#allocation2 + $0x88] sm:$0xff]
    %v61 = vld [vmem:[#allocation2 + $0x90] sm:$0xff]
    %v62 = vld [vmem:[#allocation2 + $0x98] sm:$0xff]
    %v63 = vld [vmem:[#allocation2 + $0xa0] sm:$0xff]
    %v64 = vld [vmem:[#allocation2 + $0xa8] sm:$0xff]
    %v65 = vld [vmem:[#allocation2 + $0xb0] sm:$0xff]
    %v66 = vld [vmem:[#allocation2 + $0xb8] sm:$0xff]
    %v67 = vld [vmem:[#allocation2 + $0xc0] sm:$0xff]
    %v68 = vld [vmem:[#allocation2 + $0xc8] sm:$0xff]
    %v69 = vld [vmem:[#allocation2 + $0xd0] sm:$0xff]
    %v70 = vld [vmem:[#allocation2 + $0xd8] sm:$0xff]
    %v71 = vld [vmem:[#allocation2 + $0xe0] sm:$0xff]
    %v72 = vld [vmem:[#allocation2 + $0xe8] sm:$0xff]
    %v73 = vld [vmem:[#allocation2 + $0xf0] sm:$0xff]
    %v74 = vld [vmem:[#allocation2 + $0xf8] sm:$0xff]
    %v75 = vld [vmem:[#allocation2 + $0x100] sm:$0xff]
    %v76 = vld [vmem:[#allocation2 + $0x108] sm:$0xff]
    %v77 = vld [vmem:[#allocation2 + $0x110] sm:$0xff]
    %v78 = vld [vmem:[#allocation2 + $0x118] sm:$0xff]
    %v79 = vld [vmem:[#allocation2 + $0x120] sm:$0xff]
    %v80 = vld [vmem:[#allocation2 + $0x128] sm:$0xff]
    %v81 = vld [vmem:[#allocation2 + $0x130] sm:$0xff]
    %v82 = vld [vmem:[#allocation2 + $0x138] sm:$0xff]
    %v83 = vld [vmem:[#allocation2 + $0x140] sm:$0xff]
    %v84 = vld [vmem:[#allocation2 + $0x148] sm:$0xff]
    %v85 = vld [vmem:[#allocation2 + $0x150] sm:$0xff]
    %v86 = vld [vmem:[#allocation2 + $0x158] sm:$0xff]
    %v87 = vld [vmem:[#allocation2 + $0x160] sm:$0xff]
    %v88 = vld [vmem:[#allocation2 + $0x168] sm:$0xff]
    %v89 = vld [vmem:[#allocation2 + $0x170] sm:$0xff]
    %v90 = vld [vmem:[#allocation2 + $0x178] sm:$0xff]
    %v91 = vld [vmem:[#allocation2 + $0x180] sm:$0xff]
    %v92 = vld [vmem:[#allocation2 + $0x188] sm:$0xff]
    %v93 = vld [vmem:[#allocation2 + $0x190] sm:$0xff]
    %v94 = vld [vmem:[#allocation2 + $0x198] sm:$0xff]
    %v95 = vld [vmem:[#allocation2 + $0x1a0] sm:$0xff]
    %v96 = vld [vmem:[#allocation2 + $0x1a8] sm:$0xff]
    %v97 = vld [vmem:[#allocation2 + $0x1b0] sm:$0xff]
    %v98 = vld [vmem:[#allocation2 + $0x1b8] sm:$0xff]
    %v99 = vld [vmem:[#allocation2 + $0x1c0] sm:$0xff]
    %v100 = vld [vmem:[#allocation2 + $0x1c8] sm:$0xff]
    %v101 = vld [vmem:[#allocation2 + $0x1d0] sm:$0xff]
    %v102 = vld [vmem:[#allocation2 + $0x1d8] sm:$0xff]
    %v103 = vld [vmem:[#allocation2 + $0x1e0] sm:$0xff]
    %v104 = vld [vmem:[#allocation2 + $0x1e8] sm:$0xff]
    %v105 = vld [vmem:[#allocation2 + $0x1f0] sm:$0xff]
    %v106 = vld [vmem:[#allocation2 + $0x1f8] sm:$0xff]
    %v107 = vld [vmem:[%s3] sm:$0xf]
    %v109 = vlaneseq
    %v110 = vshrl.u32 %v109, 7
    %v111 = vsub.s32 0, %v110
    %v112 = vrot.slane %v107, %v111
    %v113 = vlaneseq
    %v114 = vshrl.u32 %v113, 7
    %v115 = vsub.s32 1, %v114
    %v116 = vrot.slane %v107, %v115
    %v117 = vlaneseq
    %v118 = vshrl.u32 %v117, 7
    %v119 = vsub.s32 2, %v118
    %v120 = vrot.slane %v107, %v119
    %v121 = vlaneseq
    %v122 = vshrl.u32 %v121, 7
    %v123 = vsub.s32 3, %v122
    %v124 = vrot.slane %v107, %v123
    %129 = vmatprep.subr.mxu0 %v104
    %130 = vmatpush1.msra.mxu0 %v103
    %131 = vmatprep.subr.mxu0 %v100
    %132 = vmatpush1.msra.mxu0 %v99
    %133 = vmatprep.subr.mxu0 %v96
    %134 = vmatpush1.msra.mxu0 %v95
    %135 = vmatprep.subr.mxu0 %v92
    %136 = vmatpush1.msra.mxu0 %v91
    %137 = vmatprep.subr.mxu0 %v88
    %138 = vmatpush1.msra.mxu0 %v87
    %139 = vmatprep.subr.mxu0 %v84
    %140 = vmatpush1.msra.mxu0 %v83
    %141 = vmatprep.subr.mxu0 %v80
    %142 = vmatpush1.msra.mxu0 %v79
    %143 = vmatprep.subr.mxu0 %v76
    %144 = vmatpush1.msra.mxu0 %v75
    %145 = vmatprep.subr.mxu0 %v72
    %146 = vmatpush1.msra.mxu0 %v71
    %147 = vmatprep.subr.mxu0 %v68
    %148 = vmatpush1.msra.mxu0 %v67
    %149 = vmatprep.subr.mxu0 %v64
    %150 = vmatpush1.msra.mxu0 %v63
    %151 = vmatprep.subr.mxu0 %v60
    %152 = vmatpush1.msra.mxu0 %v59
    %153 = vmatprep.subr.mxu0 %v56
    %154 = vmatpush1.msra.mxu0 %v55
    %155 = vmatprep.subr.mxu0 %v52
    %156 = vmatpush1.msra.mxu0 %v51
    %157 = vmatprep.subr.mxu0 %v48
    %158 = vmatpush1.msra.mxu0 %v47
    %159 = vmatprep.subr.mxu0 %v44
    %160 = vmatpush1.msra.mxu0 %v43
    %161 = vmatprep.subr.mxu0 0.0
    %162 = vmatpush2.msra.mxu0 0.0
    %163 = vmatprep.subr.mxu0 0.0
    %164 = vmatpush2.msra.mxu0 0.0
    %165 = vmatprep.subr.mxu0 0.0
    %166 = vmatpush2.msra.mxu0 0.0
    %167 = vmatprep.subr.mxu0 0.0
    %168 = vmatpush2.msra.mxu0 0.0
    %169 = vmatprep.subr.mxu0 0.0
    %170 = vmatpush2.msra.mxu0 0.0
    %171 = vmatprep.subr.mxu0 0.0
    %172 = vmatpush2.msra.mxu0 0.0
    %173 = vmatprep.subr.mxu0 0.0
    %174 = vmatpush2.msra.mxu0 0.0
    %175 = vmatprep.subr.mxu0 0.0
    %176 = vmatpush2.msra.mxu0 0.0
    %177 = vmatprep.subr.mxu0 0.0
    %178 = vmatpush2.msra.mxu0 0.0
    %179 = vmatprep.subr.mxu0 0.0
    %180 = vmatpush2.msra.mxu0 0.0
    %181 = vmatprep.subr.mxu0 0.0
    %182 = vmatpush2.msra.mxu0 0.0
    %183 = vmatprep.subr.mxu0 0.0
    %184 = vmatpush2.msra.mxu0 0.0
    %185 = vmatprep.subr.mxu0 0.0
    %186 = vmatpush2.msra.mxu0 0.0
    %187 = vmatprep.subr.mxu0 0.0
    %188 = vmatpush2.msra.mxu0 0.0
    %189 = vmatprep.subr.mxu0 0.0
    %190 = vmatpush2.msra.mxu0 0.0
    %191 = vmatprep.subr.mxu0 0.0
    %192 = vmatpush2.msra.mxu0 0.0
    %193 = vmatprep.mubr.f32.mxu0 0.0
    %194 = vmatmul.mubr.f32.gmra.mxu0 %v42
    %v195 = vpop.f32.mrf.mxu0
    %v196 = vadd.f32 %v112, %v195
    %v197 = vpop.f32.mrf.mxu0
    %v198 = vadd.f32 %v116, %v197
    %199 = vdwg.mxu0
    %200 = vmatprep.subr.mxu0 %v106
    %201 = vmatpush1.msra.mxu0 %v105
    %202 = vmatprep.subr.mxu0 %v102
    %203 = vmatpush1.msra.mxu0 %v101
    %204 = vmatprep.subr.mxu0 %v98
    %205 = vmatpush1.msra.mxu0 %v97
    %206 = vmatprep.subr.mxu0 %v94
    %207 = vmatpush1.msra.mxu0 %v93
    %208 = vmatprep.subr.mxu0 %v90
    %209 = vmatpush1.msra.mxu0 %v89
    %210 = vmatprep.subr.mxu0 %v86
    %211 = vmatpush1.msra.mxu0 %v85
    %212 = vmatprep.subr.mxu0 %v82
    %213 = vmatpush1.msra.mxu0 %v81
    %214 = vmatprep.subr.mxu0 %v78
    %215 = vmatpush1.msra.mxu0 %v77
    %216 = vmatprep.subr.mxu0 %v74
    %217 = vmatpush1.msra.mxu0 %v73
    %218 = vmatprep.subr.mxu0 %v70
    %219 = vmatpush1.msra.mxu0 %v69
    %220 = vmatprep.subr.mxu0 %v66
    %221 = vmatpush1.msra.mxu0 %v65
    %222 = vmatprep.subr.mxu0 %v62
    %223 = vmatpush1.msra.mxu0 %v61
    %224 = vmatprep.subr.mxu0 %v58
    %225 = vmatpush1.msra.mxu0 %v57
    %226 = vmatprep.subr.mxu0 %v54
    %227 = vmatpush1.msra.mxu0 %v53
    %228 = vmatprep.subr.mxu0 %v50
    %229 = vmatpush1.msra.mxu0 %v49
    %230 = vmatprep.subr.mxu0 %v46
    %231 = vmatpush1.msra.mxu0 %v45
    %232 = vmatprep.subr.mxu0 0.0
    %233 = vmatpush2.msra.mxu0 0.0
    %234 = vmatprep.subr.mxu0 0.0
    %235 = vmatpush2.msra.mxu0 0.0
    %236 = vmatprep.subr.mxu0 0.0
    %237 = vmatpush2.msra.mxu0 0.0
    %238 = vmatprep.subr.mxu0 0.0
    %239 = vmatpush2.msra.mxu0 0.0
    %240 = vmatprep.subr.mxu0 0.0
    %241 = vmatpush2.msra.mxu0 0.0
    %242 = vmatprep.subr.mxu0 0.0
    %243 = vmatpush2.msra.mxu0 0.0
    %244 = vmatprep.subr.mxu0 0.0
    %245 = vmatpush2.msra.mxu0 0.0
    %246 = vmatprep.subr.mxu0 0.0
    %247 = vmatpush2.msra.mxu0 0.0
    %248 = vmatprep.subr.mxu0 0.0
    %249 = vmatpush2.msra.mxu0 0.0
    %250 = vmatprep.subr.mxu0 0.0
    %251 = vmatpush2.msra.mxu0 0.0
    %252 = vmatprep.subr.mxu0 0.0
    %253 = vmatpush2.msra.mxu0 0.0
    %254 = vmatprep.subr.mxu0 0.0
    %255 = vmatpush2.msra.mxu0 0.0
    %256 = vmatprep.subr.mxu0 0.0
    %257 = vmatpush2.msra.mxu0 0.0
    %258 = vmatprep.subr.mxu0 0.0
    %259 = vmatpush2.msra.mxu0 0.0
    %260 = vmatprep.subr.mxu0 0.0
    %261 = vmatpush2.msra.mxu0 0.0
    %262 = vmatprep.subr.mxu0 0.0
    %263 = vmatpush2.msra.mxu0 0.0
    %264 = vmatprep.mubr.f32.mxu0 0.0
    %265 = vmatmul.mubr.f32.gmra.mxu0 %v42
    %v266 = vpop.f32.mrf.mxu0
    %v267 = vadd.f32 %v120, %v266
    %v268 = vpop.f32.mrf.mxu0
    %v269 = vadd.f32 %v124, %v268
    %270 = vdwg.mxu0
    %v271 = vxor.u32 %v196, 2147483648
    %v272 = vmul.f32 %v271, 1.442695
    %v273 = vpow.pop %v272
    %v274 = vadd.f32 %v273, 1.0
    %v275 = vrcp.pop %v274
    %v276 = vmul.f32 1.0, %v275
    %v277 = vxor.u32 %v198, 2147483648
    %v278 = vmul.f32 %v277, 1.442695
    %v279 = vpow.pop %v278
    %v280 = vadd.f32 %v279, 1.0
    %v281 = vrcp.pop %v280
    %v282 = vmul.f32 1.0, %v281
    %v283 = vmul.f32 %v276, %v269
    %v284 = vadd.f32 %v267, %v283
    %v285 = vtanh.pop %v284
    %v286 = vsub.f32 1.0, %v282
    %v287 = vmul.f32 %v286, %v285
    %v288 = vmul.f32 %v282, %v40
    %v289 = vadd.f32 %v287, %v288
    %v290 = vld [vmem:[%s4] sm:$0xff]
    %v291 = vld [vmem:[%s4 + $0x8] sm:$0xff]
    %v292 = vld [vmem:[%s4 + $0x10] sm:$0xff]
    %v293 = vld [vmem:[%s4 + $0x18] sm:$0xff]
    %v294 = vld [vmem:[%s4 + $0x20] sm:$0xff]
    %v295 = vld [vmem:[%s4 + $0x28] sm:$0xff]
    %v296 = vld [vmem:[%s4 + $0x30] sm:$0xff]
    %v297 = vld [vmem:[%s4 + $0x38] sm:$0xff]
    %v298 = vld [vmem:[%s4 + $0x40] sm:$0xff]
    %v299 = vld [vmem:[%s4 + $0x48] sm:$0xff]
    %v300 = vld [vmem:[%s4 + $0x50] sm:$0xff]
    %v301 = vld [vmem:[%s4 + $0x58] sm:$0xff]
    %v302 = vld [vmem:[%s4 + $0x60] sm:$0xff]
    %v303 = vld [vmem:[%s4 + $0x68] sm:$0xff]
    %v304 = vld [vmem:[%s4 + $0x70] sm:$0xff]
    %v305 = vld [vmem:[%s4 + $0x78] sm:$0xff]
    %v306 = vld [vmem:[%s5] sm:$0x1]
    %307 = vmatprep.subr.mxu0 0.0
    %308 = vmatpush1.msra.mxu0 %v305
    %309 = vmatprep.subr.mxu0 0.0
    %310 = vmatpush1.msra.mxu0 %v304
    %311 = vmatprep.subr.mxu0 0.0
    %312 = vmatpush1.msra.mxu0 %v303
    %313 = vmatprep.subr.mxu0 0.0
    %314 = vmatpush1.msra.mxu0 %v302
    %315 = vmatprep.subr.mxu0 0.0
    %316 = vmatpush1.msra.mxu0 %v301
    %317 = vmatprep.subr.mxu0 0.0
    %318 = vmatpush1.msra.mxu0 %v300
    %319 = vmatprep.subr.mxu0 0.0
    %320 = vmatpush1.msra.mxu0 %v299
    %321 = vmatprep.subr.mxu0 0.0
    %322 = vmatpush1.msra.mxu0 %v298
    %323 = vmatprep.subr.mxu0 0.0
    %324 = vmatpush1.msra.mxu0 %v297
    %325 = vmatprep.subr.mxu0 0.0
    %326 = vmatpush1.msra.mxu0 %v296
    %327 = vmatprep.subr.mxu0 0.0
    %328 = vmatpush1.msra.mxu0 %v295
    %329 = vmatprep.subr.mxu0 0.0
    %330 = vmatpush1.msra.mxu0 %v294
    %331 = vmatprep.subr.mxu0 0.0
    %332 = vmatpush1.msra.mxu0 %v293
    %333 = vmatprep.subr.mxu0 0.0
    %334 = vmatpush1.msra.mxu0 %v292
    %335 = vmatprep.subr.mxu0 0.0
    %336 = vmatpush1.msra.mxu0 %v291
    %337 = vmatprep.subr.mxu0 0.0
    %338 = vmatpush1.msra.mxu0 %v290
    %339 = vmatprep.subr.mxu0 0.0
    %340 = vmatpush2.msra.mxu0 0.0
    %341 = vmatprep.subr.mxu0 0.0
    %342 = vmatpush2.msra.mxu0 0.0
    %343 = vmatprep.subr.mxu0 0.0
    %344 = vmatpush2.msra.mxu0 0.0
    %345 = vmatprep.subr.mxu0 0.0
    %346 = vmatpush2.msra.mxu0 0.0
    %347 = vmatprep.subr.mxu0 0.0
    %348 = vmatpush2.msra.mxu0 0.0
    %349 = vmatprep.subr.mxu0 0.0
    %350 = vmatpush2.msra.mxu0 0.0
    %351 = vmatprep.subr.mxu0 0.0
    %352 = vmatpush2.msra.mxu0 0.0
    %353 = vmatprep.subr.mxu0 0.0
    %354 = vmatpush2.msra.mxu0 0.0
    %355 = vmatprep.subr.mxu0 0.0
    %356 = vmatpush2.msra.mxu0 0.0
    %357 = vmatprep.subr.mxu0 0.0
    %358 = vmatpush2.msra.mxu0 0.0
    %359 = vmatprep.subr.mxu0 0.0
    %360 = vmatpush2.msra.mxu0 0.0
    %361 = vmatprep.subr.mxu0 0.0
    %362 = vmatpush2.msra.mxu0 0.0
    %363 = vmatprep.subr.mxu0 0.0
    %364 = vmatpush2.msra.mxu0 0.0
    %365 = vmatprep.subr.mxu0 0.0
    %366 = vmatpush2.msra.mxu0 0.0
    %367 = vmatprep.subr.mxu0 0.0
    %368 = vmatpush2.msra.mxu0 0.0
    %369 = vmatprep.subr.mxu0 0.0
    %370 = vmatpush2.msra.mxu0 0.0
    %371 = vmatprep.mubr.f32.mxu0 0.0
    %372 = vmatmul.mubr.f32.gmra.mxu0 %v289
    %v373 = vpop.f32.mrf.mxu0
    %v374 = vadd.f32 %v306, %v373
    %v375 = vpop.f32.mrf.mxu0
    %376 = vdwg.mxu0
    %vm377 = vcmask 1040384
    %v378 = vsel %vm377, %v374, -inf
    %379 = vmax.xlane.f32.xlu0 %v378
    %v380 = vpop.xlane.xlu0 %379
    %v381 = vsub.f32 %v374, %v380
    %v382 = vmul.f32 %v381, 1.442695
    %v383 = vpow.pop %v382
    %v384 = vsel %vm377, %v383, 0.0
    %385 = vadd.xlane.f32.xlu0 %v384
    %v386 = vpop.xlane.xlu0 %385
    %v387 = vlog2.pop %v386
    %v388 = vmul.f32 %v387, 0.6931472
    %v389 = vadd.f32 %v380, %v388
    %v390 = vsub.f32 %v374, %v389
    %391 = vst [vmem:[#allocation5] sm:$0x1] %v390
    %v392 = vld [vmem:[%s0 + $0x1] sm:$0x1]
    %v393 = vadd.f32 %v392, %v289
    %v394 = vld [vmem:[#allocation2] sm:$0xff]
    %v395 = vld [vmem:[#allocation2 + $0x8] sm:$0xff]
    %v396 = vld [vmem:[#allocation2 + $0x10] sm:$0xff]
    %v397 = vld [vmem:[#allocation2 + $0x18] sm:$0xff]
    %v398 = vld [vmem:[#allocation2 + $0x20] sm:$0xff]
    %v399 = vld [vmem:[#allocation2 + $0x28] sm:$0xff]
    %v400 = vld [vmem:[#allocation2 + $0x30] sm:$0xff]
    %v401 = vld [vmem:[#allocation2 + $0x38] sm:$0xff]
    %v402 = vld [vmem:[#allocation2 + $0x40] sm:$0xff]
    %v403 = vld [vmem:[#allocation2 + $0x48] sm:$0xff]
    %v404 = vld [vmem:[#allocation2 + $0x50] sm:$0xff]
    %v405 = vld [vmem:[#allocation2 + $0x58] sm:$0xff]
    %v406 = vld [vmem:[#allocation2 + $0x60] sm:$0xff]
    %v407 = vld [vmem:[#allocation2 + $0x68] sm:$0xff]
    %v408 = vld [vmem:[#allocation2 + $0x70] sm:$0xff]
    %v409 = vld [vmem:[#allocation2 + $0x78] sm:$0xff]
    %v410 = vld [vmem:[#allocation2 + $0x80] sm:$0xff]
    %v411 = vld [vmem:[#allocation2 + $0x88] sm:$0xff]
    %v412 = vld [vmem:[#allocation2 + $0x90] sm:$0xff]
    %v413 = vld [vmem:[#allocation2 + $0x98] sm:$0xff]
    %v414 = vld [vmem:[#allocation2 + $0xa0] sm:$0xff]
    %v415 = vld [vmem:[#allocation2 + $0xa8] sm:$0xff]
    %v416 = vld [vmem:[#allocation2 + $0xb0] sm:$0xff]
    %v417 = vld [vmem:[#allocation2 + $0xb8] sm:$0xff]
    %v418 = vld [vmem:[#allocation2 + $0xc0] sm:$0xff]
    %v419 = vld [vmem:[#allocation2 + $0xc8] sm:$0xff]
    %v420 = vld [vmem:[#allocation2 + $0xd0] sm:$0xff]
    %v421 = vld [vmem:[#allocation2 + $0xd8] sm:$0xff]
    %v422 = vld [vmem:[#allocation2 + $0xe0] sm:$0xff]
    %v423 = vld [vmem:[#allocation2 + $0xe8] sm:$0xff]
    %v424 = vld [vmem:[#allocation2 + $0xf0] sm:$0xff]
    %v425 = vld [vmem:[#allocation2 + $0xf8] sm:$0xff]
    %v426 = vld [vmem:[#allocation2 + $0x100] sm:$0xff]
    %v427 = vld [vmem:[#allocation2 + $0x108] sm:$0xff]
    %v428 = vld [vmem:[#allocation2 + $0x110] sm:$0xff]
    %v429 = vld [vmem:[#allocation2 + $0x118] sm:$0xff]
    %v430 = vld [vmem:[#allocation2 + $0x120] sm:$0xff]
    %v431 = vld [vmem:[#allocation2 + $0x128] sm:$0xff]
    %v432 = vld [vmem:[#allocation2 + $0x130] sm:$0xff]
    %v433 = vld [vmem:[#allocation2 + $0x138] sm:$0xff]
    %v434 = vld [vmem:[#allocation2 + $0x140] sm:$0xff]
    %v435 = vld [vmem:[#allocation2 + $0x148] sm:$0xff]
    %v436 = vld [vmem:[#allocation2 + $0x150] sm:$0xff]
    %v437 = vld [vmem:[#allocation2 + $0x158] sm:$0xff]
    %v438 = vld [vmem:[#allocation2 + $0x160] sm:$0xff]
    %v439 = vld [vmem:[#allocation2 + $0x168] sm:$0xff]
    %v440 = vld [vmem:[#allocation2 + $0x170] sm:$0xff]
    %v441 = vld [vmem:[#allocation2 + $0x178] sm:$0xff]
    %v442 = vld [vmem:[#allocation2 + $0x180] sm:$0xff]
    %v443 = vld [vmem:[#allocation2 + $0x188] sm:$0xff]
    %v444 = vld [vmem:[#allocation2 + $0x190] sm:$0xff]
    %v445 = vld [vmem:[#allocation2 + $0x198] sm:$0xff]
    %v446 = vld [vmem:[#allocation2 + $0x1a0] sm:$0xff]
    %v447 = vld [vmem:[#allocation2 + $0x1a8] sm:$0xff]
    %v448 = vld [vmem:[#allocation2 + $0x1b0] sm:$0xff]
    %v449 = vld [vmem:[#allocation2 + $0x1b8] sm:$0xff]
    %v450 = vld [vmem:[#allocation2 + $0x1c0] sm:$0xff]
    %v451 = vld [vmem:[#allocation2 + $0x1c8] sm:$0xff]
    %v452 = vld [vmem:[#allocation2 + $0x1d0] sm:$0xff]
    %v453 = vld [vmem:[#allocation2 + $0x1d8] sm:$0xff]
    %v454 = vld [vmem:[#allocation2 + $0x1e0] sm:$0xff]
    %v455 = vld [vmem:[#allocation2 + $0x1e8] sm:$0xff]
    %v456 = vld [vmem:[#allocation2 + $0x1f0] sm:$0xff]
    %v457 = vld [vmem:[#allocation2 + $0x1f8] sm:$0xff]
    %v458 = vld [vmem:[%s3] sm:$0xf]
    %v460 = vlaneseq
    %v461 = vshrl.u32 %v460, 7
    %v462 = vsub.s32 0, %v461
    %v463 = vrot.slane %v458, %v462
    %v464 = vlaneseq
    %v465 = vshrl.u32 %v464, 7
    %v466 = vsub.s32 1, %v465
    %v467 = vrot.slane %v458, %v466
    %v468 = vlaneseq
    %v469 = vshrl.u32 %v468, 7
    %v470 = vsub.s32 2, %v469
    %v471 = vrot.slane %v458, %v470
    %v472 = vlaneseq
    %v473 = vshrl.u32 %v472, 7
    %v474 = vsub.s32 3, %v473
    %v475 = vrot.slane %v458, %v474
    %480 = vmatprep.subr.mxu0 %v455
    %481 = vmatpush1.msra.mxu0 %v454
    %482 = vmatprep.subr.mxu0 %v451
    %483 = vmatpush1.msra.mxu0 %v450
    %484 = vmatprep.subr.mxu0 %v447
    %485 = vmatpush1.msra.mxu0 %v446
    %486 = vmatprep.subr.mxu0 %v443
    %487 = vmatpush1.msra.mxu0 %v442
    %488 = vmatprep.subr.mxu0 %v439
    %489 = vmatpush1.msra.mxu0 %v438
    %490 = vmatprep.subr.mxu0 %v435
    %491 = vmatpush1.msra.mxu0 %v434
    %492 = vmatprep.subr.mxu0 %v431
    %493 = vmatpush1.msra.mxu0 %v430
    %494 = vmatprep.subr.mxu0 %v427
    %495 = vmatpush1.msra.mxu0 %v426
    %496 = vmatprep.subr.mxu0 %v423
    %497 = vmatpush1.msra.mxu0 %v422
    %498 = vmatprep.subr.mxu0 %v419
    %499 = vmatpush1.msra.mxu0 %v418
    %500 = vmatprep.subr.mxu0 %v415
    %501 = vmatpush1.msra.mxu0 %v414
    %502 = vmatprep.subr.mxu0 %v411
    %503 = vmatpush1.msra.mxu0 %v410
    %504 = vmatprep.subr.mxu0 %v407
    %505 = vmatpush1.msra.mxu0 %v406
    %506 = vmatprep.subr.mxu0 %v403
    %507 = vmatpush1.msra.mxu0 %v402
    %508 = vmatprep.subr.mxu0 %v399
    %509 = vmatpush1.msra.mxu0 %v398
    %510 = vmatprep.subr.mxu0 %v395
    %511 = vmatpush1.msra.mxu0 %v394
    %512 = vmatprep.subr.mxu0 0.0
    %513 = vmatpush2.msra.mxu0 0.0
    %514 = vmatprep.subr.mxu0 0.0
    %515 = vmatpush2.msra.mxu0 0.0
    %516 = vmatprep.subr.mxu0 0.0
    %517 = vmatpush2.msra.mxu0 0.0
    %518 = vmatprep.subr.mxu0 0.0
    %519 = vmatpush2.msra.mxu0 0.0
    %520 = vmatprep.subr.mxu0 0.0
    %521 = vmatpush2.msra.mxu0 0.0
    %522 = vmatprep.subr.mxu0 0.0
    %523 = vmatpush2.msra.mxu0 0.0
    %524 = vmatprep.subr.mxu0 0.0
    %525 = vmatpush2.msra.mxu0 0.0
    %526 = vmatprep.subr.mxu0 0.0
    %527 = vmatpush2.msra.mxu0 0.0
    %528 = vmatprep.subr.mxu0 0.0
    %529 = vmatpush2.msra.mxu0 0.0
    %530 = vmatprep.subr.mxu0 0.0
    %531 = vmatpush2.msra.mxu0 0.0
    %532 = vmatprep.subr.mxu0 0.0
    %533 = vmatpush2.msra.mxu0 0.0
    %534 = vmatprep.subr.mxu0 0.0
    %535 = vmatpush2.msra.mxu0 0.0
    %536 = vmatprep.subr.mxu0 0.0
    %537 = vmatpush2.msra.mxu0 0.0
    %538 = vmatprep.subr.mxu0 0.0
    %539 = vmatpush2.msra.mxu0 0.0
    %540 = vmatprep.subr.mxu0 0.0
    %541 = vmatpush2.msra.mxu0 0.0
    %542 = vmatprep.subr.mxu0 0.0
    %543 = vmatpush2.msra.mxu0 0.0
    %544 = vmatprep.mubr.f32.mxu0 0.0
    %545 = vmatmul.mubr.f32.gmra.mxu0 %v393
    %v546 = vpop.f32.mrf.mxu0
    %v547 = vadd.f32 %v463, %v546
    %v548 = vpop.f32.mrf.mxu0
    %v549 = vadd.f32 %v467, %v548
    %550 = vdwg.mxu0
    %551 = vmatprep.subr.mxu0 %v457
    %552 = vmatpush1.msra.mxu0 %v456
    %553 = vmatprep.subr.mxu0 %v453
    %554 = vmatpush1.msra.mxu0 %v452
    %555 = vmatprep.subr.mxu0 %v449
    %556 = vmatpush1.msra.mxu0 %v448
    %557 = vmatprep.subr.mxu0 %v445
    %558 = vmatpush1.msra.mxu0 %v444
    %559 = vmatprep.subr.mxu0 %v441
    %560 = vmatpush1.msra.mxu0 %v440
    %561 = vmatprep.subr.mxu0 %v437
    %562 = vmatpush1.msra.mxu0 %v436
    %563 = vmatprep.subr.mxu0 %v433
    %564 = vmatpush1.msra.mxu0 %v432
    %565 = vmatprep.subr.mxu0 %v429
    %566 = vmatpush1.msra.mxu0 %v428
    %567 = vmatprep.subr.mxu0 %v425
    %568 = vmatpush1.msra.mxu0 %v424
    %569 = vmatprep.subr.mxu0 %v421
    %570 = vmatpush1.msra.mxu0 %v420
    %571 = vmatprep.subr.mxu0 %v417
    %572 = vmatpush1.msra.mxu0 %v416
    %573 = vmatprep.subr.mxu0 %v413
    %574 = vmatpush1.msra.mxu0 %v412
    %575 = vmatprep.subr.mxu0 %v409
    %576 = vmatpush1.msra.mxu0 %v408
    %577 = vmatprep.subr.mxu0 %v405
    %578 = vmatpush1.msra.mxu0 %v404
    %579 = vmatprep.subr.mxu0 %v401
    %580 = vmatpush1.msra.mxu0 %v400
    %581 = vmatprep.subr.mxu0 %v397
    %582 = vmatpush1.msra.mxu0 %v396
    %583 = vmatprep.subr.mxu0 0.0
    %584 = vmatpush2.msra.mxu0 0.0
    %585 = vmatprep.subr.mxu0 0.0
    %586 = vmatpush2.msra.mxu0 0.0
    %587 = vmatprep.subr.mxu0 0.0
    %588 = vmatpush2.msra.mxu0 0.0
    %589 = vmatprep.subr.mxu0 0.0
    %590 = vmatpush2.msra.mxu0 0.0
    %591 = vmatprep.subr.mxu0 0.0
    %592 = vmatpush2.msra.mxu0 0.0
    %593 = vmatprep.subr.mxu0 0.0
    %594 = vmatpush2.msra.mxu0 0.0
    %595 = vmatprep.subr.mxu0 0.0
    %596 = vmatpush2.msra.mxu0 0.0
    %597 = vmatprep.subr.mxu0 0.0
    %598 = vmatpush2.msra.mxu0 0.0
    %599 = vmatprep.subr.mxu0 0.0
    %600 = vmatpush2.msra.mxu0 0.0
    %601 = vmatprep.subr.mxu0 0.0
    %602 = vmatpush2.msra.mxu0 0.0
    %603 = vmatprep.subr.mxu0 0.0
    %604 = vmatpush2.msra.mxu0 0.0
    %605 = vmatprep.subr.mxu0 0.0
    %606 = vmatpush2.msra.mxu0 0.0
    %607 = vmatprep.subr.mxu0 0.0
    %608 = vmatpush2.msra.mxu0 0.0
    %609 = vmatprep.subr.mxu0 0.0
    %610 = vmatpush2.msra.mxu0 0.0
    %611 = vmatprep.subr.mxu0 0.0
    %612 = vmatpush2.msra.mxu0 0.0
    %613 = vmatprep.subr.mxu0 0.0
    %614 = vmatpush2.msra.mxu0 0.0
    %615 = vmatprep.mubr.f32.mxu0 0.0
    %616 = vmatmul.mubr.f32.gmra.mxu0 %v393
    %v617 = vpop.f32.mrf.mxu0
    %v618 = vadd.f32 %v471, %v617
    %v619 = vpop.f32.mrf.mxu0
    %v620 = vadd.f32 %v475, %v619
    %621 = vdwg.mxu0
    %v622 = vxor.u32 %v547, 2147483648
    %v623 = vmul.f32 %v622, 1.442695
    %v624 = vpow.pop %v623
    %v625 = vadd.f32 %v624, 1.0
    %v626 = vrcp.pop %v625
    %v627 = vmul.f32 1.0, %v626
    %v628 = vxor.u32 %v549, 2147483648
    %v629 = vmul.f32 %v628, 1.442695
    %v630 = vpow.pop %v629
    %v631 = vadd.f32 %v630, 1.0
    %v632 = vrcp.pop %v631
    %v633 = vmul.f32 1.0, %v632
    %v634 = vmul.f32 %v627, %v620
    %v635 = vadd.f32 %v618, %v634
    %v636 = vtanh.pop %v635
    %v637 = vsub.f32 1.0, %v633
    %v638 = vmul.f32 %v637, %v636
    %v639 = vmul.f32 %v633, %v289
    %v640 = vadd.f32 %v638, %v639
    %v641 = vld [vmem:[%s4] sm:$0xff]
    %v642 = vld [vmem:[%s4 + $0x8] sm:$0xff]
    %v643 = vld [vmem:[%s4 + $0x10] sm:$0xff]
    %v644 = vld [vmem:[%s4 + $0x18] sm:$0xff]
    %v645 = vld [vmem:[%s4 + $0x20] sm:$0xff]
    %v646 = vld [vmem:[%s4 + $0x28] sm:$0xff]
    %v647 = vld [vmem:[%s4 + $0x30] sm:$0xff]
    %v648 = vld [vmem:[%s4 + $0x38] sm:$0xff]
    %v649 = vld [vmem:[%s4 + $0x40] sm:$0xff]
    %v650 = vld [vmem:[%s4 + $0x48] sm:$0xff]
    %v651 = vld [vmem:[%s4 + $0x50] sm:$0xff]
    %v652 = vld [vmem:[%s4 + $0x58] sm:$0xff]
    %v653 = vld [vmem:[%s4 + $0x60] sm:$0xff]
    %v654 = vld [vmem:[%s4 + $0x68] sm:$0xff]
    %v655 = vld [vmem:[%s4 + $0x70] sm:$0xff]
    %v656 = vld [vmem:[%s4 + $0x78] sm:$0xff]
    %v657 = vld [vmem:[%s5] sm:$0x1]
    %658 = vmatprep.subr.mxu0 0.0
    %659 = vmatpush1.msra.mxu0 %v656
    %660 = vmatprep.subr.mxu0 0.0
    %661 = vmatpush1.msra.mxu0 %v655
    %662 = vmatprep.subr.mxu0 0.0
    %663 = vmatpush1.msra.mxu0 %v654
    %664 = vmatprep.subr.mxu0 0.0
    %665 = vmatpush1.msra.mxu0 %v653
    %666 = vmatprep.subr.mxu0 0.0
    %667 = vmatpush1.msra.mxu0 %v652
    %668 = vmatprep.subr.mxu0 0.0
    %669 = vmatpush1.msra.mxu0 %v651
    %670 = vmatprep.subr.mxu0 0.0
    %671 = vmatpush1.msra.mxu0 %v650
    %672 = vmatprep.subr.mxu0 0.0
    %673 = vmatpush1.msra.mxu0 %v649
    %674 = vmatprep.subr.mxu0 0.0
    %675 = vmatpush1.msra.mxu0 %v648
    %676 = vmatprep.subr.mxu0 0.0
    %677 = vmatpush1.msra.mxu0 %v647
    %678 = vmatprep.subr.mxu0 0.0
    %679 = vmatpush1.msra.mxu0 %v646
    %680 = vmatprep.subr.mxu0 0.0
    %681 = vmatpush1.msra.mxu0 %v645
    %682 = vmatprep.subr.mxu0 0.0
    %683 = vmatpush1.msra.mxu0 %v644
    %684 = vmatprep.subr.mxu0 0.0
    %685 = vmatpush1.msra.mxu0 %v643
    %686 = vmatprep.subr.mxu0 0.0
    %687 = vmatpush1.msra.mxu0 %v642
    %688 = vmatprep.subr.mxu0 0.0
    %689 = vmatpush1.msra.mxu0 %v641
    %690 = vmatprep.subr.mxu0 0.0
    %691 = vmatpush2.msra.mxu0 0.0
    %692 = vmatprep.subr.mxu0 0.0
    %693 = vmatpush2.msra.mxu0 0.0
    %694 = vmatprep.subr.mxu0 0.0
    %695 = vmatpush2.msra.mxu0 0.0
    %696 = vmatprep.subr.mxu0 0.0
    %697 = vmatpush2.msra.mxu0 0.0
    %698 = vmatprep.subr.mxu0 0.0
    %699 = vmatpush2.msra.mxu0 0.0
    %700 = vmatprep.subr.mxu0 0.0
    %701 = vmatpush2.msra.mxu0 0.0
    %702 = vmatprep.subr.mxu0 0.0
    %703 = vmatpush2.msra.mxu0 0.0
    %704 = vmatprep.subr.mxu0 0.0
    %705 = vmatpush2.msra.mxu0 0.0
    %706 = vmatprep.subr.mxu0 0.0
    %707 = vmatpush2.msra.mxu0 0.0
    %708 = vmatprep.subr.mxu0 0.0
    %709 = vmatpush2.msra.mxu0 0.0
    %710 = vmatprep.subr.mxu0 0.0
    %711 = vmatpush2.msra.mxu0 0.0
    %712 = vmatprep.subr.mxu0 0.0
    %713 = vmatpush2.msra.mxu0 0.0
    %714 = vmatprep.subr.mxu0 0.0
    %715 = vmatpush2.msra.mxu0 0.0
    %716 = vmatprep.subr.mxu0 0.0
    %717 = vmatpush2.msra.mxu0 0.0
    %718 = vmatprep.subr.mxu0 0.0
    %719 = vmatpush2.msra.mxu0 0.0
    %720 = vmatprep.subr.mxu0 0.0
    %721 = vmatpush2.msra.mxu0 0.0
    %722 = vmatprep.mubr.f32.mxu0 0.0
    %723 = vmatmul.mubr.f32.gmra.mxu0 %v640
    %v724 = vpop.f32.mrf.mxu0
    %v725 = vadd.f32 %v657, %v724
    %v726 = vpop.f32.mrf.mxu0
    %727 = vdwg.mxu0
    %v728 = vsel %vm377, %v725, -inf
    %729 = vmax.xlane.f32.xlu0 %v728
    %v730 = vpop.xlane.xlu0 %729
    %v731 = vsub.f32 %v725, %v730
    %v732 = vmul.f32 %v731, 1.442695
    %v733 = vpow.pop %v732
    %v734 = vsel %vm377, %v733, 0.0
    %735 = vadd.xlane.f32.xlu0 %v734
    %v736 = vpop.xlane.xlu0 %735
    %v737 = vlog2.pop %v736
    %v738 = vmul.f32 %v737, 0.6931472
    %v739 = vadd.f32 %v730, %v738
    %v740 = vsub.f32 %v725, %v739
    %741 = vst [vmem:[#allocation5 + $0x1] sm:$0x1] %v740
    %v742 = vld [vmem:[%s0 + $0x2] sm:$0x1]
    %v743 = vadd.f32 %v742, %v640
    %v744 = vld [vmem:[#allocation2] sm:$0xff]
    %v745 = vld [vmem:[#allocation2 + $0x8] sm:$0xff]
    %v746 = vld [vmem:[#allocation2 + $0x10] sm:$0xff]
    %v747 = vld [vmem:[#allocation2 + $0x18] sm:$0xff]
    %v748 = vld [vmem:[#allocation2 + $0x20] sm:$0xff]
    %v749 = vld [vmem:[#allocation2 + $0x28] sm:$0xff]
    %v750 = vld [vmem:[#allocation2 + $0x30] sm:$0xff]
    %v751 = vld [vmem:[#allocation2 + $0x38] sm:$0xff]
    %v752 = vld [vmem:[#allocation2 + $0x40] sm:$0xff]
    %v753 = vld [vmem:[#allocation2 + $0x48] sm:$0xff]
    %v754 = vld [vmem:[#allocation2 + $0x50] sm:$0xff]
    %v755 = vld [vmem:[#allocation2 + $0x58] sm:$0xff]
    %v756 = vld [vmem:[#allocation2 + $0x60] sm:$0xff]
    %v757 = vld [vmem:[#allocation2 + $0x68] sm:$0xff]
    %v758 = vld [vmem:[#allocation2 + $0x70] sm:$0xff]
    %v759 = vld [vmem:[#allocation2 + $0x78] sm:$0xff]
    %v760 = vld [vmem:[#allocation2 + $0x80] sm:$0xff]
    %v761 = vld [vmem:[#allocation2 + $0x88] sm:$0xff]
    %v762 = vld [vmem:[#allocation2 + $0x90] sm:$0xff]
    %v763 = vld [vmem:[#allocation2 + $0x98] sm:$0xff]
    %v764 = vld [vmem:[#allocation2 + $0xa0] sm:$0xff]
    %v765 = vld [vmem:[#allocation2 + $0xa8] sm:$0xff]
    %v766 = vld [vmem:[#allocation2 + $0xb0] sm:$0xff]
    %v767 = vld [vmem:[#allocation2 + $0xb8] sm:$0xff]
    %v768 = vld [vmem:[#allocation2 + $0xc0] sm:$0xff]
    %v769 = vld [vmem:[#allocation2 + $0xc8] sm:$0xff]
    %v770 = vld [vmem:[#allocation2 + $0xd0] sm:$0xff]
    %v771 = vld [vmem:[#allocation2 + $0xd8] sm:$0xff]
    %v772 = vld [vmem:[#allocation2 + $0xe0] sm:$0xff]
    %v773 = vld [vmem:[#allocation2 + $0xe8] sm:$0xff]
    %v774 = vld [vmem:[#allocation2 + $0xf0] sm:$0xff]
    %v775 = vld [vmem:[#allocation2 + $0xf8] sm:$0xff]
    %v776 = vld [vmem:[#allocation2 + $0x100] sm:$0xff]
    %v777 = vld [vmem:[#allocation2 + $0x108] sm:$0xff]
    %v778 = vld [vmem:[#allocation2 + $0x110] sm:$0xff]
    %v779 = vld [vmem:[#allocation2 + $0x118] sm:$0xff]
    %v780 = vld [vmem:[#allocation2 + $0x120] sm:$0xff]
    %v781 = vld [vmem:[#allocation2 + $0x128] sm:$0xff]
    %v782 = vld [vmem:[#allocation2 + $0x130] sm:$0xff]
    %v783 = vld [vmem:[#allocation2 + $0x138] sm:$0xff]
    %v784 = vld [vmem:[#allocation2 + $0x140] sm:$0xff]
    %v785 = vld [vmem:[#allocation2 + $0x148] sm:$0xff]
    %v786 = vld [vmem:[#allocation2 + $0x150] sm:$0xff]
    %v787 = vld [vmem:[#allocation2 + $0x158] sm:$0xff]
    %v788 = vld [vmem:[#allocation2 + $0x160] sm:$0xff]
    %v789 = vld [vmem:[#allocation2 + $0x168] sm:$0xff]
    %v790 = vld [vmem:[#allocation2 + $0x170] sm:$0xff]
    %v791 = vld [vmem:[#allocation2 + $0x178] sm:$0xff]
    %v792 = vld [vmem:[#allocation2 + $0x180] sm:$0xff]
    %v793 = vld [vmem:[#allocation2 + $0x188] sm:$0xff]
    %v794 = vld [vmem:[#allocation2 + $0x190] sm:$0xff]
    %v795 = vld [vmem:[#allocation2 + $0x198] sm:$0xff]
    %v796 = vld [vmem:[#allocation2 + $0x1a0] sm:$0xff]
    %v797 = vld [vmem:[#allocation2 + $0x1a8] sm:$0xff]
    %v798 = vld [vmem:[#allocation2 + $0x1b0] sm:$0xff]
    %v799 = vld [vmem:[#allocation2 + $0x1b8] sm:$0xff]
    %v800 = vld [vmem:[#allocation2 + $0x1c0] sm:$0xff]
    %v801 = vld [vmem:[#allocation2 + $0x1c8] sm:$0xff]
    %v802 = vld [vmem:[#allocation2 + $0x1d0] sm:$0xff]
    %v803 = vld [vmem:[#allocation2 + $0x1d8] sm:$0xff]
    %v804 = vld [vmem:[#allocation2 + $0x1e0] sm:$0xff]
    %v805 = vld [vmem:[#allocation2 + $0x1e8] sm:$0xff]
    %v806 = vld [vmem:[#allocation2 + $0x1f0] sm:$0xff]
    %v807 = vld [vmem:[#allocation2 + $0x1f8] sm:$0xff]
    %v808 = vld [vmem:[%s3] sm:$0xf]
    %v810 = vlaneseq
    %v811 = vshrl.u32 %v810, 7
    %v812 = vsub.s32 0, %v811
    %v813 = vrot.slane %v808, %v812
    %v814 = vlaneseq
    %v815 = vshrl.u32 %v814, 7
    %v816 = vsub.s32 1, %v815
    %v817 = vrot.slane %v808, %v816
    %v818 = vlaneseq
    %v819 = vshrl.u32 %v818, 7
    %v820 = vsub.s32 2, %v819
    %v821 = vrot.slane %v808, %v820
    %v822 = vlaneseq
    %v823 = vshrl.u32 %v822, 7
    %v824 = vsub.s32 3, %v823
    %v825 = vrot.slane %v808, %v824
    %830 = vmatprep.subr.mxu0 %v805
    %831 = vmatpush1.msra.mxu0 %v804
    %832 = vmatprep.subr.mxu0 %v801
    %833 = vmatpush1.msra.mxu0 %v800
    %834 = vmatprep.subr.mxu0 %v797
    %835 = vmatpush1.msra.mxu0 %v796
    %836 = vmatprep.subr.mxu0 %v793
    %837 = vmatpush1.msra.mxu0 %v792
    %838 = vmatprep.subr.mxu0 %v789
    %839 = vmatpush1.msra.mxu0 %v788
    %840 = vmatprep.subr.mxu0 %v785
    %841 = vmatpush1.msra.mxu0 %v784
    %842 = vmatprep.subr.mxu0 %v781
    %843 = vmatpush1.msra.mxu0 %v780
    %844 = vmatprep.subr.mxu0 %v777
    %845 = vmatpush1.msra.mxu0 %v776
    %846 = vmatprep.subr.mxu0 %v773
    %847 = vmatpush1.msra.mxu0 %v772
    %848 = vmatprep.subr.mxu0 %v769
    %849 = vmatpush1.msra.mxu0 %v768
    %850 = vmatprep.subr.mxu0 %v765
    %851 = vmatpush1.msra.mxu0 %v764
    %852 = vmatprep.subr.mxu0 %v761
    %853 = vmatpush1.msra.mxu0 %v760
    %854 = vmatprep.subr.mxu0 %v757
    %855 = vmatpush1.msra.mxu0 %v756
    %856 = vmatprep.subr.mxu0 %v753
    %857 = vmatpush1.msra.mxu0 %v752
    %858 = vmatprep.subr.mxu0 %v749
    %859 = vmatpush1.msra.mxu0 %v748
    %860 = vmatprep.subr.mxu0 %v745
    %861 = vmatpush1.msra.mxu0 %v744
    %862 = vmatprep.subr.mxu0 0.0
    %863 = vmatpush2.msra.mxu0 0.0
    %864 = vmatprep.subr.mxu0 0.0
    %865 = vmatpush2.msra.mxu0 0.0
    %866 = vmatprep.subr.mxu0 0.0
    %867 = vmatpush2.msra.mxu0 0.0
    %868 = vmatprep.subr.mxu0 0.0
    %869 = vmatpush2.msra.mxu0 0.0
    %870 = vmatprep.subr.mxu0 0.0
    %871 = vmatpush2.msra.mxu0 0.0
    %872 = vmatprep.subr.mxu0 0.0
    %873 = vmatpush2.msra.mxu0 0.0
    %874 = vmatprep.subr.mxu0 0.0
    %875 = vmatpush2.msra.mxu0 0.0
    %876 = vmatprep.subr.mxu0 0.0
    %877 = vmatpush2.msra.mxu0 0.0
    %878 = vmatprep.subr.mxu0 0.0
    %879 = vmatpush2.msra.mxu0 0.0
    %880 = vmatprep.subr.mxu0 0.0
    %881 = vmatpush2.msra.mxu0 0.0
    %882 = vmatprep.subr.mxu0 0.0
    %883 = vmatpush2.msra.mxu0 0.0
    %884 = vmatprep.subr.mxu0 0.0
    %885 = vmatpush2.msra.mxu0 0.0
    %886 = vmatprep.subr.mxu0 0.0
    %887 = vmatpush2.msra.mxu0 0.0
    %888 = vmatprep.subr.mxu0 0.0
    %889 = vmatpush2.msra.mxu0 0.0
    %890 = vmatprep.subr.mxu0 0.0
    %891 = vmatpush2.msra.mxu0 0.0
    %892 = vmatprep.subr.mxu0 0.0
    %893 = vmatpush2.msra.mxu0 0.0
    %894 = vmatprep.mubr.f32.mxu0 0.0
    %895 = vmatmul.mubr.f32.gmra.mxu0 %v743
    %v896 = vpop.f32.mrf.mxu0
    %v897 = vadd.f32 %v813, %v896
    %v898 = vpop.f32.mrf.mxu0
    %v899 = vadd.f32 %v817, %v898
    %900 = vdwg.mxu0
    %901 = vmatprep.subr.mxu0 %v807
    %902 = vmatpush1.msra.mxu0 %v806
    %903 = vmatprep.subr.mxu0 %v803
    %904 = vmatpush1.msra.mxu0 %v802
    %905 = vmatprep.subr.mxu0 %v799
    %906 = vmatpush1.msra.mxu0 %v798
    %907 = vmatprep.subr.mxu0 %v795
    %908 = vmatpush1.msra.mxu0 %v794
    %909 = vmatprep.subr.mxu0 %v791
    %910 = vmatpush1.msra.mxu0 %v790
    %911 = vmatprep.subr.mxu0 %v787
    %912 = vmatpush1.msra.mxu0 %v786
    %913 = vmatprep.subr.mxu0 %v783
    %914 = vmatpush1.msra.mxu0 %v782
    %915 = vmatprep.subr.mxu0 %v779
    %916 = vmatpush1.msra.mxu0 %v778
    %917 = vmatprep.subr.mxu0 %v775
    %918 = vmatpush1.msra.mxu0 %v774
    %919 = vmatprep.subr.mxu0 %v771
    %920 = vmatpush1.msra.mxu0 %v770
    %921 = vmatprep.subr.mxu0 %v767
    %922 = vmatpush1.msra.mxu0 %v766
    %923 = vmatprep.subr.mxu0 %v763
    %924 = vmatpush1.msra.mxu0 %v762
    %925 = vmatprep.subr.mxu0 %v759
    %926 = vmatpush1.msra.mxu0 %v758
    %927 = vmatprep.subr.mxu0 %v755
    %928 = vmatpush1.msra.mxu0 %v754
    %929 = vmatprep.subr.mxu0 %v751
    %930 = vmatpush1.msra.mxu0 %v750
    %931 = vmatprep.subr.mxu0 %v747
    %932 = vmatpush1.msra.mxu0 %v746
    %933 = vmatprep.subr.mxu0 0.0
    %934 = vmatpush2.msra.mxu0 0.0
    %935 = vmatprep.subr.mxu0 0.0
    %936 = vmatpush2.msra.mxu0 0.0
    %937 = vmatprep.subr.mxu0 0.0
    %938 = vmatpush2.msra.mxu0 0.0
    %939 = vmatprep.subr.mxu0 0.0
    %940 = vmatpush2.msra.mxu0 0.0
    %941 = vmatprep.subr.mxu0 0.0
    %942 = vmatpush2.msra.mxu0 0.0
    %943 = vmatprep.subr.mxu0 0.0
    %944 = vmatpush2.msra.mxu0 0.0
    %945 = vmatprep.subr.mxu0 0.0
    %946 = vmatpush2.msra.mxu0 0.0
    %947 = vmatprep.subr.mxu0 0.0
    %948 = vmatpush2.msra.mxu0 0.0
    %949 = vmatprep.subr.mxu0 0.0
    %950 = vmatpush2.msra.mxu0 0.0
    %951 = vmatprep.subr.mxu0 0.0
    %952 = vmatpush2.msra.mxu0 0.0
    %953 = vmatprep.subr.mxu0 0.0
    %954 = vmatpush2.msra.mxu0 0.0
    %955 = vmatprep.subr.mxu0 0.0
    %956 = vmatpush2.msra.mxu0 0.0
    %957 = vmatprep.subr.mxu0 0.0
    %958 = vmatpush2.msra.mxu0 0.0
    %959 = vmatprep.subr.mxu0 0.0
    %960 = vmatpush2.msra.mxu0 0.0
    %961 = vmatprep.subr.mxu0 0.0
    %962 = vmatpush2.msra.mxu0 0.0
    %963 = vmatprep.subr.mxu0 0.0
    %964 = vmatpush2.msra.mxu0 0.0
    %965 = vmatprep.mubr.f32.mxu0 0.0
    %966 = vmatmul.mubr.f32.gmra.mxu0 %v743
    %v967 = vpop.f32.mrf.mxu0
    %v968 = vadd.f32 %v821, %v967
    %v969 = vpop.f32.mrf.mxu0
    %v970 = vadd.f32 %v825, %v969
    %971 = vdwg.mxu0
    %v972 = vxor.u32 %v897, 2147483648
    %v973 = vmul.f32 %v972, 1.442695
    %v974 = vpow.pop %v973
    %v975 = vadd.f32 %v974, 1.0
    %v976 = vrcp.pop %v975
    %v977 = vmul.f32 1.0, %v976
    %v978 = vxor.u32 %v899, 2147483648
    %v979 = vmul.f32 %v978, 1.442695
    %v980 = vpow.pop %v979
    %v981 = vadd.f32 %v980, 1.0
    %v982 = vrcp.pop %v981
    %v983 = vmul.f32 1.0, %v982
    %v984 = vmul.f32 %v977, %v970
    %v985 = vadd.f32 %v968, %v984
    %v986 = vtanh.pop %v985
    %v987 = vsub.f32 1.0, %v983
    %v988 = vmul.f32 %v987, %v986
    %v989 = vmul.f32 %v983, %v640
    %v990 = vadd.f32 %v988, %v989
    %v991 = vld [vmem:[%s4] sm:$0xff]
    %v992 = vld [vmem:[%s4 + $0x8] sm:$0xff]
    %v993 = vld [vmem:[%s4 + $0x10] sm:$0xff]
    %v994 = vld [vmem:[%s4 + $0x18] sm:$0xff]
    %v995 = vld [vmem:[%s4 + $0x20] sm:$0xff]
    %v996 = vld [vmem:[%s4 + $0x28] sm:$0xff]
    %v997 = vld [vmem:[%s4 + $0x30] sm:$0xff]
    %v998 = vld [vmem:[%s4 + $0x38] sm:$0xff]
    %v999 = vld [vmem:[%s4 + $0x40] sm:$0xff]
    %v1000 = vld [vmem:[%s4 + $0x48] sm:$0xff]
    %v1001 = vld [vmem:[%s4 + $0x50] sm:$0xff]
    %v1002 = vld [vmem:[%s4 + $0x58] sm:$0xff]
    %v1003 = vld [vmem:[%s4 + $0x60] sm:$0xff]
    %v1004 = vld [vmem:[%s4 + $0x68] sm:$0xff]
    %v1005 = vld [vmem:[%s4 + $0x70] sm:$0xff]
    %v1006 = vld [vmem:[%s4 + $0x78] sm:$0xff]
    %v1007 = vld [vmem:[%s5] sm:$0x1]
    %1008 = vmatprep.subr.mxu0 0.0
    %1009 = vmatpush1.msra.mxu0 %v1006
    %1010 = vmatprep.subr.mxu0 0.0
    %1011 = vmatpush1.msra.mxu0 %v1005
    %1012 = vmatprep.subr.mxu0 0.0
    %1013 = vmatpush1.msra.mxu0 %v1004
    %1014 = vmatprep.subr.mxu0 0.0
    %1015 = vmatpush1.msra.mxu0 %v1003
    %1016 = vmatprep.subr.mxu0 0.0
    %1017 = vmatpush1.msra.mxu0 %v1002
    %1018 = vmatprep.subr.mxu0 0.0
    %1019 = vmatpush1.msra.mxu0 %v1001
    %1020 = vmatprep.subr.mxu0 0.0
    %1021 = vmatpush1.msra.mxu0 %v1000
    %1022 = vmatprep.subr.mxu0 0.0
    %1023 = vmatpush1.msra.mxu0 %v999
    %1024 = vmatprep.subr.mxu0 0.0
    %1025 = vmatpush1.msra.mxu0 %v998
    %1026 = vmatprep.subr.mxu0 0.0
    %1027 = vmatpush1.msra.mxu0 %v997
    %1028 = vmatprep.subr.mxu0 0.0
    %1029 = vmatpush1.msra.mxu0 %v996
    %1030 = vmatprep.subr.mxu0 0.0
    %1031 = vmatpush1.msra.mxu0 %v995
    %1032 = vmatprep.subr.mxu0 0.0
    %1033 = vmatpush1.msra.mxu0 %v994
    %1034 = vmatprep.subr.mxu0 0.0
    %1035 = vmatpush1.msra.mxu0 %v993
    %1036 = vmatprep.subr.mxu0 0.0
    %1037 = vmatpush1.msra.mxu0 %v992
    %1038 = vmatprep.subr.mxu0 0.0
    %1039 = vmatpush1.msra.mxu0 %v991
    %1040 = vmatprep.subr.mxu0 0.0
    %1041 = vmatpush2.msra.mxu0 0.0
    %1042 = vmatprep.subr.mxu0 0.0
    %1043 = vmatpush2.msra.mxu0 0.0
    %1044 = vmatprep.subr.mxu0 0.0
    %1045 = vmatpush2.msra.mxu0 0.0
    %1046 = vmatprep.subr.mxu0 0.0
    %1047 = vmatpush2.msra.mxu0 0.0
    %1048 = vmatprep.subr.mxu0 0.0
    %1049 = vmatpush2.msra.mxu0 0.0
    %1050 = vmatprep.subr.mxu0 0.0
    %1051 = vmatpush2.msra.mxu0 0.0
    %1052 = vmatprep.subr.mxu0 0.0
    %1053 = vmatpush2.msra.mxu0 0.0
    %1054 = vmatprep.subr.mxu0 0.0
    %1055 = vmatpush2.msra.mxu0 0.0
    %1056 = vmatprep.subr.mxu0 0.0
    %1057 = vmatpush2.msra.mxu0 0.0
    %1058 = vmatprep.subr.mxu0 0.0
    %1059 = vmatpush2.msra.mxu0 0.0
    %1060 = vmatprep.subr.mxu0 0.0
    %1061 = vmatpush2.msra.mxu0 0.0
    %1062 = vmatprep.subr.mxu0 0.0
    %1063 = vmatpush2.msra.mxu0 0.0
    %1064 = vmatprep.subr.mxu0 0.0
    %1065 = vmatpush2.msra.mxu0 0.0
    %1066 = vmatprep.subr.mxu0 0.0
    %1067 = vmatpush2.msra.mxu0 0.0
    %1068 = vmatprep.subr.mxu0 0.0
    %1069 = vmatpush2.msra.mxu0 0.0
    %1070 = vmatprep.subr.mxu0 0.0
    %1071 = vmatpush2.msra.mxu0 0.0
    %1072 = vmatprep.mubr.f32.mxu0 0.0
    %1073 = vmatmul.mubr.f32.gmra.mxu0 %v990
    %v1074 = vpop.f32.mrf.mxu0
    %v1075 = vadd.f32 %v1007, %v1074
    %v1076 = vpop.f32.mrf.mxu0
    %1077 = vdwg.mxu0
    %v1078 = vsel %vm377, %v1075, -inf
    %1079 = vmax.xlane.f32.xlu0 %v1078
    %v1080 = vpop.xlane.xlu0 %1079
    %v1081 = vsub.f32 %v1075, %v1080
    %v1082 = vmul.f32 %v1081, 1.442695
    %v1083 = vpow.pop %v1082
    %v1084 = vsel %vm377, %v1083, 0.0
    %1085 = vadd.xlane.f32.xlu0 %v1084
    %v1086 = vpop.xlane.xlu0 %1085
    %v1087 = vlog2.pop %v1086
    %v1088 = vmul.f32 %v1087, 0.6931472
    %v1089 = vadd.f32 %v1080, %v1088
    %v1090 = vsub.f32 %v1075, %v1089
    %1091 = vst [vmem:[#allocation5 + $0x2] sm:$0x1] %v1090
    %v1092 = vld [vmem:[%s0 + $0x3] sm:$0x1]
    %v1093 = vadd.f32 %v1092, %v990
    %v1094 = vld [vmem:[#allocation2] sm:$0xff]
    %v1095 = vld [vmem:[#allocation2 + $0x8] sm:$0xff]
    %v1096 = vld [vmem:[#allocation2 + $0x10] sm:$0xff]
    %v1097 = vld [vmem:[#allocation2 + $0x18] sm:$0xff]
    %v1098 = vld [vmem:[#allocation2 + $0x20] sm:$0xff]
    %v1099 = vld [vmem:[#allocation2 + $0x28] sm:$0xff]
    %v1100 = vld [vmem:[#allocation2 + $0x30] sm:$0xff]
    %v1101 = vld [vmem:[#allocation2 + $0x38] sm:$0xff]
    %v1102 = vld [vmem:[#allocation2 + $0x40] sm:$0xff]
    %v1103 = vld [vmem:[#allocation2 + $0x48] sm:$0xff]
    %v1104 = vld [vmem:[#allocation2 + $0x50] sm:$0xff]
    %v1105 = vld [vmem:[#allocation2 + $0x58] sm:$0xff]
    %v1106 = vld [vmem:[#allocation2 + $0x60] sm:$0xff]
    %v1107 = vld [vmem:[#allocation2 + $0x68] sm:$0xff]
    %v1108 = vld [vmem:[#allocation2 + $0x70] sm:$0xff]
    %v1109 = vld [vmem:[#allocation2 + $0x78] sm:$0xff]
    %v1110 = vld [vmem:[#allocation2 + $0x80] sm:$0xff]
    %v1111 = vld [vmem:[#allocation2 + $0x88] sm:$0xff]
    %v1112 = vld [vmem:[#allocation2 + $0x90] sm:$0xff]
    %v1113 = vld [vmem:[#allocation2 + $0x98] sm:$0xff]
    %v1114 = vld [vmem:[#allocation2 + $0xa0] sm:$0xff]
    %v1115 = vld [vmem:[#allocation2 + $0xa8] sm:$0xff]
    %v1116 = vld [vmem:[#allocation2 + $0xb0] sm:$0xff]
    %v1117 = vld [vmem:[#allocation2 + $0xb8] sm:$0xff]
    %v1118 = vld [vmem:[#allocation2 + $0xc0] sm:$0xff]
    %v1119 = vld [vmem:[#allocation2 + $0xc8] sm:$0xff]
    %v1120 = vld [vmem:[#allocation2 + $0xd0] sm:$0xff]
    %v1121 = vld [vmem:[#allocation2 + $0xd8] sm:$0xff]
    %v1122 = vld [vmem:[#allocation2 + $0xe0] sm:$0xff]
    %v1123 = vld [vmem:[#allocation2 + $0xe8] sm:$0xff]
    %v1124 = vld [vmem:[#allocation2 + $0xf0] sm:$0xff]
    %v1125 = vld [vmem:[#allocation2 + $0xf8] sm:$0xff]
    %v1126 = vld [vmem:[#allocation2 + $0x100] sm:$0xff]
    %v1127 = vld [vmem:[#allocation2 + $0x108] sm:$0xff]
    %v1128 = vld [vmem:[#allocation2 + $0x110] sm:$0xff]
    %v1129 = vld [vmem:[#allocation2 + $0x118] sm:$0xff]
    %v1130 = vld [vmem:[#allocation2 + $0x120] sm:$0xff]
    %v1131 = vld [vmem:[#allocation2 + $0x128] sm:$0xff]
    %v1132 = vld [vmem:[#allocation2 + $0x130] sm:$0xff]
    %v1133 = vld [vmem:[#allocation2 + $0x138] sm:$0xff]
    %v1134 = vld [vmem:[#allocation2 + $0x140] sm:$0xff]
    %v1135 = vld [vmem:[#allocation2 + $0x148] sm:$0xff]
    %v1136 = vld [vmem:[#allocation2 + $0x150] sm:$0xff]
    %v1137 = vld [vmem:[#allocation2 + $0x158] sm:$0xff]
    %v1138 = vld [vmem:[#allocation2 + $0x160] sm:$0xff]
    %v1139 = vld [vmem:[#allocation2 + $0x168] sm:$0xff]
    %v1140 = vld [vmem:[#allocation2 + $0x170] sm:$0xff]
    %v1141 = vld [vmem:[#allocation2 + $0x178] sm:$0xff]
    %v1142 = vld [vmem:[#allocation2 + $0x180] sm:$0xff]
    %v1143 = vld [vmem:[#allocation2 + $0x188] sm:$0xff]
    %v1144 = vld [vmem:[#allocation2 + $0x190] sm:$0xff]
    %v1145 = vld [vmem:[#allocation2 + $0x198] sm:$0xff]
    %v1146 = vld [vmem:[#allocation2 + $0x1a0] sm:$0xff]
    %v1147 = vld [vmem:[#allocation2 + $0x1a8] sm:$0xff]
    %v1148 = vld [vmem:[#allocation2 + $0x1b0] sm:$0xff]
    %v1149 = vld [vmem:[#allocation2 + $0x1b8] sm:$0xff]
    %v1150 = vld [vmem:[#allocation2 + $0x1c0] sm:$0xff]
    %v1151 = vld [vmem:[#allocation2 + $0x1c8] sm:$0xff]
    %v1152 = vld [vmem:[#allocation2 + $0x1d0] sm:$0xff]
    %v1153 = vld [vmem:[#allocation2 + $0x1d8] sm:$0xff]
    %v1154 = vld [vmem:[#allocation2 + $0x1e0] sm:$0xff]
    %v1155 = vld [vmem:[#allocation2 + $0x1e8] sm:$0xff]
    %v1156 = vld [vmem:[#allocation2 + $0x1f0] sm:$0xff]
    %v1157 = vld [vmem:[#allocation2 + $0x1f8] sm:$0xff]
    %v1158 = vld [vmem:[%s3] sm:$0xf]
    %v1160 = vlaneseq
    %v1161 = vshrl.u32 %v1160, 7
    %v1162 = vsub.s32 0, %v1161
    %v1163 = vrot.slane %v1158, %v1162
    %v1164 = vlaneseq
    %v1165 = vshrl.u32 %v1164, 7
    %v1166 = vsub.s32 1, %v1165
    %v1167 = vrot.slane %v1158, %v1166
    %v1168 = vlaneseq
    %v1169 = vshrl.u32 %v1168, 7
    %v1170 = vsub.s32 2, %v1169
    %v1171 = vrot.slane %v1158, %v1170
    %v1172 = vlaneseq
    %v1173 = vshrl.u32 %v1172, 7
    %v1174 = vsub.s32 3, %v1173
    %v1175 = vrot.slane %v1158, %v1174
    %1180 = vmatprep.subr.mxu0 %v1155
    %1181 = vmatpush1.msra.mxu0 %v1154
    %1182 = vmatprep.subr.mxu0 %v1151
    %1183 = vmatpush1.msra.mxu0 %v1150
    %1184 = vmatprep.subr.mxu0 %v1147
    %1185 = vmatpush1.msra.mxu0 %v1146
    %1186 = vmatprep.subr.mxu0 %v1143
    %1187 = vmatpush1.msra.mxu0 %v1142
    %1188 = vmatprep.subr.mxu0 %v1139
    %1189 = vmatpush1.msra.mxu0 %v1138
    %1190 = vmatprep.subr.mxu0 %v1135
    %1191 = vmatpush1.msra.mxu0 %v1134
    %1192 = vmatprep.subr.mxu0 %v1131
    %1193 = vmatpush1.msra.mxu0 %v1130
    %1194 = vmatprep.subr.mxu0 %v1127
    %1195 = vmatpush1.msra.mxu0 %v1126
    %1196 = vmatprep.subr.mxu0 %v1123
    %1197 = vmatpush1.msra.mxu0 %v1122
    %1198 = vmatprep.subr.mxu0 %v1119
    %1199 = vmatpush1.msra.mxu0 %v1118
    %1200 = vmatprep.subr.mxu0 %v1115
    %1201 = vmatpush1.msra.mxu0 %v1114
    %1202 = vmatprep.subr.mxu0 %v1111
    %1203 = vmatpush1.msra.mxu0 %v1110
    %1204 = vmatprep.subr.mxu0 %v1107
    %1205 = vmatpush1.msra.mxu0 %v1106
    %1206 = vmatprep.subr.mxu0 %v1103
    %1207 = vmatpush1.msra.mxu0 %v1102
    %1208 = vmatprep.subr.mxu0 %v1099
    %1209 = vmatpush1.msra.mxu0 %v1098
    %1210 = vmatprep.subr.mxu0 %v1095
    %1211 = vmatpush1.msra.mxu0 %v1094
    %1212 = vmatprep.subr.mxu0 0.0
    %1213 = vmatpush2.msra.mxu0 0.0
    %1214 = vmatprep.subr.mxu0 0.0
    %1215 = vmatpush2.msra.mxu0 0.0
    %1216 = vmatprep.subr.mxu0 0.0
    %1217 = vmatpush2.msra.mxu0 0.0
    %1218 = vmatprep.subr.mxu0 0.0
    %1219 = vmatpush2.msra.mxu0 0.0
    %1220 = vmatprep.subr.mxu0 0.0
    %1221 = vmatpush2.msra.mxu0 0.0
    %1222 = vmatprep.subr.mxu0 0.0
    %1223 = vmatpush2.msra.mxu0 0.0
    %1224 = vmatprep.subr.mxu0 0.0
    %1225 = vmatpush2.msra.mxu0 0.0
    %1226 = vmatprep.subr.mxu0 0.0
    %1227 = vmatpush2.msra.mxu0 0.0
    %1228 = vmatprep.subr.mxu0 0.0
    %1229 = vmatpush2.msra.mxu0 0.0
    %1230 = vmatprep.subr.mxu0 0.0
    %1231 = vmatpush2.msra.mxu0 0.0
    %1232 = vmatprep.subr.mxu0 0.0
    %1233 = vmatpush2.msra.mxu0 0.0
    %1234 = vmatprep.subr.mxu0 0.0
    %1235 = vmatpush2.msra.mxu0 0.0
    %1236 = vmatprep.subr.mxu0 0.0
    %1237 = vmatpush2.msra.mxu0 0.0
    %1238 = vmatprep.subr.mxu0 0.0
    %1239 = vmatpush2.msra.mxu0 0.0
    %1240 = vmatprep.subr.mxu0 0.0
    %1241 = vmatpush2.msra.mxu0 0.0
    %1242 = vmatprep.subr.mxu0 0.0
    %1243 = vmatpush2.msra.mxu0 0.0
    %1244 = vmatprep.mubr.f32.mxu0 0.0
    %1245 = vmatmul.mubr.f32.gmra.mxu0 %v1093
    %v1246 = vpop.f32.mrf.mxu0
    %v1247 = vadd.f32 %v1163, %v1246
    %v1248 = vpop.f32.mrf.mxu0
    %v1249 = vadd.f32 %v1167, %v1248
    %1250 = vdwg.mxu0
    %1251 = vmatprep.subr.mxu0 %v1157
    %1252 = vmatpush1.msra.mxu0 %v1156
    %1253 = vmatprep.subr.mxu0 %v1153
    %1254 = vmatpush1.msra.mxu0 %v1152
    %1255 = vmatprep.subr.mxu0 %v1149
    %1256 = vmatpush1.msra.mxu0 %v1148
    %1257 = vmatprep.subr.mxu0 %v1145
    %1258 = vmatpush1.msra.mxu0 %v1144
    %1259 = vmatprep.subr.mxu0 %v1141
    %1260 = vmatpush1.msra.mxu0 %v1140
    %1261 = vmatprep.subr.mxu0 %v1137
    %1262 = vmatpush1.msra.mxu0 %v1136
    %1263 = vmatprep.subr.mxu0 %v1133
    %1264 = vmatpush1.msra.mxu0 %v1132
    %1265 = vmatprep.subr.mxu0 %v1129
    %1266 = vmatpush1.msra.mxu0 %v1128
    %1267 = vmatprep.subr.mxu0 %v1125
    %1268 = vmatpush1.msra.mxu0 %v1124
    %1269 = vmatprep.subr.mxu0 %v1121
    %1270 = vmatpush1.msra.mxu0 %v1120
    %1271 = vmatprep.subr.mxu0 %v1117
    %1272 = vmatpush1.msra.mxu0 %v1116
    %1273 = vmatprep.subr.mxu0 %v1113
    %1274 = vmatpush1.msra.mxu0 %v1112
    %1275 = vmatprep.subr.mxu0 %v1109
    %1276 = vmatpush1.msra.mxu0 %v1108
    %1277 = vmatprep.subr.mxu0 %v1105
    %1278 = vmatpush1.msra.mxu0 %v1104
    %1279 = vmatprep.subr.mxu0 %v1101
    %1280 = vmatpush1.msra.mxu0 %v1100
    %1281 = vmatprep.subr.mxu0 %v1097
    %1282 = vmatpush1.msra.mxu0 %v1096
    %1283 = vmatprep.subr.mxu0 0.0
    %1284 = vmatpush2.msra.mxu0 0.0
    %1285 = vmatprep.subr.mxu0 0.0
    %1286 = vmatpush2.msra.mxu0 0.0
    %1287 = vmatprep.subr.mxu0 0.0
    %1288 = vmatpush2.msra.mxu0 0.0
    %1289 = vmatprep.subr.mxu0 0.0
    %1290 = vmatpush2.msra.mxu0 0.0
    %1291 = vmatprep.subr.mxu0 0.0
    %1292 = vmatpush2.msra.mxu0 0.0
    %1293 = vmatprep.subr.mxu0 0.0
    %1294 = vmatpush2.msra.mxu0 0.0
    %1295 = vmatprep.subr.mxu0 0.0
    %1296 = vmatpush2.msra.mxu0 0.0
    %1297 = vmatprep.subr.mxu0 0.0
    %1298 = vmatpush2.msra.mxu0 0.0
    %1299 = vmatprep.subr.mxu0 0.0
    %1300 = vmatpush2.msra.mxu0 0.0
    %1301 = vmatprep.subr.mxu0 0.0
    %1302 = vmatpush2.msra.mxu0 0.0
    %1303 = vmatprep.subr.mxu0 0.0
    %1304 = vmatpush2.msra.mxu0 0.0
    %1305 = vmatprep.subr.mxu0 0.0
    %1306 = vmatpush2.msra.mxu0 0.0
    %1307 = vmatprep.subr.mxu0 0.0
    %1308 = vmatpush2.msra.mxu0 0.0
    %1309 = vmatprep.subr.mxu0 0.0
    %1310 = vmatpush2.msra.mxu0 0.0
    %1311 = vmatprep.subr.mxu0 0.0
    %1312 = vmatpush2.msra.mxu0 0.0
    %1313 = vmatprep.subr.mxu0 0.0
    %1314 = vmatpush2.msra.mxu0 0.0
    %1315 = vmatprep.mubr.f32.mxu0 0.0
    %1316 = vmatmul.mubr.f32.gmra.mxu0 %v1093
    %v1317 = vpop.f32.mrf.mxu0
    %v1318 = vadd.f32 %v1171, %v1317
    %v1319 = vpop.f32.mrf.mxu0
    %v1320 = vadd.f32 %v1175, %v1319
    %1321 = vdwg.mxu0
    %v1322 = vxor.u32 %v1247, 2147483648
    %v1323 = vmul.f32 %v1322, 1.442695
    %v1324 = vpow.pop %v1323
    %v1325 = vadd.f32 %v1324, 1.0
    %v1326 = vrcp.pop %v1325
    %v1327 = vmul.f32 1.0, %v1326
    %v1328 = vxor.u32 %v1249, 2147483648
    %v1329 = vmul.f32 %v1328, 1.442695
    %v1330 = vpow.pop %v1329
    %v1331 = vadd.f32 %v1330, 1.0
    %v1332 = vrcp.pop %v1331
    %v1333 = vmul.f32 1.0, %v1332
    %v1334 = vmul.f32 %v1327, %v1320
    %v1335 = vadd.f32 %v1318, %v1334
    %v1336 = vtanh.pop %v1335
    %v1337 = vsub.f32 1.0, %v1333
    %v1338 = vmul.f32 %v1337, %v1336
    %v1339 = vmul.f32 %v1333, %v990
    %v1340 = vadd.f32 %v1338, %v1339
    %v1341 = vld [vmem:[%s4] sm:$0xff]
    %v1342 = vld [vmem:[%s4 + $0x8] sm:$0xff]
    %v1343 = vld [vmem:[%s4 + $0x10] sm:$0xff]
    %v1344 = vld [vmem:[%s4 + $0x18] sm:$0xff]
    %v1345 = vld [vmem:[%s4 + $0x20] sm:$0xff]
    %v1346 = vld [vmem:[%s4 + $0x28] sm:$0xff]
    %v1347 = vld [vmem:[%s4 + $0x30] sm:$0xff]
    %v1348 = vld [vmem:[%s4 + $0x38] sm:$0xff]
    %v1349 = vld [vmem:[%s4 + $0x40] sm:$0xff]
    %v1350 = vld [vmem:[%s4 + $0x48] sm:$0xff]
    %v1351 = vld [vmem:[%s4 + $0x50] sm:$0xff]
    %v1352 = vld [vmem:[%s4 + $0x58] sm:$0xff]
    %v1353 = vld [vmem:[%s4 + $0x60] sm:$0xff]
    %v1354 = vld [vmem:[%s4 + $0x68] sm:$0xff]
    %v1355 = vld [vmem:[%s4 + $0x70] sm:$0xff]
    %v1356 = vld [vmem:[%s4 + $0x78] sm:$0xff]
    %v1357 = vld [vmem:[%s5] sm:$0x1]
    %1358 = vmatprep.subr.mxu0 0.0
    %1359 = vmatpush1.msra.mxu0 %v1356
    %1360 = vmatprep.subr.mxu0 0.0
    %1361 = vmatpush1.msra.mxu0 %v1355
    %1362 = vmatprep.subr.mxu0 0.0
    %1363 = vmatpush1.msra.mxu0 %v1354
    %1364 = vmatprep.subr.mxu0 0.0
    %1365 = vmatpush1.msra.mxu0 %v1353
    %1366 = vmatprep.subr.mxu0 0.0
    %1367 = vmatpush1.msra.mxu0 %v1352
    %1368 = vmatprep.subr.mxu0 0.0
    %1369 = vmatpush1.msra.mxu0 %v1351
    %1370 = vmatprep.subr.mxu0 0.0
    %1371 = vmatpush1.msra.mxu0 %v1350
    %1372 = vmatprep.subr.mxu0 0.0
    %1373 = vmatpush1.msra.mxu0 %v1349
    %1374 = vmatprep.subr.mxu0 0.0
    %1375 = vmatpush1.msra.mxu0 %v1348
    %1376 = vmatprep.subr.mxu0 0.0
    %1377 = vmatpush1.msra.mxu0 %v1347
    %1378 = vmatprep.subr.mxu0 0.0
    %1379 = vmatpush1.msra.mxu0 %v1346
    %1380 = vmatprep.subr.mxu0 0.0
    %1381 = vmatpush1.msra.mxu0 %v1345
    %1382 = vmatprep.subr.mxu0 0.0
    %1383 = vmatpush1.msra.mxu0 %v1344
    %1384 = vmatprep.subr.mxu0 0.0
    %1385 = vmatpush1.msra.mxu0 %v1343
    %1386 = vmatprep.subr.mxu0 0.0
    %1387 = vmatpush1.msra.mxu0 %v1342
    %1388 = vmatprep.subr.mxu0 0.0
    %1389 = vmatpush1.msra.mxu0 %v1341
    %1390 = vmatprep.subr.mxu0 0.0
    %1391 = vmatpush2.msra.mxu0 0.0
    %1392 = vmatprep.subr.mxu0 0.0
    %1393 = vmatpush2.msra.mxu0 0.0
    %1394 = vmatprep.subr.mxu0 0.0
    %1395 = vmatpush2.msra.mxu0 0.0
    %1396 = vmatprep.subr.mxu0 0.0
    %1397 = vmatpush2.msra.mxu0 0.0
    %1398 = vmatprep.subr.mxu0 0.0
    %1399 = vmatpush2.msra.mxu0 0.0
    %1400 = vmatprep.subr.mxu0 0.0
    %1401 = vmatpush2.msra.mxu0 0.0
    %1402 = vmatprep.subr.mxu0 0.0
    %1403 = vmatpush2.msra.mxu0 0.0
    %1404 = vmatprep.subr.mxu0 0.0
    %1405 = vmatpush2.msra.mxu0 0.0
    %1406 = vmatprep.subr.mxu0 0.0
    %1407 = vmatpush2.msra.mxu0 0.0
    %1408 = vmatprep.subr.mxu0 0.0
    %1409 = vmatpush2.msra.mxu0 0.0
    %1410 = vmatprep.subr.mxu0 0.0
    %1411 = vmatpush2.msra.mxu0 0.0
    %1412 = vmatprep.subr.mxu0 0.0
    %1413 = vmatpush2.msra.mxu0 0.0
    %1414 = vmatprep.subr.mxu0 0.0
    %1415 = vmatpush2.msra.mxu0 0.0
    %1416 = vmatprep.subr.mxu0 0.0
    %1417 = vmatpush2.msra.mxu0 0.0
    %1418 = vmatprep.subr.mxu0 0.0
    %1419 = vmatpush2.msra.mxu0 0.0
    %1420 = vmatprep.subr.mxu0 0.0
    %1421 = vmatpush2.msra.mxu0 0.0
    %1422 = vmatprep.mubr.f32.mxu0 0.0
    %1423 = vmatmul.mubr.f32.gmra.mxu0 %v1340
    %v1424 = vpop.f32.mrf.mxu0
    %v1425 = vadd.f32 %v1357, %v1424
    %v1426 = vpop.f32.mrf.mxu0
    %1427 = vdwg.mxu0
    %v1428 = vsel %vm377, %v1425, -inf
    %1429 = vmax.xlane.f32.xlu0 %v1428
    %v1430 = vpop.xlane.xlu0 %1429
    %v1431 = vsub.f32 %v1425, %v1430
    %v1432 = vmul.f32 %v1431, 1.442695
    %v1433 = vpow.pop %v1432
    %v1434 = vsel %vm377, %v1433, 0.0
    %1435 = vadd.xlane.f32.xlu0 %v1434
    %v1436 = vpop.xlane.xlu0 %1435
    %v1437 = vlog2.pop %v1436
    %v1438 = vmul.f32 %v1437, 0.6931472
    %v1439 = vadd.f32 %v1430, %v1438
    %v1440 = vsub.f32 %v1425, %v1439
    %1441 = vst [vmem:[#allocation5 + $0x3] sm:$0x1] %v1440
    %v1442 = vld [vmem:[%s0 + $0x4] sm:$0x1]
    %v1443 = vadd.f32 %v1442, %v1340
    %v1444 = vld [vmem:[#allocation2] sm:$0xff]
    %v1445 = vld [vmem:[#allocation2 + $0x8] sm:$0xff]
    %v1446 = vld [vmem:[#allocation2 + $0x10] sm:$0xff]
    %v1447 = vld [vmem:[#allocation2 + $0x18] sm:$0xff]
    %v1448 = vld [vmem:[#allocation2 + $0x20] sm:$0xff]
    %v1449 = vld [vmem:[#allocation2 + $0x28] sm:$0xff]
    %v1450 = vld [vmem:[#allocation2 + $0x30] sm:$0xff]
    %v1451 = vld [vmem:[#allocation2 + $0x38] sm:$0xff]
    %v1452 = vld [vmem:[#allocation2 + $0x40] sm:$0xff]
    %v1453 = vld [vmem:[#allocation2 + $0x48] sm:$0xff]
    %v1454 = vld [vmem:[#allocation2 + $0x50] sm:$0xff]
    %v1455 = vld [vmem:[#allocation2 + $0x58] sm:$0xff]
    %v1456 = vld [vmem:[#allocation2 + $0x60] sm:$0xff]
    %v1457 = vld [vmem:[#allocation2 + $0x68] sm:$0xff]
    %v1458 = vld [vmem:[#allocation2 + $0x70] sm:$0xff]
    %v1459 = vld [vmem:[#allocation2 + $0x78] sm:$0xff]
    %v1460 = vld [vmem:[#allocation2 + $0x80] sm:$0xff]
    %v1461 = vld [vmem:[#allocation2 + $0x88] sm:$0xff]
    %v1462 = vld [vmem:[#allocation2 + $0x90] sm:$0xff]
    %v1463 = vld [vmem:[#allocation2 + $0x98] sm:$0xff]
    %v1464 = vld [vmem:[#allocation2 + $0xa0] sm:$0xff]
    %v1465 = vld [vmem:[#allocation2 + $0xa8] sm:$0xff]
    %v1466 = vld [vmem:[#allocation2 + $0xb0] sm:$0xff]
    %v1467 = vld [vmem:[#allocation2 + $0xb8] sm:$0xff]
    %v1468 = vld [vmem:[#allocation2 + $0xc0] sm:$0xff]
    %v1469 = vld [vmem:[#allocation2 + $0xc8] sm:$0xff]
    %v1470 = vld [vmem:[#allocation2 + $0xd0] sm:$0xff]
    %v1471 = vld [vmem:[#allocation2 + $0xd8] sm:$0xff]
    %v1472 = vld [vmem:[#allocation2 + $0xe0] sm:$0xff]
    %v1473 = vld [vmem:[#allocation2 + $0xe8] sm:$0xff]
    %v1474 = vld [vmem:[#allocation2 + $0xf0] sm:$0xff]
    %v1475 = vld [vmem:[#allocation2 + $0xf8] sm:$0xff]
    %v1476 = vld [vmem:[#allocation2 + $0x100] sm:$0xff]
    %v1477 = vld [vmem:[#allocation2 + $0x108] sm:$0xff]
    %v1478 = vld [vmem:[#allocation2 + $0x110] sm:$0xff]
    %v1479 = vld [vmem:[#allocation2 + $0x118] sm:$0xff]
    %v1480 = vld [vmem:[#allocation2 + $0x120] sm:$0xff]
    %v1481 = vld [vmem:[#allocation2 + $0x128] sm:$0xff]
    %v1482 = vld [vmem:[#allocation2 + $0x130] sm:$0xff]
    %v1483 = vld [vmem:[#allocation2 + $0x138] sm:$0xff]
    %v1484 = vld [vmem:[#allocation2 + $0x140] sm:$0xff]
    %v1485 = vld [vmem:[#allocation2 + $0x148] sm:$0xff]
    %v1486 = vld [vmem:[#allocation2 + $0x150] sm:$0xff]
    %v1487 = vld [vmem:[#allocation2 + $0x158] sm:$0xff]
    %v1488 = vld [vmem:[#allocation2 + $0x160] sm:$0xff]
    %v1489 = vld [vmem:[#allocation2 + $0x168] sm:$0xff]
    %v1490 = vld [vmem:[#allocation2 + $0x170] sm:$0xff]
    %v1491 = vld [vmem:[#allocation2 + $0x178] sm:$0xff]
    %v1492 = vld [vmem:[#allocation2 + $0x180] sm:$0xff]
    %v1493 = vld [vmem:[#allocation2 + $0x188] sm:$0xff]
    %v1494 = vld [vmem:[#allocation2 + $0x190] sm:$0xff]
    %v1495 = vld [vmem:[#allocation2 + $0x198] sm:$0xff]
    %v1496 = vld [vmem:[#allocation2 + $0x1a0] sm:$0xff]
    %v1497 = vld [vmem:[#allocation2 + $0x1a8] sm:$0xff]
    %v1498 = vld [vmem:[#allocation2 + $0x1b0] sm:$0xff]
    %v1499 = vld [vmem:[#allocation2 + $0x1b8] sm:$0xff]
    %v1500 = vld [vmem:[#allocation2 + $0x1c0] sm:$0xff]
    %v1501 = vld [vmem:[#allocation2 + $0x1c8] sm:$0xff]
    %v1502 = vld [vmem:[#allocation2 + $0x1d0] sm:$0xff]
    %v1503 = vld [vmem:[#allocation2 + $0x1d8] sm:$0xff]
    %v1504 = vld [vmem:[#allocation2 + $0x1e0] sm:$0xff]
    %v1505 = vld [vmem:[#allocation2 + $0x1e8] sm:$0xff]
    %v1506 = vld [vmem:[#allocation2 + $0x1f0] sm:$0xff]
    %v1507 = vld [vmem:[#allocation2 + $0x1f8] sm:$0xff]
    %v1508 = vld [vmem:[%s3] sm:$0xf]
    %v1510 = vlaneseq
    %v1511 = vshrl.u32 %v1510, 7
    %v1512 = vsub.s32 0, %v1511
    %v1513 = vrot.slane %v1508, %v1512
    %v1514 = vlaneseq
    %v1515 = vshrl.u32 %v1514, 7
    %v1516 = vsub.s32 1, %v1515
    %v1517 = vrot.slane %v1508, %v1516
    %v1518 = vlaneseq
    %v1519 = vshrl.u32 %v1518, 7
    %v1520 = vsub.s32 2, %v1519
    %v1521 = vrot.slane %v1508, %v1520
    %v1522 = vlaneseq
    %v1523 = vshrl.u32 %v1522, 7
    %v1524 = vsub.s32 3, %v1523
    %v1525 = vrot.slane %v1508, %v1524
    %1530 = vmatprep.subr.mxu0 %v1505
    %1531 = vmatpush1.msra.mxu0 %v1504
    %1532 = vmatprep.subr.mxu0 %v1501
    %1533 = vmatpush1.msra.mxu0 %v1500
    %1534 = vmatprep.subr.mxu0 %v1497
    %1535 = vmatpush1.msra.mxu0 %v1496
    %1536 = vmatprep.subr.mxu0 %v1493
    %1537 = vmatpush1.msra.mxu0 %v1492
    %1538 = vmatprep.subr.mxu0 %v1489
    %1539 = vmatpush1.msra.mxu0 %v1488
    %1540 = vmatprep.subr.mxu0 %v1485
    %1541 = vmatpush1.msra.mxu0 %v1484
    %1542 = vmatprep.subr.mxu0 %v1481
    %1543 = vmatpush1.msra.mxu0 %v1480
    %1544 = vmatprep.subr.mxu0 %v1477
    %1545 = vmatpush1.msra.mxu0 %v1476
    %1546 = vmatprep.subr.mxu0 %v1473
    %1547 = vmatpush1.msra.mxu0 %v1472
    %1548 = vmatprep.subr.mxu0 %v1469
    %1549 = vmatpush1.msra.mxu0 %v1468
    %1550 = vmatprep.subr.mxu0 %v1465
    %1551 = vmatpush1.msra.mxu0 %v1464
    %1552 = vmatprep.subr.mxu0 %v1461
    %1553 = vmatpush1.msra.mxu0 %v1460
    %1554 = vmatprep.subr.mxu0 %v1457
    %1555 = vmatpush1.msra.mxu0 %v1456
    %1556 = vmatprep.subr.mxu0 %v1453
    %1557 = vmatpush1.msra.mxu0 %v1452
    %1558 = vmatprep.subr.mxu0 %v1449
    %1559 = vmatpush1.msra.mxu0 %v1448
    %1560 = vmatprep.subr.mxu0 %v1445
    %1561 = vmatpush1.msra.mxu0 %v1444
    %1562 = vmatprep.subr.mxu0 0.0
    %1563 = vmatpush2.msra.mxu0 0.0
    %1564 = vmatprep.subr.mxu0 0.0
    %1565 = vmatpush2.msra.mxu0 0.0
    %1566 = vmatprep.subr.mxu0 0.0
    %1567 = vmatpush2.msra.mxu0 0.0
    %1568 = vmatprep.subr.mxu0 0.0
    %1569 = vmatpush2.msra.mxu0 0.0
    %1570 = vmatprep.subr.mxu0 0.0
    %1571 = vmatpush2.msra.mxu0 0.0
    %1572 = vmatprep.subr.mxu0 0.0
    %1573 = vmatpush2.msra.mxu0 0.0
    %1574 = vmatprep.subr.mxu0 0.0
    %1575 = vmatpush2.msra.mxu0 0.0
    %1576 = vmatprep.subr.mxu0 0.0
    %1577 = vmatpush2.msra.mxu0 0.0
    %1578 = vmatprep.subr.mxu0 0.0
    %1579 = vmatpush2.msra.mxu0 0.0
    %1580 = vmatprep.subr.mxu0 0.0
    %1581 = vmatpush2.msra.mxu0 0.0
    %1582 = vmatprep.subr.mxu0 0.0
    %1583 = vmatpush2.msra.mxu0 0.0
    %1584 = vmatprep.subr.mxu0 0.0
    %1585 = vmatpush2.msra.mxu0 0.0
    %1586 = vmatprep.subr.mxu0 0.0
    %1587 = vmatpush2.msra.mxu0 0.0
    %1588 = vmatprep.subr.mxu0 0.0
    %1589 = vmatpush2.msra.mxu0 0.0
    %1590 = vmatprep.subr.mxu0 0.0
    %1591 = vmatpush2.msra.mxu0 0.0
    %1592 = vmatprep.subr.mxu0 0.0
    %1593 = vmatpush2.msra.mxu0 0.0
    %1594 = vmatprep.mubr.f32.mxu0 0.0
    %1595 = vmatmul.mubr.f32.gmra.mxu0 %v1443
    %v1596 = vpop.f32.mrf.mxu0
    %v1597 = vadd.f32 %v1513, %v1596
    %v1598 = vpop.f32.mrf.mxu0
    %v1599 = vadd.f32 %v1517, %v1598
    %1600 = vdwg.mxu0
    %1601 = vmatprep.subr.mxu0 %v1507
    %1602 = vmatpush1.msra.mxu0 %v1506
    %1603 = vmatprep.subr.mxu0 %v1503
    %1604 = vmatpush1.msra.mxu0 %v1502
    %1605 = vmatprep.subr.mxu0 %v1499
    %1606 = vmatpush1.msra.mxu0 %v1498
    %1607 = vmatprep.subr.mxu0 %v1495
    %1608 = vmatpush1.msra.mxu0 %v1494
    %1609 = vmatprep.subr.mxu0 %v1491
    %1610 = vmatpush1.msra.mxu0 %v1490
    %1611 = vmatprep.subr.mxu0 %v1487
    %1612 = vmatpush1.msra.mxu0 %v1486
    %1613 = vmatprep.subr.mxu0 %v1483
    %1614 = vmatpush1.msra.mxu0 %v1482
    %1615 = vmatprep.subr.mxu0 %v1479
    %1616 = vmatpush1.msra.mxu0 %v1478
    %1617 = vmatprep.subr.mxu0 %v1475
    %1618 = vmatpush1.msra.mxu0 %v1474
    %1619 = vmatprep.subr.mxu0 %v1471
    %1620 = vmatpush1.msra.mxu0 %v1470
    %1621 = vmatprep.subr.mxu0 %v1467
    %1622 = vmatpush1.msra.mxu0 %v1466
    %1623 = vmatprep.subr.mxu0 %v1463
    %1624 = vmatpush1.msra.mxu0 %v1462
    %1625 = vmatprep.subr.mxu0 %v1459
    %1626 = vmatpush1.msra.mxu0 %v1458
    %1627 = vmatprep.subr.mxu0 %v1455
    %1628 = vmatpush1.msra.mxu0 %v1454
    %1629 = vmatprep.subr.mxu0 %v1451
    %1630 = vmatpush1.msra.mxu0 %v1450
    %1631 = vmatprep.subr.mxu0 %v1447
    %1632 = vmatpush1.msra.mxu0 %v1446
    %1633 = vmatprep.subr.mxu0 0.0
    %1634 = vmatpush2.msra.mxu0 0.0
    %1635 = vmatprep.subr.mxu0 0.0
    %1636 = vmatpush2.msra.mxu0 0.0
    %1637 = vmatprep.subr.mxu0 0.0
    %1638 = vmatpush2.msra.mxu0 0.0
    %1639 = vmatprep.subr.mxu0 0.0
    %1640 = vmatpush2.msra.mxu0 0.0
    %1641 = vmatprep.subr.mxu0 0.0
    %1642 = vmatpush2.msra.mxu0 0.0
    %1643 = vmatprep.subr.mxu0 0.0
    %1644 = vmatpush2.msra.mxu0 0.0
    %1645 = vmatprep.subr.mxu0 0.0
    %1646 = vmatpush2.msra.mxu0 0.0
    %1647 = vmatprep.subr.mxu0 0.0
    %1648 = vmatpush2.msra.mxu0 0.0
    %1649 = vmatprep.subr.mxu0 0.0
    %1650 = vmatpush2.msra.mxu0 0.0
    %1651 = vmatprep.subr.mxu0 0.0
    %1652 = vmatpush2.msra.mxu0 0.0
    %1653 = vmatprep.subr.mxu0 0.0
    %1654 = vmatpush2.msra.mxu0 0.0
    %1655 = vmatprep.subr.mxu0 0.0
    %1656 = vmatpush2.msra.mxu0 0.0
    %1657 = vmatprep.subr.mxu0 0.0
    %1658 = vmatpush2.msra.mxu0 0.0
    %1659 = vmatprep.subr.mxu0 0.0
    %1660 = vmatpush2.msra.mxu0 0.0
    %1661 = vmatprep.subr.mxu0 0.0
    %1662 = vmatpush2.msra.mxu0 0.0
    %1663 = vmatprep.subr.mxu0 0.0
    %1664 = vmatpush2.msra.mxu0 0.0
    %1665 = vmatprep.mubr.f32.mxu0 0.0
    %1666 = vmatmul.mubr.f32.gmra.mxu0 %v1443
    %v1667 = vpop.f32.mrf.mxu0
    %v1668 = vadd.f32 %v1521, %v1667
    %v1669 = vpop.f32.mrf.mxu0
    %v1670 = vadd.f32 %v1525, %v1669
    %1671 = vdwg.mxu0
    %v1672 = vxor.u32 %v1597, 2147483648
    %v1673 = vmul.f32 %v1672, 1.442695
    %v1674 = vpow.pop %v1673
    %v1675 = vadd.f32 %v1674, 1.0
    %v1676 = vrcp.pop %v1675
    %v1677 = vmul.f32 1.0, %v1676
    %v1678 = vxor.u32 %v1599, 2147483648
    %v1679 = vmul.f32 %v1678, 1.442695
    %v1680 = vpow.pop %v1679
    %v1681 = vadd.f32 %v1680, 1.0
    %v1682 = vrcp.pop %v1681
    %v1683 = vmul.f32 1.0, %v1682
    %v1684 = vmul.f32 %v1677, %v1670
    %v1685 = vadd.f32 %v1668, %v1684
    %v1686 = vtanh.pop %v1685
    %v1687 = vsub.f32 1.0, %v1683
    %v1688 = vmul.f32 %v1687, %v1686
    %v1689 = vmul.f32 %v1683, %v1340
    %v1690 = vadd.f32 %v1688, %v1689
    %v1691 = vld [vmem:[%s4] sm:$0xff]
    %v1692 = vld [vmem:[%s4 + $0x8] sm:$0xff]
    %v1693 = vld [vmem:[%s4 + $0x10] sm:$0xff]
    %v1694 = vld [vmem:[%s4 + $0x18] sm:$0xff]
    %v1695 = vld [vmem:[%s4 + $0x20] sm:$0xff]
    %v1696 = vld [vmem:[%s4 + $0x28] sm:$0xff]
    %v1697 = vld [vmem:[%s4 + $0x30] sm:$0xff]
    %v1698 = vld [vmem:[%s4 + $0x38] sm:$0xff]
    %v1699 = vld [vmem:[%s4 + $0x40] sm:$0xff]
    %v1700 = vld [vmem:[%s4 + $0x48] sm:$0xff]
    %v1701 = vld [vmem:[%s4 + $0x50] sm:$0xff]
    %v1702 = vld [vmem:[%s4 + $0x58] sm:$0xff]
    %v1703 = vld [vmem:[%s4 + $0x60] sm:$0xff]
    %v1704 = vld [vmem:[%s4 + $0x68] sm:$0xff]
    %v1705 = vld [vmem:[%s4 + $0x70] sm:$0xff]
    %v1706 = vld [vmem:[%s4 + $0x78] sm:$0xff]
    %v1707 = vld [vmem:[%s5] sm:$0x1]
    %1708 = vmatprep.subr.mxu0 0.0
    %1709 = vmatpush1.msra.mxu0 %v1706
    %1710 = vmatprep.subr.mxu0 0.0
    %1711 = vmatpush1.msra.mxu0 %v1705
    %1712 = vmatprep.subr.mxu0 0.0
    %1713 = vmatpush1.msra.mxu0 %v1704
    %1714 = vmatprep.subr.mxu0 0.0
    %1715 = vmatpush1.msra.mxu0 %v1703
    %1716 = vmatprep.subr.mxu0 0.0
    %1717 = vmatpush1.msra.mxu0 %v1702
    %1718 = vmatprep.subr.mxu0 0.0
    %1719 = vmatpush1.msra.mxu0 %v1701
    %1720 = vmatprep.subr.mxu0 0.0
    %1721 = vmatpush1.msra.mxu0 %v1700
    %1722 = vmatprep.subr.mxu0 0.0
    %1723 = vmatpush1.msra.mxu0 %v1699
    %1724 = vmatprep.subr.mxu0 0.0
    %1725 = vmatpush1.msra.mxu0 %v1698
    %1726 = vmatprep.subr.mxu0 0.0
    %1727 = vmatpush1.msra.mxu0 %v1697
    %1728 = vmatprep.subr.mxu0 0.0
    %1729 = vmatpush1.msra.mxu0 %v1696
    %1730 = vmatprep.subr.mxu0 0.0
    %1731 = vmatpush1.msra.mxu0 %v1695
    %1732 = vmatprep.subr.mxu0 0.0
    %1733 = vmatpush1.msra.mxu0 %v1694
    %1734 = vmatprep.subr.mxu0 0.0
    %1735 = vmatpush1.msra.mxu0 %v1693
    %1736 = vmatprep.subr.mxu0 0.0
    %1737 = vmatpush1.msra.mxu0 %v1692
    %1738 = vmatprep.subr.mxu0 0.0
    %1739 = vmatpush1.msra.mxu0 %v1691
    %1740 = vmatprep.subr.mxu0 0.0
    %1741 = vmatpush2.msra.mxu0 0.0
    %1742 = vmatprep.subr.mxu0 0.0
    %1743 = vmatpush2.msra.mxu0 0.0
    %1744 = vmatprep.subr.mxu0 0.0
    %1745 = vmatpush2.msra.mxu0 0.0
    %1746 = vmatprep.subr.mxu0 0.0
    %1747 = vmatpush2.msra.mxu0 0.0
    %1748 = vmatprep.subr.mxu0 0.0
    %1749 = vmatpush2.msra.mxu0 0.0
    %1750 = vmatprep.subr.mxu0 0.0
    %1751 = vmatpush2.msra.mxu0 0.0
    %1752 = vmatprep.subr.mxu0 0.0
    %1753 = vmatpush2.msra.mxu0 0.0
    %1754 = vmatprep.subr.mxu0 0.0
    %1755 = vmatpush2.msra.mxu0 0.0
    %1756 = vmatprep.subr.mxu0 0.0
    %1757 = vmatpush2.msra.mxu0 0.0
    %1758 = vmatprep.subr.mxu0 0.0
    %1759 = vmatpush2.msra.mxu0 0.0
    %1760 = vmatprep.subr.mxu0 0.0
    %1761 = vmatpush2.msra.mxu0 0.0
    %1762 = vmatprep.subr.mxu0 0.0
    %1763 = vmatpush2.msra.mxu0 0.0
    %1764 = vmatprep.subr.mxu0 0.0
    %1765 = vmatpush2.msra.mxu0 0.0
    %1766 = vmatprep.subr.mxu0 0.0
    %1767 = vmatpush2.msra.mxu0 0.0
    %1768 = vmatprep.subr.mxu0 0.0
    %1769 = vmatpush2.msra.mxu0 0.0
    %1770 = vmatprep.subr.mxu0 0.0
    %1771 = vmatpush2.msra.mxu0 0.0
    %1772 = vmatprep.mubr.f32.mxu0 0.0
    %1773 = vmatmul.mubr.f32.gmra.mxu0 %v1690
    %v1774 = vpop.f32.mrf.mxu0
    %v1775 = vadd.f32 %v1707, %v1774
    %v1776 = vpop.f32.mrf.mxu0
    %1777 = vdwg.mxu0
    %v1778 = vsel %vm377, %v1775, -inf
    %1779 = vmax.xlane.f32.xlu0 %v1778
    %v1780 = vpop.xlane.xlu0 %1779
    %v1781 = vsub.f32 %v1775, %v1780
    %v1782 = vmul.f32 %v1781, 1.442695
    %v1783 = vpow.pop %v1782
    %v1784 = vsel %vm377, %v1783, 0.0
    %1785 = vadd.xlane.f32.xlu0 %v1784
    %v1786 = vpop.xlane.xlu0 %1785
    %v1787 = vlog2.pop %v1786
    %v1788 = vmul.f32 %v1787, 0.6931472
    %v1789 = vadd.f32 %v1780, %v1788
    %v1790 = vsub.f32 %v1775, %v1789
    %1791 = vst [vmem:[#allocation5 + $0x4] sm:$0x1] %v1790
    %v1792 = vld [vmem:[%s0 + $0x5] sm:$0x1]
    %v1793 = vadd.f32 %v1792, %v1690
    %v1794 = vld [vmem:[#allocation2] sm:$0xff]
    %v1795 = vld [vmem:[#allocation2 + $0x8] sm:$0xff]
    %v1796 = vld [vmem:[#allocation2 + $0x10] sm:$0xff]
    %v1797 = vld [vmem:[#allocation2 + $0x18] sm:$0xff]
    %v1798 = vld [vmem:[#allocation2 + $0x20] sm:$0xff]
    %v1799 = vld [vmem:[#allocation2 + $0x28] sm:$0xff]
    %v1800 = vld [vmem:[#allocation2 + $0x30] sm:$0xff]
    %v1801 = vld [vmem:[#allocation2 + $0x38] sm:$0xff]
    %v1802 = vld [vmem:[#allocation2 + $0x40] sm:$0xff]
    %v1803 = vld [vmem:[#allocation2 + $0x48] sm:$0xff]
    %v1804 = vld [vmem:[#allocation2 + $0x50] sm:$0xff]
    %v1805 = vld [vmem:[#allocation2 + $0x58] sm:$0xff]
    %v1806 = vld [vmem:[#allocation2 + $0x60] sm:$0xff]
    %v1807 = vld [vmem:[#allocation2 + $0x68] sm:$0xff]
    %v1808 = vld [vmem:[#allocation2 + $0x70] sm:$0xff]
    %v1809 = vld [vmem:[#allocation2 + $0x78] sm:$0xff]
    %v1810 = vld [vmem:[#allocation2 + $0x80] sm:$0xff]
    %v1811 = vld [vmem:[#allocation2 + $0x88] sm:$0xff]
    %v1812 = vld [vmem:[#allocation2 + $0x90] sm:$0xff]
    %v1813 = vld [vmem:[#allocation2 + $0x98] sm:$0xff]
    %v1814 = vld [vmem:[#allocation2 + $0xa0] sm:$0xff]
    %v1815 = vld [vmem:[#allocation2 + $0xa8] sm:$0xff]
    %v1816 = vld [vmem:[#allocation2 + $0xb0] sm:$0xff]
    %v1817 = vld [vmem:[#allocation2 + $0xb8] sm:$0xff]
    %v1818 = vld [vmem:[#allocation2 + $0xc0] sm:$0xff]
    %v1819 = vld [vmem:[#allocation2 + $0xc8] sm:$0xff]
    %v1820 = vld [vmem:[#allocation2 + $0xd0] sm:$0xff]
    %v1821 = vld [vmem:[#allocation2 + $0xd8] sm:$0xff]
    %v1822 = vld [vmem:[#allocation2 + $0xe0] sm:$0xff]
    %v1823 = vld [vmem:[#allocation2 + $0xe8] sm:$0xff]
    %v1824 = vld [vmem:[#allocation2 + $0xf0] sm:$0xff]
    %v1825 = vld [vmem:[#allocation2 + $0xf8] sm:$0xff]
    %v1826 = vld [vmem:[#allocation2 + $0x100] sm:$0xff]
    %v1827 = vld [vmem:[#allocation2 + $0x108] sm:$0xff]
    %v1828 = vld [vmem:[#allocation2 + $0x110] sm:$0xff]
    %v1829 = vld [vmem:[#allocation2 + $0x118] sm:$0xff]
    %v1830 = vld [vmem:[#allocation2 + $0x120] sm:$0xff]
    %v1831 = vld [vmem:[#allocation2 + $0x128] sm:$0xff]
    %v1832 = vld [vmem:[#allocation2 + $0x130] sm:$0xff]
    %v1833 = vld [vmem:[#allocation2 + $0x138] sm:$0xff]
    %v1834 = vld [vmem:[#allocation2 + $0x140] sm:$0xff]
    %v1835 = vld [vmem:[#allocation2 + $0x148] sm:$0xff]
    %v1836 = vld [vmem:[#allocation2 + $0x150] sm:$0xff]
    %v1837 = vld [vmem:[#allocation2 + $0x158] sm:$0xff]
    %v1838 = vld [vmem:[#allocation2 + $0x160] sm:$0xff]
    %v1839 = vld [vmem:[#allocation2 + $0x168] sm:$0xff]
    %v1840 = vld [vmem:[#allocation2 + $0x170] sm:$0xff]
    %v1841 = vld [vmem:[#allocation2 + $0x178] sm:$0xff]
    %v1842 = vld [vmem:[#allocation2 + $0x180] sm:$0xff]
    %v1843 = vld [vmem:[#allocation2 + $0x188] sm:$0xff]
    %v1844 = vld [vmem:[#allocation2 + $0x190] sm:$0xff]
    %v1845 = vld [vmem:[#allocation2 + $0x198] sm:$0xff]
    %v1846 = vld [vmem:[#allocation2 + $0x1a0] sm:$0xff]
    %v1847 = vld [vmem:[#allocation2 + $0x1a8] sm:$0xff]
    %v1848 = vld [vmem:[#allocation2 + $0x1b0] sm:$0xff]
    %v1849 = vld [vmem:[#allocation2 + $0x1b8] sm:$0xff]
    %v1850 = vld [vmem:[#allocation2 + $0x1c0] sm:$0xff]
    %v1851 = vld [vmem:[#allocation2 + $0x1c8] sm:$0xff]
    %v1852 = vld [vmem:[#allocation2 + $0x1d0] sm:$0xff]
    %v1853 = vld [vmem:[#allocation2 + $0x1d8] sm:$0xff]
    %v1854 = vld [vmem:[#allocation2 + $0x1e0] sm:$0xff]
    %v1855 = vld [vmem:[#allocation2 + $0x1e8] sm:$0xff]
    %v1856 = vld [vmem:[#allocation2 + $0x1f0] sm:$0xff]
    %v1857 = vld [vmem:[#allocation2 + $0x1f8] sm:$0xff]
    %v1858 = vld [vmem:[%s3] sm:$0xf]
    %v1860 = vlaneseq
    %v1861 = vshrl.u32 %v1860, 7
    %v1862 = vsub.s32 0, %v1861
    %v1863 = vrot.slane %v1858, %v1862
    %v1864 = vlaneseq
    %v1865 = vshrl.u32 %v1864, 7
    %v1866 = vsub.s32 1, %v1865
    %v1867 = vrot.slane %v1858, %v1866
    %v1868 = vlaneseq
    %v1869 = vshrl.u32 %v1868, 7
    %v1870 = vsub.s32 2, %v1869
    %v1871 = vrot.slane %v1858, %v1870
    %v1872 = vlaneseq
    %v1873 = vshrl.u32 %v1872, 7
    %v1874 = vsub.s32 3, %v1873
    %v1875 = vrot.slane %v1858, %v1874
    %1880 = vmatprep.subr.mxu0 %v1855
    %1881 = vmatpush1.msra.mxu0 %v1854
    %1882 = vmatprep.subr.mxu0 %v1851
    %1883 = vmatpush1.msra.mxu0 %v1850
    %1884 = vmatprep.subr.mxu0 %v1847
    %1885 = vmatpush1.msra.mxu0 %v1846
    %1886 = vmatprep.subr.mxu0 %v1843
    %1887 = vmatpush1.msra.mxu0 %v1842
    %1888 = vmatprep.subr.mxu0 %v1839
    %1889 = vmatpush1.msra.mxu0 %v1838
    %1890 = vmatprep.subr.mxu0 %v1835
    %1891 = vmatpush1.msra.mxu0 %v1834
    %1892 = vmatprep.subr.mxu0 %v1831
    %1893 = vmatpush1.msra.mxu0 %v1830
    %1894 = vmatprep.subr.mxu0 %v1827
    %1895 = vmatpush1.msra.mxu0 %v1826
    %1896 = vmatprep.subr.mxu0 %v1823
    %1897 = vmatpush1.msra.mxu0 %v1822
    %1898 = vmatprep.subr.mxu0 %v1819
    %1899 = vmatpush1.msra.mxu0 %v1818
    %1900 = vmatprep.subr.mxu0 %v1815
    %1901 = vmatpush1.msra.mxu0 %v1814
    %1902 = vmatprep.subr.mxu0 %v1811
    %1903 = vmatpush1.msra.mxu0 %v1810
    %1904 = vmatprep.subr.mxu0 %v1807
    %1905 = vmatpush1.msra.mxu0 %v1806
    %1906 = vmatprep.subr.mxu0 %v1803
    %1907 = vmatpush1.msra.mxu0 %v1802
    %1908 = vmatprep.subr.mxu0 %v1799
    %1909 = vmatpush1.msra.mxu0 %v1798
    %1910 = vmatprep.subr.mxu0 %v1795
    %1911 = vmatpush1.msra.mxu0 %v1794
    %1912 = vmatprep.subr.mxu0 0.0
    %1913 = vmatpush2.msra.mxu0 0.0
    %1914 = vmatprep.subr.mxu0 0.0
    %1915 = vmatpush2.msra.mxu0 0.0
    %1916 = vmatprep.subr.mxu0 0.0
    %1917 = vmatpush2.msra.mxu0 0.0
    %1918 = vmatprep.subr.mxu0 0.0
    %1919 = vmatpush2.msra.mxu0 0.0
    %1920 = vmatprep.subr.mxu0 0.0
    %1921 = vmatpush2.msra.mxu0 0.0
    %1922 = vmatprep.subr.mxu0 0.0
    %1923 = vmatpush2.msra.mxu0 0.0
    %1924 = vmatprep.subr.mxu0 0.0
    %1925 = vmatpush2.msra.mxu0 0.0
    %1926 = vmatprep.subr.mxu0 0.0
    %1927 = vmatpush2.msra.mxu0 0.0
    %1928 = vmatprep.subr.mxu0 0.0
    %1929 = vmatpush2.msra.mxu0 0.0
    %1930 = vmatprep.subr.mxu0 0.0
    %1931 = vmatpush2.msra.mxu0 0.0
    %1932 = vmatprep.subr.mxu0 0.0
    %1933 = vmatpush2.msra.mxu0 0.0
    %1934 = vmatprep.subr.mxu0 0.0
    %1935 = vmatpush2.msra.mxu0 0.0
    %1936 = vmatprep.subr.mxu0 0.0
    %1937 = vmatpush2.msra.mxu0 0.0
    %1938 = vmatprep.subr.mxu0 0.0
    %1939 = vmatpush2.msra.mxu0 0.0
    %1940 = vmatprep.subr.mxu0 0.0
    %1941 = vmatpush2.msra.mxu0 0.0
    %1942 = vmatprep.subr.mxu0 0.0
    %1943 = vmatpush2.msra.mxu0 0.0
    %1944 = vmatprep.mubr.f32.mxu0 0.0
    %1945 = vmatmul.mubr.f32.gmra.mxu0 %v1793
    %v1946 = vpop.f32.mrf.mxu0
    %v1947 = vadd.f32 %v1863, %v1946
    %v1948 = vpop.f32.mrf.mxu0
    %v1949 = vadd.f32 %v1867, %v1948
    %1950 = vdwg.mxu0
    %1951 = vmatprep.subr.mxu0 %v1857
    %1952 = vmatpush1.msra.mxu0 %v1856
    %1953 = vmatprep.subr.mxu0 %v1853
    %1954 = vmatpush1.msra.mxu0 %v1852
    %1955 = vmatprep.subr.mxu0 %v1849
    %1956 = vmatpush1.msra.mxu0 %v1848
    %1957 = vmatprep.subr.mxu0 %v1845
    %1958 = vmatpush1.msra.mxu0 %v1844
    %1959 = vmatprep.subr.mxu0 %v1841
    %1960 = vmatpush1.msra.mxu0 %v1840
    %1961 = vmatprep.subr.mxu0 %v1837
    %1962 = vmatpush1.msra.mxu0 %v1836
    %1963 = vmatprep.subr.mxu0 %v1833
    %1964 = vmatpush1.msra.mxu0 %v1832
    %1965 = vmatprep.subr.mxu0 %v1829
    %1966 = vmatpush1.msra.mxu0 %v1828
    %1967 = vmatprep.subr.mxu0 %v1825
    %1968 = vmatpush1.msra.mxu0 %v1824
    %1969 = vmatprep.subr.mxu0 %v1821
    %1970 = vmatpush1.msra.mxu0 %v1820
    %1971 = vmatprep.subr.mxu0 %v1817
    %1972 = vmatpush1.msra.mxu0 %v1816
    %1973 = vmatprep.subr.mxu0 %v1813
    %1974 = vmatpush1.msra.mxu0 %v1812
    %1975 = vmatprep.subr.mxu0 %v1809
    %1976 = vmatpush1.msra.mxu0 %v1808
    %1977 = vmatprep.subr.mxu0 %v1805
    %1978 = vmatpush1.msra.mxu0 %v1804
    %1979 = vmatprep.subr.mxu0 %v1801
    %1980 = vmatpush1.msra.mxu0 %v1800
    %1981 = vmatprep.subr.mxu0 %v1797
    %1982 = vmatpush1.msra.mxu0 %v1796
    %1983 = vmatprep.subr.mxu0 0.0
    %1984 = vmatpush2.msra.mxu0 0.0
    %1985 = vmatprep.subr.mxu0 0.0
    %1986 = vmatpush2.msra.mxu0 0.0
    %1987 = vmatprep.subr.mxu0 0.0
    %1988 = vmatpush2.msra.mxu0 0.0
    %1989 = vmatprep.subr.mxu0 0.0
    %1990 = vmatpush2.msra.mxu0 0.0
    %1991 = vmatprep.subr.mxu0 0.0
    %1992 = vmatpush2.msra.mxu0 0.0
    %1993 = vmatprep.subr.mxu0 0.0
    %1994 = vmatpush2.msra.mxu0 0.0
    %1995 = vmatprep.subr.mxu0 0.0
    %1996 = vmatpush2.msra.mxu0 0.0
    %1997 = vmatprep.subr.mxu0 0.0
    %1998 = vmatpush2.msra.mxu0 0.0
    %1999 = vmatprep.subr.mxu0 0.0
    %2000 = vmatpush2.msra.mxu0 0.0
    %2001 = vmatprep.subr.mxu0 0.0
    %2002 = vmatpush2.msra.mxu0 0.0
    %2003 = vmatprep.subr.mxu0 0.0
    %2004 = vmatpush2.msra.mxu0 0.0
    %2005 = vmatprep.subr.mxu0 0.0
    %2006 = vmatpush2.msra.mxu0 0.0
    %2007 = vmatprep.subr.mxu0 0.0
    %2008 = vmatpush2.msra.mxu0 0.0
    %2009 = vmatprep.subr.mxu0 0.0
    %2010 = vmatpush2.msra.mxu0 0.0
    %2011 = vmatprep.subr.mxu0 0.0
    %2012 = vmatpush2.msra.mxu0 0.0
    %2013 = vmatprep.subr.mxu0 0.0
    %2014 = vmatpush2.msra.mxu0 0.0
    %2015 = vmatprep.mubr.f32.mxu0 0.0
    %2016 = vmatmul.mubr.f32.gmra.mxu0 %v1793
    %v2017 = vpop.f32.mrf.mxu0
    %v2018 = vadd.f32 %v1871, %v2017
    %v2019 = vpop.f32.mrf.mxu0
    %v2020 = vadd.f32 %v1875, %v2019
    %2021 = vdwg.mxu0
    %v2022 = vxor.u32 %v1947, 2147483648
    %v2023 = vmul.f32 %v2022, 1.442695
    %v2024 = vpow.pop %v2023
    %v2025 = vadd.f32 %v2024, 1.0
    %v2026 = vrcp.pop %v2025
    %v2027 = vmul.f32 1.0, %v2026
    %v2028 = vxor.u32 %v1949, 2147483648
    %v2029 = vmul.f32 %v2028, 1.442695
    %v2030 = vpow.pop %v2029
    %v2031 = vadd.f32 %v2030, 1.0
    %v2032 = vrcp.pop %v2031
    %v2033 = vmul.f32 1.0, %v2032
    %v2034 = vmul.f32 %v2027, %v2020
    %v2035 = vadd.f32 %v2018, %v2034
    %v2036 = vtanh.pop %v2035
    %v2037 = vsub.f32 1.0, %v2033
    %v2038 = vmul.f32 %v2037, %v2036
    %v2039 = vmul.f32 %v2033, %v1690
    %v2040 = vadd.f32 %v2038, %v2039
    %v2041 = vld [vmem:[%s4] sm:$0xff]
    %v2042 = vld [vmem:[%s4 + $0x8] sm:$0xff]
    %v2043 = vld [vmem:[%s4 + $0x10] sm:$0xff]
    %v2044 = vld [vmem:[%s4 + $0x18] sm:$0xff]
    %v2045 = vld [vmem:[%s4 + $0x20] sm:$0xff]
    %v2046 = vld [vmem:[%s4 + $0x28] sm:$0xff]
    %v2047 = vld [vmem:[%s4 + $0x30] sm:$0xff]
    %v2048 = vld [vmem:[%s4 + $0x38] sm:$0xff]
    %v2049 = vld [vmem:[%s4 + $0x40] sm:$0xff]
    %v2050 = vld [vmem:[%s4 + $0x48] sm:$0xff]
    %v2051 = vld [vmem:[%s4 + $0x50] sm:$0xff]
    %v2052 = vld [vmem:[%s4 + $0x58] sm:$0xff]
    %v2053 = vld [vmem:[%s4 + $0x60] sm:$0xff]
    %v2054 = vld [vmem:[%s4 + $0x68] sm:$0xff]
    %v2055 = vld [vmem:[%s4 + $0x70] sm:$0xff]
    %v2056 = vld [vmem:[%s4 + $0x78] sm:$0xff]
    %v2057 = vld [vmem:[%s5] sm:$0x1]
    %2058 = vmatprep.subr.mxu0 0.0
    %2059 = vmatpush1.msra.mxu0 %v2056
    %2060 = vmatprep.subr.mxu0 0.0
    %2061 = vmatpush1.msra.mxu0 %v2055
    %2062 = vmatprep.subr.mxu0 0.0
    %2063 = vmatpush1.msra.mxu0 %v2054
    %2064 = vmatprep.subr.mxu0 0.0
    %2065 = vmatpush1.msra.mxu0 %v2053
    %2066 = vmatprep.subr.mxu0 0.0
    %2067 = vmatpush1.msra.mxu0 %v2052
    %2068 = vmatprep.subr.mxu0 0.0
    %2069 = vmatpush1.msra.mxu0 %v2051
    %2070 = vmatprep.subr.mxu0 0.0
    %2071 = vmatpush1.msra.mxu0 %v2050
    %2072 = vmatprep.subr.mxu0 0.0
    %2073 = vmatpush1.msra.mxu0 %v2049
    %2074 = vmatprep.subr.mxu0 0.0
    %2075 = vmatpush1.msra.mxu0 %v2048
    %2076 = vmatprep.subr.mxu0 0.0
    %2077 = vmatpush1.msra.mxu0 %v2047
    %2078 = vmatprep.subr.mxu0 0.0
    %2079 = vmatpush1.msra.mxu0 %v2046
    %2080 = vmatprep.subr.mxu0 0.0
    %2081 = vmatpush1.msra.mxu0 %v2045
    %2082 = vmatprep.subr.mxu0 0.0
    %2083 = vmatpush1.msra.mxu0 %v2044
    %2084 = vmatprep.subr.mxu0 0.0
    %2085 = vmatpush1.msra.mxu0 %v2043
    %2086 = vmatprep.subr.mxu0 0.0
    %2087 = vmatpush1.msra.mxu0 %v2042
    %2088 = vmatprep.subr.mxu0 0.0
    %2089 = vmatpush1.msra.mxu0 %v2041
    %2090 = vmatprep.subr.mxu0 0.0
    %2091 = vmatpush2.msra.mxu0 0.0
    %2092 = vmatprep.subr.mxu0 0.0
    %2093 = vmatpush2.msra.mxu0 0.0
    %2094 = vmatprep.subr.mxu0 0.0
    %2095 = vmatpush2.msra.mxu0 0.0
    %2096 = vmatprep.subr.mxu0 0.0
    %2097 = vmatpush2.msra.mxu0 0.0
    %2098 = vmatprep.subr.mxu0 0.0
    %2099 = vmatpush2.msra.mxu0 0.0
    %2100 = vmatprep.subr.mxu0 0.0
    %2101 = vmatpush2.msra.mxu0 0.0
    %2102 = vmatprep.subr.mxu0 0.0
    %2103 = vmatpush2.msra.mxu0 0.0
    %2104 = vmatprep.subr.mxu0 0.0
    %2105 = vmatpush2.msra.mxu0 0.0
    %2106 = vmatprep.subr.mxu0 0.0
    %2107 = vmatpush2.msra.mxu0 0.0
    %2108 = vmatprep.subr.mxu0 0.0
    %2109 = vmatpush2.msra.mxu0 0.0
    %2110 = vmatprep.subr.mxu0 0.0
    %2111 = vmatpush2.msra.mxu0 0.0
    %2112 = vmatprep.subr.mxu0 0.0
    %2113 = vmatpush2.msra.mxu0 0.0
    %2114 = vmatprep.subr.mxu0 0.0
    %2115 = vmatpush2.msra.mxu0 0.0
    %2116 = vmatprep.subr.mxu0 0.0
    %2117 = vmatpush2.msra.mxu0 0.0
    %2118 = vmatprep.subr.mxu0 0.0
    %2119 = vmatpush2.msra.mxu0 0.0
    %2120 = vmatprep.subr.mxu0 0.0
    %2121 = vmatpush2.msra.mxu0 0.0
    %2122 = vmatprep.mubr.f32.mxu0 0.0
    %2123 = vmatmul.mubr.f32.gmra.mxu0 %v2040
    %v2124 = vpop.f32.mrf.mxu0
    %v2125 = vadd.f32 %v2057, %v2124
    %v2126 = vpop.f32.mrf.mxu0
    %2127 = vdwg.mxu0
    %v2128 = vsel %vm377, %v2125, -inf
    %2129 = vmax.xlane.f32.xlu0 %v2128
    %v2130 = vpop.xlane.xlu0 %2129
    %v2131 = vsub.f32 %v2125, %v2130
    %v2132 = vmul.f32 %v2131, 1.442695
    %v2133 = vpow.pop %v2132
    %v2134 = vsel %vm377, %v2133, 0.0
    %2135 = vadd.xlane.f32.xlu0 %v2134
    %v2136 = vpop.xlane.xlu0 %2135
    %v2137 = vlog2.pop %v2136
    %v2138 = vmul.f32 %v2137, 0.6931472
    %v2139 = vadd.f32 %v2130, %v2138
    %v2140 = vsub.f32 %v2125, %v2139
    %2141 = vst [vmem:[#allocation5 + $0x5] sm:$0x1] %v2140
    %v2142 = vld [vmem:[%s0 + $0x6] sm:$0x1]
    %v2143 = vadd.f32 %v2142, %v2040
    %v2144 = vld [vmem:[#allocation2] sm:$0xff]
    %v2145 = vld [vmem:[#allocation2 + $0x8] sm:$0xff]
    %v2146 = vld [vmem:[#allocation2 + $0x10] sm:$0xff]
    %v2147 = vld [vmem:[#allocation2 + $0x18] sm:$0xff]
    %v2148 = vld [vmem:[#allocation2 + $0x20] sm:$0xff]
    %v2149 = vld [vmem:[#allocation2 + $0x28] sm:$0xff]
    %v2150 = vld [vmem:[#allocation2 + $0x30] sm:$0xff]
    %v2151 = vld [vmem:[#allocation2 + $0x38] sm:$0xff]
    %v2152 = vld [vmem:[#allocation2 + $0x40] sm:$0xff]
    %v2153 = vld [vmem:[#allocation2 + $0x48] sm:$0xff]
    %v2154 = vld [vmem:[#allocation2 + $0x50] sm:$0xff]
    %v2155 = vld [vmem:[#allocation2 + $0x58] sm:$0xff]
    %v2156 = vld [vmem:[#allocation2 + $0x60] sm:$0xff]
    %v2157 = vld [vmem:[#allocation2 + $0x68] sm:$0xff]
    %v2158 = vld [vmem:[#allocation2 + $0x70] sm:$0xff]
    %v2159 = vld [vmem:[#allocation2 + $0x78] sm:$0xff]
    %v2160 = vld [vmem:[#allocation2 + $0x80] sm:$0xff]
    %v2161 = vld [vmem:[#allocation2 + $0x88] sm:$0xff]
    %v2162 = vld [vmem:[#allocation2 + $0x90] sm:$0xff]
    %v2163 = vld [vmem:[#allocation2 + $0x98] sm:$0xff]
    %v2164 = vld [vmem:[#allocation2 + $0xa0] sm:$0xff]
    %v2165 = vld [vmem:[#allocation2 + $0xa8] sm:$0xff]
    %v2166 = vld [vmem:[#allocation2 + $0xb0] sm:$0xff]
    %v2167 = vld [vmem:[#allocation2 + $0xb8] sm:$0xff]
    %v2168 = vld [vmem:[#allocation2 + $0xc0] sm:$0xff]
    %v2169 = vld [vmem:[#allocation2 + $0xc8] sm:$0xff]
    %v2170 = vld [vmem:[#allocation2 + $0xd0] sm:$0xff]
    %v2171 = vld [vmem:[#allocation2 + $0xd8] sm:$0xff]
    %v2172 = vld [vmem:[#allocation2 + $0xe0] sm:$0xff]
    %v2173 = vld [vmem:[#allocation2 + $0xe8] sm:$0xff]
    %v2174 = vld [vmem:[#allocation2 + $0xf0] sm:$0xff]
    %v2175 = vld [vmem:[#allocation2 + $0xf8] sm:$0xff]
    %v2176 = vld [vmem:[#allocation2 + $0x100] sm:$0xff]
    %v2177 = vld [vmem:[#allocation2 + $0x108] sm:$0xff]
    %v2178 = vld [vmem:[#allocation2 + $0x110] sm:$0xff]
    %v2179 = vld [vmem:[#allocation2 + $0x118] sm:$0xff]
    %v2180 = vld [vmem:[#allocation2 + $0x120] sm:$0xff]
    %v2181 = vld [vmem:[#allocation2 + $0x128] sm:$0xff]
    %v2182 = vld [vmem:[#allocation2 + $0x130] sm:$0xff]
    %v2183 = vld [vmem:[#allocation2 + $0x138] sm:$0xff]
    %v2184 = vld [vmem:[#allocation2 + $0x140] sm:$0xff]
    %v2185 = vld [vmem:[#allocation2 + $0x148] sm:$0xff]
    %v2186 = vld [vmem:[#allocation2 + $0x150] sm:$0xff]
    %v2187 = vld [vmem:[#allocation2 + $0x158] sm:$0xff]
    %v2188 = vld [vmem:[#allocation2 + $0x160] sm:$0xff]
    %v2189 = vld [vmem:[#allocation2 + $0x168] sm:$0xff]
    %v2190 = vld [vmem:[#allocation2 + $0x170] sm:$0xff]
    %v2191 = vld [vmem:[#allocation2 + $0x178] sm:$0xff]
    %v2192 = vld [vmem:[#allocation2 + $0x180] sm:$0xff]
    %v2193 = vld [vmem:[#allocation2 + $0x188] sm:$0xff]
    %v2194 = vld [vmem:[#allocation2 + $0x190] sm:$0xff]
    %v2195 = vld [vmem:[#allocation2 + $0x198] sm:$0xff]
    %v2196 = vld [vmem:[#allocation2 + $0x1a0] sm:$0xff]
    %v2197 = vld [vmem:[#allocation2 + $0x1a8] sm:$0xff]
    %v2198 = vld [vmem:[#allocation2 + $0x1b0] sm:$0xff]
    %v2199 = vld [vmem:[#allocation2 + $0x1b8] sm:$0xff]
    %v2200 = vld [vmem:[#allocation2 + $0x1c0] sm:$0xff]
    %v2201 = vld [vmem:[#allocation2 + $0x1c8] sm:$0xff]
    %v2202 = vld [vmem:[#allocation2 + $0x1d0] sm:$0xff]
    %v2203 = vld [vmem:[#allocation2 + $0x1d8] sm:$0xff]
    %v2204 = vld [vmem:[#allocation2 + $0x1e0] sm:$0xff]
    %v2205 = vld [vmem:[#allocation2 + $0x1e8] sm:$0xff]
    %v2206 = vld [vmem:[#allocation2 + $0x1f0] sm:$0xff]
    %v2207 = vld [vmem:[#allocation2 + $0x1f8] sm:$0xff]
    %v2208 = vld [vmem:[%s3] sm:$0xf]
    %v2210 = vlaneseq
    %v2211 = vshrl.u32 %v2210, 7
    %v2212 = vsub.s32 0, %v2211
    %v2213 = vrot.slane %v2208, %v2212
    %v2214 = vlaneseq
    %v2215 = vshrl.u32 %v2214, 7
    %v2216 = vsub.s32 1, %v2215
    %v2217 = vrot.slane %v2208, %v2216
    %v2218 = vlaneseq
    %v2219 = vshrl.u32 %v2218, 7
    %v2220 = vsub.s32 2, %v2219
    %v2221 = vrot.slane %v2208, %v2220
    %v2222 = vlaneseq
    %v2223 = vshrl.u32 %v2222, 7
    %v2224 = vsub.s32 3, %v2223
    %v2225 = vrot.slane %v2208, %v2224
    %2230 = vmatprep.subr.mxu0 %v2205
    %2231 = vmatpush1.msra.mxu0 %v2204
    %2232 = vmatprep.subr.mxu0 %v2201
    %2233 = vmatpush1.msra.mxu0 %v2200
    %2234 = vmatprep.subr.mxu0 %v2197
    %2235 = vmatpush1.msra.mxu0 %v2196
    %2236 = vmatprep.subr.mxu0 %v2193
    %2237 = vmatpush1.msra.mxu0 %v2192
    %2238 = vmatprep.subr.mxu0 %v2189
    %2239 = vmatpush1.msra.mxu0 %v2188
    %2240 = vmatprep.subr.mxu0 %v2185
    %2241 = vmatpush1.msra.mxu0 %v2184
    %2242 = vmatprep.subr.mxu0 %v2181
    %2243 = vmatpush1.msra.mxu0 %v2180
    %2244 = vmatprep.subr.mxu0 %v2177
    %2245 = vmatpush1.msra.mxu0 %v2176
    %2246 = vmatprep.subr.mxu0 %v2173
    %2247 = vmatpush1.msra.mxu0 %v2172
    %2248 = vmatprep.subr.mxu0 %v2169
    %2249 = vmatpush1.msra.mxu0 %v2168
    %2250 = vmatprep.subr.mxu0 %v2165
    %2251 = vmatpush1.msra.mxu0 %v2164
    %2252 = vmatprep.subr.mxu0 %v2161
    %2253 = vmatpush1.msra.mxu0 %v2160
    %2254 = vmatprep.subr.mxu0 %v2157
    %2255 = vmatpush1.msra.mxu0 %v2156
    %2256 = vmatprep.subr.mxu0 %v2153
    %2257 = vmatpush1.msra.mxu0 %v2152
    %2258 = vmatprep.subr.mxu0 %v2149
    %2259 = vmatpush1.msra.mxu0 %v2148
    %2260 = vmatprep.subr.mxu0 %v2145
    %2261 = vmatpush1.msra.mxu0 %v2144
    %2262 = vmatprep.subr.mxu0 0.0
    %2263 = vmatpush2.msra.mxu0 0.0
    %2264 = vmatprep.subr.mxu0 0.0
    %2265 = vmatpush2.msra.mxu0 0.0
    %2266 = vmatprep.subr.mxu0 0.0
    %2267 = vmatpush2.msra.mxu0 0.0
    %2268 = vmatprep.subr.mxu0 0.0
    %2269 = vmatpush2.msra.mxu0 0.0
    %2270 = vmatprep.subr.mxu0 0.0
    %2271 = vmatpush2.msra.mxu0 0.0
    %2272 = vmatprep.subr.mxu0 0.0
    %2273 = vmatpush2.msra.mxu0 0.0
    %2274 = vmatprep.subr.mxu0 0.0
    %2275 = vmatpush2.msra.mxu0 0.0
    %2276 = vmatprep.subr.mxu0 0.0
    %2277 = vmatpush2.msra.mxu0 0.0
    %2278 = vmatprep.subr.mxu0 0.0
    %2279 = vmatpush2.msra.mxu0 0.0
    %2280 = vmatprep.subr.mxu0 0.0
    %2281 = vmatpush2.msra.mxu0 0.0
    %2282 = vmatprep.subr.mxu0 0.0
    %2283 = vmatpush2.msra.mxu0 0.0
    %2284 = vmatprep.subr.mxu0 0.0
    %2285 = vmatpush2.msra.mxu0 0.0
    %2286 = vmatprep.subr.mxu0 0.0
    %2287 = vmatpush2.msra.mxu0 0.0
    %2288 = vmatprep.subr.mxu0 0.0
    %2289 = vmatpush2.msra.mxu0 0.0
    %2290 = vmatprep.subr.mxu0 0.0
    %2291 = vmatpush2.msra.mxu0 0.0
    %2292 = vmatprep.subr.mxu0 0.0
    %2293 = vmatpush2.msra.mxu0 0.0
    %2294 = vmatprep.mubr.f32.mxu0 0.0
    %2295 = vmatmul.mubr.f32.gmra.mxu0 %v2143
    %v2296 = vpop.f32.mrf.mxu0
    %v2297 = vadd.f32 %v2213, %v2296
    %v2298 = vpop.f32.mrf.mxu0
    %v2299 = vadd.f32 %v2217, %v2298
    %2300 = vdwg.mxu0
    %2301 = vmatprep.subr.mxu0 %v2207
    %2302 = vmatpush1.msra.mxu0 %v2206
    %2303 = vmatprep.subr.mxu0 %v2203
    %2304 = vmatpush1.msra.mxu0 %v2202
    %2305 = vmatprep.subr.mxu0 %v2199
    %2306 = vmatpush1.msra.mxu0 %v2198
    %2307 = vmatprep.subr.mxu0 %v2195
    %2308 = vmatpush1.msra.mxu0 %v2194
    %2309 = vmatprep.subr.mxu0 %v2191
    %2310 = vmatpush1.msra.mxu0 %v2190
    %2311 = vmatprep.subr.mxu0 %v2187
    %2312 = vmatpush1.msra.mxu0 %v2186
    %2313 = vmatprep.subr.mxu0 %v2183
    %2314 = vmatpush1.msra.mxu0 %v2182
    %2315 = vmatprep.subr.mxu0 %v2179
    %2316 = vmatpush1.msra.mxu0 %v2178
    %2317 = vmatprep.subr.mxu0 %v2175
    %2318 = vmatpush1.msra.mxu0 %v2174
    %2319 = vmatprep.subr.mxu0 %v2171
    %2320 = vmatpush1.msra.mxu0 %v2170
    %2321 = vmatprep.subr.mxu0 %v2167
    %2322 = vmatpush1.msra.mxu0 %v2166
    %2323 = vmatprep.subr.mxu0 %v2163
    %2324 = vmatpush1.msra.mxu0 %v2162
    %2325 = vmatprep.subr.mxu0 %v2159
    %2326 = vmatpush1.msra.mxu0 %v2158
    %2327 = vmatprep.subr.mxu0 %v2155
    %2328 = vmatpush1.msra.mxu0 %v2154
    %2329 = vmatprep.subr.mxu0 %v2151
    %2330 = vmatpush1.msra.mxu0 %v2150
    %2331 = vmatprep.subr.mxu0 %v2147
    %2332 = vmatpush1.msra.mxu0 %v2146
    %2333 = vmatprep.subr.mxu0 0.0
    %2334 = vmatpush2.msra.mxu0 0.0
    %2335 = vmatprep.subr.mxu0 0.0
    %2336 = vmatpush2.msra.mxu0 0.0
    %2337 = vmatprep.subr.mxu0 0.0
    %2338 = vmatpush2.msra.mxu0 0.0
    %2339 = vmatprep.subr.mxu0 0.0
    %2340 = vmatpush2.msra.mxu0 0.0
    %2341 = vmatprep.subr.mxu0 0.0
    %2342 = vmatpush2.msra.mxu0 0.0
    %2343 = vmatprep.subr.mxu0 0.0
    %2344 = vmatpush2.msra.mxu0 0.0
    %2345 = vmatprep.subr.mxu0 0.0
    %2346 = vmatpush2.msra.mxu0 0.0
    %2347 = vmatprep.subr.mxu0 0.0
    %2348 = vmatpush2.msra.mxu0 0.0
    %2349 = vmatprep.subr.mxu0 0.0
    %2350 = vmatpush2.msra.mxu0 0.0
    %2351 = vmatprep.subr.mxu0 0.0
    %2352 = vmatpush2.msra.mxu0 0.0
    %2353 = vmatprep.subr.mxu0 0.0
    %2354 = vmatpush2.msra.mxu0 0.0
    %2355 = vmatprep.subr.mxu0 0.0
    %2356 = vmatpush2.msra.mxu0 0.0
    %2357 = vmatprep.subr.mxu0 0.0
    %2358 = vmatpush2.msra.mxu0 0.0
    %2359 = vmatprep.subr.mxu0 0.0
    %2360 = vmatpush2.msra.mxu0 0.0
    %2361 = vmatprep.subr.mxu0 0.0
    %2362 = vmatpush2.msra.mxu0 0.0
    %2363 = vmatprep.subr.mxu0 0.0
    %2364 = vmatpush2.msra.mxu0 0.0
    %2365 = vmatprep.mubr.f32.mxu0 0.0
    %2366 = vmatmul.mubr.f32.gmra.mxu0 %v2143
    %v2367 = vpop.f32.mrf.mxu0
    %v2368 = vadd.f32 %v2221, %v2367
    %v2369 = vpop.f32.mrf.mxu0
    %v2370 = vadd.f32 %v2225, %v2369
    %2371 = vdwg.mxu0
    %v2372 = vxor.u32 %v2297, 2147483648
    %v2373 = vmul.f32 %v2372, 1.442695
    %v2374 = vpow.pop %v2373
    %v2375 = vadd.f32 %v2374, 1.0
    %v2376 = vrcp.pop %v2375
    %v2377 = vmul.f32 1.0, %v2376
    %v2378 = vxor.u32 %v2299, 2147483648
    %v2379 = vmul.f32 %v2378, 1.442695
    %v2380 = vpow.pop %v2379
    %v2381 = vadd.f32 %v2380, 1.0
    %v2382 = vrcp.pop %v2381
    %v2383 = vmul.f32 1.0, %v2382
    %v2384 = vmul.f32 %v2377, %v2370
    %v2385 = vadd.f32 %v2368, %v2384
    %v2386 = vtanh.pop %v2385
    %v2387 = vsub.f32 1.0, %v2383
    %v2388 = vmul.f32 %v2387, %v2386
    %v2389 = vmul.f32 %v2383, %v2040
    %v2390 = vadd.f32 %v2388, %v2389
    %v2391 = vld [vmem:[%s4] sm:$0xff]
    %v2392 = vld [vmem:[%s4 + $0x8] sm:$0xff]
    %v2393 = vld [vmem:[%s4 + $0x10] sm:$0xff]
    %v2394 = vld [vmem:[%s4 + $0x18] sm:$0xff]
    %v2395 = vld [vmem:[%s4 + $0x20] sm:$0xff]
    %v2396 = vld [vmem:[%s4 + $0x28] sm:$0xff]
    %v2397 = vld [vmem:[%s4 + $0x30] sm:$0xff]
    %v2398 = vld [vmem:[%s4 + $0x38] sm:$0xff]
    %v2399 = vld [vmem:[%s4 + $0x40] sm:$0xff]
    %v2400 = vld [vmem:[%s4 + $0x48] sm:$0xff]
    %v2401 = vld [vmem:[%s4 + $0x50] sm:$0xff]
    %v2402 = vld [vmem:[%s4 + $0x58] sm:$0xff]
    %v2403 = vld [vmem:[%s4 + $0x60] sm:$0xff]
    %v2404 = vld [vmem:[%s4 + $0x68] sm:$0xff]
    %v2405 = vld [vmem:[%s4 + $0x70] sm:$0xff]
    %v2406 = vld [vmem:[%s4 + $0x78] sm:$0xff]
    %v2407 = vld [vmem:[%s5] sm:$0x1]
    %2408 = vmatprep.subr.mxu0 0.0
    %2409 = vmatpush1.msra.mxu0 %v2406
    %2410 = vmatprep.subr.mxu0 0.0
    %2411 = vmatpush1.msra.mxu0 %v2405
    %2412 = vmatprep.subr.mxu0 0.0
    %2413 = vmatpush1.msra.mxu0 %v2404
    %2414 = vmatprep.subr.mxu0 0.0
    %2415 = vmatpush1.msra.mxu0 %v2403
    %2416 = vmatprep.subr.mxu0 0.0
    %2417 = vmatpush1.msra.mxu0 %v2402
    %2418 = vmatprep.subr.mxu0 0.0
    %2419 = vmatpush1.msra.mxu0 %v2401
    %2420 = vmatprep.subr.mxu0 0.0
    %2421 = vmatpush1.msra.mxu0 %v2400
    %2422 = vmatprep.subr.mxu0 0.0
    %2423 = vmatpush1.msra.mxu0 %v2399
    %2424 = vmatprep.subr.mxu0 0.0
    %2425 = vmatpush1.msra.mxu0 %v2398
    %2426 = vmatprep.subr.mxu0 0.0
    %2427 = vmatpush1.msra.mxu0 %v2397
    %2428 = vmatprep.subr.mxu0 0.0
    %2429 = vmatpush1.msra.mxu0 %v2396
    %2430 = vmatprep.subr.mxu0 0.0
    %2431 = vmatpush1.msra.mxu0 %v2395
    %2432 = vmatprep.subr.mxu0 0.0
    %2433 = vmatpush1.msra.mxu0 %v2394
    %2434 = vmatprep.subr.mxu0 0.0
    %2435 = vmatpush1.msra.mxu0 %v2393
    %2436 = vmatprep.subr.mxu0 0.0
    %2437 = vmatpush1.msra.mxu0 %v2392
    %2438 = vmatprep.subr.mxu0 0.0
    %2439 = vmatpush1.msra.mxu0 %v2391
    %2440 = vmatprep.subr.mxu0 0.0
    %2441 = vmatpush2.msra.mxu0 0.0
    %2442 = vmatprep.subr.mxu0 0.0
    %2443 = vmatpush2.msra.mxu0 0.0
    %2444 = vmatprep.subr.mxu0 0.0
    %2445 = vmatpush2.msra.mxu0 0.0
    %2446 = vmatprep.subr.mxu0 0.0
    %2447 = vmatpush2.msra.mxu0 0.0
    %2448 = vmatprep.subr.mxu0 0.0
    %2449 = vmatpush2.msra.mxu0 0.0
    %2450 = vmatprep.subr.mxu0 0.0
    %2451 = vmatpush2.msra.mxu0 0.0
    %2452 = vmatprep.subr.mxu0 0.0
    %2453 = vmatpush2.msra.mxu0 0.0
    %2454 = vmatprep.subr.mxu0 0.0
    %2455 = vmatpush2.msra.mxu0 0.0
    %2456 = vmatprep.subr.mxu0 0.0
    %2457 = vmatpush2.msra.mxu0 0.0
    %2458 = vmatprep.subr.mxu0 0.0
    %2459 = vmatpush2.msra.mxu0 0.0
    %2460 = vmatprep.subr.mxu0 0.0
    %2461 = vmatpush2.msra.mxu0 0.0
    %2462 = vmatprep.subr.mxu0 0.0
    %2463 = vmatpush2.msra.mxu0 0.0
    %2464 = vmatprep.subr.mxu0 0.0
    %2465 = vmatpush2.msra.mxu0 0.0
    %2466 = vmatprep.subr.mxu0 0.0
    %2467 = vmatpush2.msra.mxu0 0.0
    %2468 = vmatprep.subr.mxu0 0.0
    %2469 = vmatpush2.msra.mxu0 0.0
    %2470 = vmatprep.subr.mxu0 0.0
    %2471 = vmatpush2.msra.mxu0 0.0
    %2472 = vmatprep.mubr.f32.mxu0 0.0
    %2473 = vmatmul.mubr.f32.gmra.mxu0 %v2390
    %v2474 = vpop.f32.mrf.mxu0
    %v2475 = vadd.f32 %v2407, %v2474
    %v2476 = vpop.f32.mrf.mxu0
    %2477 = vdwg.mxu0
    %v2478 = vsel %vm377, %v2475, -inf
    %2479 = vmax.xlane.f32.xlu0 %v2478
    %v2480 = vpop.xlane.xlu0 %2479
    %v2481 = vsub.f32 %v2475, %v2480
    %v2482 = vmul.f32 %v2481, 1.442695
    %v2483 = vpow.pop %v2482
    %v2484 = vsel %vm377, %v2483, 0.0
    %2485 = vadd.xlane.f32.xlu0 %v2484
    %v2486 = vpop.xlane.xlu0 %2485
    %v2487 = vlog2.pop %v2486
    %v2488 = vmul.f32 %v2487, 0.6931472
    %v2489 = vadd.f32 %v2480, %v2488
    %v2490 = vsub.f32 %v2475, %v2489
    %2491 = vst [vmem:[#allocation5 + $0x6] sm:$0x1] %v2490
    %v2492 = vld [vmem:[%s0 + $0x7] sm:$0x1]
    %v2493 = vadd.f32 %v2492, %v2390
    %v2494 = vld [vmem:[#allocation2] sm:$0xff]
    %v2495 = vld [vmem:[#allocation2 + $0x8] sm:$0xff]
    %v2496 = vld [vmem:[#allocation2 + $0x10] sm:$0xff]
    %v2497 = vld [vmem:[#allocation2 + $0x18] sm:$0xff]
    %v2498 = vld [vmem:[#allocation2 + $0x20] sm:$0xff]
    %v2499 = vld [vmem:[#allocation2 + $0x28] sm:$0xff]
    %v2500 = vld [vmem:[#allocation2 + $0x30] sm:$0xff]
    %v2501 = vld [vmem:[#allocation2 + $0x38] sm:$0xff]
    %v2502 = vld [vmem:[#allocation2 + $0x40] sm:$0xff]
    %v2503 = vld [vmem:[#allocation2 + $0x48] sm:$0xff]
    %v2504 = vld [vmem:[#allocation2 + $0x50] sm:$0xff]
    %v2505 = vld [vmem:[#allocation2 + $0x58] sm:$0xff]
    %v2506 = vld [vmem:[#allocation2 + $0x60] sm:$0xff]
    %v2507 = vld [vmem:[#allocation2 + $0x68] sm:$0xff]
    %v2508 = vld [vmem:[#allocation2 + $0x70] sm:$0xff]
    %v2509 = vld [vmem:[#allocation2 + $0x78] sm:$0xff]
    %v2510 = vld [vmem:[#allocation2 + $0x80] sm:$0xff]
    %v2511 = vld [vmem:[#allocation2 + $0x88] sm:$0xff]
    %v2512 = vld [vmem:[#allocation2 + $0x90] sm:$0xff]
    %v2513 = vld [vmem:[#allocation2 + $0x98] sm:$0xff]
    %v2514 = vld [vmem:[#allocation2 + $0xa0] sm:$0xff]
    %v2515 = vld [vmem:[#allocation2 + $0xa8] sm:$0xff]
    %v2516 = vld [vmem:[#allocation2 + $0xb0] sm:$0xff]
    %v2517 = vld [vmem:[#allocation2 + $0xb8] sm:$0xff]
    %v2518 = vld [vmem:[#allocation2 + $0xc0] sm:$0xff]
    %v2519 = vld [vmem:[#allocation2 + $0xc8] sm:$0xff]
    %v2520 = vld [vmem:[#allocation2 + $0xd0] sm:$0xff]
    %v2521 = vld [vmem:[#allocation2 + $0xd8] sm:$0xff]
    %v2522 = vld [vmem:[#allocation2 + $0xe0] sm:$0xff]
    %v2523 = vld [vmem:[#allocation2 + $0xe8] sm:$0xff]
    %v2524 = vld [vmem:[#allocation2 + $0xf0] sm:$0xff]
    %v2525 = vld [vmem:[#allocation2 + $0xf8] sm:$0xff]
    %v2526 = vld [vmem:[#allocation2 + $0x100] sm:$0xff]
    %v2527 = vld [vmem:[#allocation2 + $0x108] sm:$0xff]
    %v2528 = vld [vmem:[#allocation2 + $0x110] sm:$0xff]
    %v2529 = vld [vmem:[#allocation2 + $0x118] sm:$0xff]
    %v2530 = vld [vmem:[#allocation2 + $0x120] sm:$0xff]
    %v2531 = vld [vmem:[#allocation2 + $0x128] sm:$0xff]
    %v2532 = vld [vmem:[#allocation2 + $0x130] sm:$0xff]
    %v2533 = vld [vmem:[#allocation2 + $0x138] sm:$0xff]
    %v2534 = vld [vmem:[#allocation2 + $0x140] sm:$0xff]
    %v2535 = vld [vmem:[#allocation2 + $0x148] sm:$0xff]
    %v2536 = vld [vmem:[#allocation2 + $0x150] sm:$0xff]
    %v2537 = vld [vmem:[#allocation2 + $0x158] sm:$0xff]
    %v2538 = vld [vmem:[#allocation2 + $0x160] sm:$0xff]
    %v2539 = vld [vmem:[#allocation2 + $0x168] sm:$0xff]
    %v2540 = vld [vmem:[#allocation2 + $0x170] sm:$0xff]
    %v2541 = vld [vmem:[#allocation2 + $0x178] sm:$0xff]
    %v2542 = vld [vmem:[#allocation2 + $0x180] sm:$0xff]
    %v2543 = vld [vmem:[#allocation2 + $0x188] sm:$0xff]
    %v2544 = vld [vmem:[#allocation2 + $0x190] sm:$0xff]
    %v2545 = vld [vmem:[#allocation2 + $0x198] sm:$0xff]
    %v2546 = vld [vmem:[#allocation2 + $0x1a0] sm:$0xff]
    %v2547 = vld [vmem:[#allocation2 + $0x1a8] sm:$0xff]
    %v2548 = vld [vmem:[#allocation2 + $0x1b0] sm:$0xff]
    %v2549 = vld [vmem:[#allocation2 + $0x1b8] sm:$0xff]
    %v2550 = vld [vmem:[#allocation2 + $0x1c0] sm:$0xff]
    %v2551 = vld [vmem:[#allocation2 + $0x1c8] sm:$0xff]
    %v2552 = vld [vmem:[#allocation2 + $0x1d0] sm:$0xff]
    %v2553 = vld [vmem:[#allocation2 + $0x1d8] sm:$0xff]
    %v2554 = vld [vmem:[#allocation2 + $0x1e0] sm:$0xff]
    %v2555 = vld [vmem:[#allocation2 + $0x1e8] sm:$0xff]
    %v2556 = vld [vmem:[#allocation2 + $0x1f0] sm:$0xff]
    %v2557 = vld [vmem:[#allocation2 + $0x1f8] sm:$0xff]
    %v2558 = vld [vmem:[%s3] sm:$0xf]
    %v2560 = vlaneseq
    %v2561 = vshrl.u32 %v2560, 7
    %v2562 = vsub.s32 0, %v2561
    %v2563 = vrot.slane %v2558, %v2562
    %v2564 = vlaneseq
    %v2565 = vshrl.u32 %v2564, 7
    %v2566 = vsub.s32 1, %v2565
    %v2567 = vrot.slane %v2558, %v2566
    %v2568 = vlaneseq
    %v2569 = vshrl.u32 %v2568, 7
    %v2570 = vsub.s32 2, %v2569
    %v2571 = vrot.slane %v2558, %v2570
    %v2572 = vlaneseq
    %v2573 = vshrl.u32 %v2572, 7
    %v2574 = vsub.s32 3, %v2573
    %v2575 = vrot.slane %v2558, %v2574
    %2580 = vmatprep.subr.mxu0 %v2555
    %2581 = vmatpush1.msra.mxu0 %v2554
    %2582 = vmatprep.subr.mxu0 %v2551
    %2583 = vmatpush1.msra.mxu0 %v2550
    %2584 = vmatprep.subr.mxu0 %v2547
    %2585 = vmatpush1.msra.mxu0 %v2546
    %2586 = vmatprep.subr.mxu0 %v2543
    %2587 = vmatpush1.msra.mxu0 %v2542
    %2588 = vmatprep.subr.mxu0 %v2539
    %2589 = vmatpush1.msra.mxu0 %v2538
    %2590 = vmatprep.subr.mxu0 %v2535
    %2591 = vmatpush1.msra.mxu0 %v2534
    %2592 = vmatprep.subr.mxu0 %v2531
    %2593 = vmatpush1.msra.mxu0 %v2530
    %2594 = vmatprep.subr.mxu0 %v2527
    %2595 = vmatpush1.msra.mxu0 %v2526
    %2596 = vmatprep.subr.mxu0 %v2523
    %2597 = vmatpush1.msra.mxu0 %v2522
    %2598 = vmatprep.subr.mxu0 %v2519
    %2599 = vmatpush1.msra.mxu0 %v2518
    %2600 = vmatprep.subr.mxu0 %v2515
    %2601 = vmatpush1.msra.mxu0 %v2514
    %2602 = vmatprep.subr.mxu0 %v2511
    %2603 = vmatpush1.msra.mxu0 %v2510
    %2604 = vmatprep.subr.mxu0 %v2507
    %2605 = vmatpush1.msra.mxu0 %v2506
    %2606 = vmatprep.subr.mxu0 %v2503
    %2607 = vmatpush1.msra.mxu0 %v2502
    %2608 = vmatprep.subr.mxu0 %v2499
    %2609 = vmatpush1.msra.mxu0 %v2498
    %2610 = vmatprep.subr.mxu0 %v2495
    %2611 = vmatpush1.msra.mxu0 %v2494
    %2612 = vmatprep.subr.mxu0 0.0
    %2613 = vmatpush2.msra.mxu0 0.0
    %2614 = vmatprep.subr.mxu0 0.0
    %2615 = vmatpush2.msra.mxu0 0.0
    %2616 = vmatprep.subr.mxu0 0.0
    %2617 = vmatpush2.msra.mxu0 0.0
    %2618 = vmatprep.subr.mxu0 0.0
    %2619 = vmatpush2.msra.mxu0 0.0
    %2620 = vmatprep.subr.mxu0 0.0
    %2621 = vmatpush2.msra.mxu0 0.0
    %2622 = vmatprep.subr.mxu0 0.0
    %2623 = vmatpush2.msra.mxu0 0.0
    %2624 = vmatprep.subr.mxu0 0.0
    %2625 = vmatpush2.msra.mxu0 0.0
    %2626 = vmatprep.subr.mxu0 0.0
    %2627 = vmatpush2.msra.mxu0 0.0
    %2628 = vmatprep.subr.mxu0 0.0
    %2629 = vmatpush2.msra.mxu0 0.0
    %2630 = vmatprep.subr.mxu0 0.0
    %2631 = vmatpush2.msra.mxu0 0.0
    %2632 = vmatprep.subr.mxu0 0.0
    %2633 = vmatpush2.msra.mxu0 0.0
    %2634 = vmatprep.subr.mxu0 0.0
    %2635 = vmatpush2.msra.mxu0 0.0
    %2636 = vmatprep.subr.mxu0 0.0
    %2637 = vmatpush2.msra.mxu0 0.0
    %2638 = vmatprep.subr.mxu0 0.0
    %2639 = vmatpush2.msra.mxu0 0.0
    %2640 = vmatprep.subr.mxu0 0.0
    %2641 = vmatpush2.msra.mxu0 0.0
    %2642 = vmatprep.subr.mxu0 0.0
    %2643 = vmatpush2.msra.mxu0 0.0
    %2644 = vmatprep.mubr.f32.mxu0 0.0
    %2645 = vmatmul.mubr.f32.gmra.mxu0 %v2493
    %v2646 = vpop.f32.mrf.mxu0
    %v2647 = vadd.f32 %v2563, %v2646
    %v2648 = vpop.f32.mrf.mxu0
    %v2649 = vadd.f32 %v2567, %v2648
    %2650 = vdwg.mxu0
    %2651 = vmatprep.subr.mxu0 %v2557
    %2652 = vmatpush1.msra.mxu0 %v2556
    %2653 = vmatprep.subr.mxu0 %v2553
    %2654 = vmatpush1.msra.mxu0 %v2552
    %2655 = vmatprep.subr.mxu0 %v2549
    %2656 = vmatpush1.msra.mxu0 %v2548
    %2657 = vmatprep.subr.mxu0 %v2545
    %2658 = vmatpush1.msra.mxu0 %v2544
    %2659 = vmatprep.subr.mxu0 %v2541
    %2660 = vmatpush1.msra.mxu0 %v2540
    %2661 = vmatprep.subr.mxu0 %v2537
    %2662 = vmatpush1.msra.mxu0 %v2536
    %2663 = vmatprep.subr.mxu0 %v2533
    %2664 = vmatpush1.msra.mxu0 %v2532
    %2665 = vmatprep.subr.mxu0 %v2529
    %2666 = vmatpush1.msra.mxu0 %v2528
    %2667 = vmatprep.subr.mxu0 %v2525
    %2668 = vmatpush1.msra.mxu0 %v2524
    %2669 = vmatprep.subr.mxu0 %v2521
    %2670 = vmatpush1.msra.mxu0 %v2520
    %2671 = vmatprep.subr.mxu0 %v2517
    %2672 = vmatpush1.msra.mxu0 %v2516
    %2673 = vmatprep.subr.mxu0 %v2513
    %2674 = vmatpush1.msra.mxu0 %v2512
    %2675 = vmatprep.subr.mxu0 %v2509
    %2676 = vmatpush1.msra.mxu0 %v2508
    %2677 = vmatprep.subr.mxu0 %v2505
    %2678 = vmatpush1.msra.mxu0 %v2504
    %2679 = vmatprep.subr.mxu0 %v2501
    %2680 = vmatpush1.msra.mxu0 %v2500
    %2681 = vmatprep.subr.mxu0 %v2497
    %2682 = vmatpush1.msra.mxu0 %v2496
    %2683 = vmatprep.subr.mxu0 0.0
    %2684 = vmatpush2.msra.mxu0 0.0
    %2685 = vmatprep.subr.mxu0 0.0
    %2686 = vmatpush2.msra.mxu0 0.0
    %2687 = vmatprep.subr.mxu0 0.0
    %2688 = vmatpush2.msra.mxu0 0.0
    %2689 = vmatprep.subr.mxu0 0.0
    %2690 = vmatpush2.msra.mxu0 0.0
    %2691 = vmatprep.subr.mxu0 0.0
    %2692 = vmatpush2.msra.mxu0 0.0
    %2693 = vmatprep.subr.mxu0 0.0
    %2694 = vmatpush2.msra.mxu0 0.0
    %2695 = vmatprep.subr.mxu0 0.0
    %2696 = vmatpush2.msra.mxu0 0.0
    %2697 = vmatprep.subr.mxu0 0.0
    %2698 = vmatpush2.msra.mxu0 0.0
    %2699 = vmatprep.subr.mxu0 0.0
    %2700 = vmatpush2.msra.mxu0 0.0
    %2701 = vmatprep.subr.mxu0 0.0
    %2702 = vmatpush2.msra.mxu0 0.0
    %2703 = vmatprep.subr.mxu0 0.0
    %2704 = vmatpush2.msra.mxu0 0.0
    %2705 = vmatprep.subr.mxu0 0.0
    %2706 = vmatpush2.msra.mxu0 0.0
    %2707 = vmatprep.subr.mxu0 0.0
    %2708 = vmatpush2.msra.mxu0 0.0
    %2709 = vmatprep.subr.mxu0 0.0
    %2710 = vmatpush2.msra.mxu0 0.0
    %2711 = vmatprep.subr.mxu0 0.0
    %2712 = vmatpush2.msra.mxu0 0.0
    %2713 = vmatprep.subr.mxu0 0.0
    %2714 = vmatpush2.msra.mxu0 0.0
    %2715 = vmatprep.mubr.f32.mxu0 0.0
    %2716 = vmatmul.mubr.f32.gmra.mxu0 %v2493
    %v2717 = vpop.f32.mrf.mxu0
    %v2718 = vadd.f32 %v2571, %v2717
    %v2719 = vpop.f32.mrf.mxu0
    %v2720 = vadd.f32 %v2575, %v2719
    %2721 = vdwg.mxu0
    %v2722 = vxor.u32 %v2647, 2147483648
    %v2723 = vmul.f32 %v2722, 1.442695
    %v2724 = vpow.pop %v2723
    %v2725 = vadd.f32 %v2724, 1.0
    %v2726 = vrcp.pop %v2725
    %v2727 = vmul.f32 1.0, %v2726
    %v2728 = vxor.u32 %v2649, 2147483648
    %v2729 = vmul.f32 %v2728, 1.442695
    %v2730 = vpow.pop %v2729
    %v2731 = vadd.f32 %v2730, 1.0
    %v2732 = vrcp.pop %v2731
    %v2733 = vmul.f32 1.0, %v2732
    %v2734 = vmul.f32 %v2727, %v2720
    %v2735 = vadd.f32 %v2718, %v2734
    %v2736 = vtanh.pop %v2735
    %v2737 = vsub.f32 1.0, %v2733
    %v2738 = vmul.f32 %v2737, %v2736
    %v2739 = vmul.f32 %v2733, %v2390
    %v2740 = vadd.f32 %v2738, %v2739
    %v2741 = vld [vmem:[%s4] sm:$0xff]
    %v2742 = vld [vmem:[%s4 + $0x8] sm:$0xff]
    %v2743 = vld [vmem:[%s4 + $0x10] sm:$0xff]
    %v2744 = vld [vmem:[%s4 + $0x18] sm:$0xff]
    %v2745 = vld [vmem:[%s4 + $0x20] sm:$0xff]
    %v2746 = vld [vmem:[%s4 + $0x28] sm:$0xff]
    %v2747 = vld [vmem:[%s4 + $0x30] sm:$0xff]
    %v2748 = vld [vmem:[%s4 + $0x38] sm:$0xff]
    %v2749 = vld [vmem:[%s4 + $0x40] sm:$0xff]
    %v2750 = vld [vmem:[%s4 + $0x48] sm:$0xff]
    %v2751 = vld [vmem:[%s4 + $0x50] sm:$0xff]
    %v2752 = vld [vmem:[%s4 + $0x58] sm:$0xff]
    %v2753 = vld [vmem:[%s4 + $0x60] sm:$0xff]
    %v2754 = vld [vmem:[%s4 + $0x68] sm:$0xff]
    %v2755 = vld [vmem:[%s4 + $0x70] sm:$0xff]
    %v2756 = vld [vmem:[%s4 + $0x78] sm:$0xff]
    %v2757 = vld [vmem:[%s5] sm:$0x1]
    %2758 = vmatprep.subr.mxu0 0.0
    %2759 = vmatpush1.msra.mxu0 %v2756
    %2760 = vmatprep.subr.mxu0 0.0
    %2761 = vmatpush1.msra.mxu0 %v2755
    %2762 = vmatprep.subr.mxu0 0.0
    %2763 = vmatpush1.msra.mxu0 %v2754
    %2764 = vmatprep.subr.mxu0 0.0
    %2765 = vmatpush1.msra.mxu0 %v2753
    %2766 = vmatprep.subr.mxu0 0.0
    %2767 = vmatpush1.msra.mxu0 %v2752
    %2768 = vmatprep.subr.mxu0 0.0
    %2769 = vmatpush1.msra.mxu0 %v2751
    %2770 = vmatprep.subr.mxu0 0.0
    %2771 = vmatpush1.msra.mxu0 %v2750
    %2772 = vmatprep.subr.mxu0 0.0
    %2773 = vmatpush1.msra.mxu0 %v2749
    %2774 = vmatprep.subr.mxu0 0.0
    %2775 = vmatpush1.msra.mxu0 %v2748
    %2776 = vmatprep.subr.mxu0 0.0
    %2777 = vmatpush1.msra.mxu0 %v2747
    %2778 = vmatprep.subr.mxu0 0.0
    %2779 = vmatpush1.msra.mxu0 %v2746
    %2780 = vmatprep.subr.mxu0 0.0
    %2781 = vmatpush1.msra.mxu0 %v2745
    %2782 = vmatprep.subr.mxu0 0.0
    %2783 = vmatpush1.msra.mxu0 %v2744
    %2784 = vmatprep.subr.mxu0 0.0
    %2785 = vmatpush1.msra.mxu0 %v2743
    %2786 = vmatprep.subr.mxu0 0.0
    %2787 = vmatpush1.msra.mxu0 %v2742
    %2788 = vmatprep.subr.mxu0 0.0
    %2789 = vmatpush1.msra.mxu0 %v2741
    %2790 = vmatprep.subr.mxu0 0.0
    %2791 = vmatpush2.msra.mxu0 0.0
    %2792 = vmatprep.subr.mxu0 0.0
    %2793 = vmatpush2.msra.mxu0 0.0
    %2794 = vmatprep.subr.mxu0 0.0
    %2795 = vmatpush2.msra.mxu0 0.0
    %2796 = vmatprep.subr.mxu0 0.0
    %2797 = vmatpush2.msra.mxu0 0.0
    %2798 = vmatprep.subr.mxu0 0.0
    %2799 = vmatpush2.msra.mxu0 0.0
    %2800 = vmatprep.subr.mxu0 0.0
    %2801 = vmatpush2.msra.mxu0 0.0
    %2802 = vmatprep.subr.mxu0 0.0
    %2803 = vmatpush2.msra.mxu0 0.0
    %2804 = vmatprep.subr.mxu0 0.0
    %2805 = vmatpush2.msra.mxu0 0.0
    %2806 = vmatprep.subr.mxu0 0.0
    %2807 = vmatpush2.msra.mxu0 0.0
    %2808 = vmatprep.subr.mxu0 0.0
    %2809 = vmatpush2.msra.mxu0 0.0
    %2810 = vmatprep.subr.mxu0 0.0
    %2811 = vmatpush2.msra.mxu0 0.0
    %2812 = vmatprep.subr.mxu0 0.0
    %2813 = vmatpush2.msra.mxu0 0.0
    %2814 = vmatprep.subr.mxu0 0.0
    %2815 = vmatpush2.msra.mxu0 0.0
    %2816 = vmatprep.subr.mxu0 0.0
    %2817 = vmatpush2.msra.mxu0 0.0
    %2818 = vmatprep.subr.mxu0 0.0
    %2819 = vmatpush2.msra.mxu0 0.0
    %2820 = vmatprep.subr.mxu0 0.0
    %2821 = vmatpush2.msra.mxu0 0.0
    %2822 = vmatprep.mubr.f32.mxu0 0.0
    %2823 = vmatmul.mubr.f32.gmra.mxu0 %v2740
    %v2824 = vpop.f32.mrf.mxu0
    %v2825 = vadd.f32 %v2757, %v2824
    %v2826 = vpop.f32.mrf.mxu0
    %2827 = vdwg.mxu0
    %v2828 = vsel %vm377, %v2825, -inf
    %2829 = vmax.xlane.f32.xlu0 %v2828
    %v2830 = vpop.xlane.xlu0 %2829
    %v2831 = vsub.f32 %v2825, %v2830
    %v2832 = vmul.f32 %v2831, 1.442695
    %v2833 = vpow.pop %v2832
    %v2834 = vsel %vm377, %v2833, 0.0
    %2835 = vadd.xlane.f32.xlu0 %v2834
    %v2836 = vpop.xlane.xlu0 %2835
    %v2837 = vlog2.pop %v2836
    %v2838 = vmul.f32 %v2837, 0.6931472
    %v2839 = vadd.f32 %v2830, %v2838
    %v2840 = vsub.f32 %v2825, %v2839
    %2841 = vst [vmem:[#allocation5 + $0x7] sm:$0x1] %v2840
    %2842 = vst [vmem:[%s7] sm:$0x1] %v2740
    // Predicated region
    $region30: #{decoder_rnn_forward_seq.1} parent=1 // pred_check
      _
    $region31: #{decoder_rnn_forward_seq.1} parent=1 // pred_check_branch
      %2844 = sbr.rel (0) target = $region33
    $region32: #{decoder_rnn_forward_seq.1} parent=1 // pred_region
      %s2846 = ssub.s32 128, 128
      %2847 = vsyncadd [#allocation4], %s2846
      %s2849 = sshll.u32 [#allocation5], 4
      %s2850 = int_to_ptr.vmem [resolvable:$true] %s2849
      %2852 = dma.vmem_to_hbm [thread:$0]  %s2850, 128, %s6, [#allocation4]
    $region33: #{decoder_rnn_forward_seq.1} parent=1 // pred_fallthru
      _
    // Predicated region
    $region34: #{decoder_rnn_forward_seq.1} parent=1 // pred_check
      _
    $region35: #{decoder_rnn_forward_seq.1} parent=1 // pred_check_branch
      %2854 = sbr.rel (0) target = $region37
    $region36: #{decoder_rnn_forward_seq.1} parent=1 // pred_region
      _
    $region37: #{decoder_rnn_forward_seq.1} parent=1 // pred_fallthru
      _
    // Predicated region
    $region38: #{decoder_rnn_forward_seq.1} parent=1 // pred_check
      _
    $region39: #{decoder_rnn_forward_seq.1} parent=1 // pred_check_branch
      %2856 = sbr.rel (0) target = $region41
    $region40: #{decoder_rnn_forward_seq.1} parent=1 // pred_region
      %2857 = dma.done [#allocation4], 128
    $region41: #{decoder_rnn_forward_seq.1} parent=1 // pred_fallthru
      _
    // Predicated region
    $region42: #{decoder_rnn_forward_seq.1} parent=1 // pred_check
      _
    $region43: #{decoder_rnn_forward_seq.1} parent=1 // pred_check_branch
      %2859 = sbr.rel (0) target = $region45
    $region44: #{decoder_rnn_forward_seq.1} parent=1 // pred_region
      _
    $region45: #{decoder_rnn_forward_seq.1} parent=1 // pred_fallthru
      _
    %2860 = vsyncpa [#allocation3], 1
    %2861 = vsyncpa [#allocation4], 1

</llo_original>
